<compile_context>
chip_gen: v6e
topology: v6e:2x2x1
jax: 0.10.0
libtpu: 0.0.40
codegen_flags: <defaults>
</compile_context>

<pallas_src>
import functools

import jax
import jax.numpy as jnp
from jax.experimental import pallas as pl
from jax.experimental.pallas import tpu as pltpu


def _vae_kernel(x_ref, eps_ref, w_ref, b_ref, recon_ref, mulv_ref,
                *, T, Bp, P, woff, boff):
    """x_ref:   (T*Bp, P)  bf16, time-major, row t*Bp + b
       eps_ref: (Bp, P)    f32, reparameterization noise (lane-padded)
       w_ref:   (P, 20P)   bf16 packed weights (all pre-transposed + padded)
       b_ref:   (1, 12P)   f32 packed biases
       recon_ref: (T*Bp, P) f32, mulv_ref: (Bp, 2P) f32 (mu | logvar)."""
    f32, bf16 = jnp.float32, jnp.bfloat16
    G = 4 * P

    # Static, 128-lane-aligned views into the packed blobs (free).
    def w(name, width):
        o = woff[name]
        return w_ref[:, o:o + width]

    def b(name, width):
        o = boff[name]
        return b_ref[:, o:o + width]

    def cell(xw, h, c, whh):
        """One LSTM step; `xw` already holds x @ W_ih + (b_ih + b_hh).
        Gate order i, f, g, o (PyTorch); every slice is a full 128-lane view."""
        gates = xw + jnp.dot(h.astype(bf16), whh, preferred_element_type=f32)
        i = jax.nn.sigmoid(gates[:, 0 * P:1 * P])
        f = jax.nn.sigmoid(gates[:, 1 * P:2 * P])
        g = jnp.tanh(gates[:, 2 * P:3 * P])
        o = jax.nn.sigmoid(gates[:, 3 * P:4 * P])
        c_new = f * c + i * g
        return o * jnp.tanh(c_new), c_new

    # ---------------- Encoder LSTM ----------------
    # Input projection (+ folded biases) hoisted off the serial recurrence.
    xw_e = jnp.dot(x_ref[...], w("wih_e", G),
                   preferred_element_type=f32) + b("b_e", G)        # (T*Bp, 4P)
    whh_e = w("whh_e", G)                                           # (P, 4P) bf16

    h = jnp.zeros((Bp, P), f32)
    c = jnp.zeros((Bp, P), f32)
    for t in range(T):                       # fully unrolled, full-tile slices
        h, c = cell(xw_e[t * Bp:(t + 1) * Bp, :], h, c, whh_e)

    # Faithful to the reference: Encoder.forward feeds c_n into fc_mu/fc_logvar
    # (`h_n = c_n.squeeze(0)`).  mu | logvar fused into one matmul + one store.
    mulv = jnp.dot(c.astype(bf16), w("wmulv", 2 * P),
                   preferred_element_type=f32) + b("b_mulv", 2 * P)  # (Bp, 2P)
    mulv_ref[...] = mulv
    mu, logvar = mulv[:, :P], mulv[:, P:]

    # ---------------- Reparameterize (eps supplied from host) ----------------
    z = mu + eps_ref[...] * jnp.exp(0.5 * logvar)

    # ---------------- Decoder ----------------
    h_in = jnp.maximum(
        jnp.dot(z.astype(bf16), w("wfc", P), preferred_element_type=f32)
        + b("b_fc", P), 0.0)
    # Decoder LSTM sees the identical input every step -> project it once.
    xw_d = jnp.dot(h_in.astype(bf16), w("wih_d", G),
                   preferred_element_type=f32) + b("b_d", G)         # (Bp, 4P)
    whh_d = w("whh_d", G)

    h = jnp.zeros((Bp, P), f32)
    c = jnp.zeros((Bp, P), f32)
    hs = []
    for t in range(T):
        h, c = cell(xw_d, h, c, whh_d)
        hs.append(h)                          # keep live; no scratch round-trip
    hs_all = jnp.concatenate(hs, axis=0).astype(bf16)                # (T*Bp, P)

    # Hoisted, lane-dense output projection: one matmul + one bulk store.
    recon_ref[...] = (jnp.dot(hs_all, w("wout", P), preferred_element_type=f32)
                      + b("b_out", P))


# -------------------- wrapper-side weight preparation --------------------

def _gate_pad_cols_t(wm, H, P):
    """PyTorch (4H, K) LSTM weight -> transposed (K, 4P); each of the 4 gate
    blocks (order i, f, g, o) zero-padded from H to P output columns."""
    K = wm.shape[1]
    wt = jnp.transpose(wm).reshape(K, 4, H)
    wt = jnp.pad(wt, ((0, 0), (0, 0), (0, P - H)))
    return wt.reshape(K, 4 * P)


def _gate_pad_bias(bv, H, P):
    return jnp.pad(bv.reshape(4, H), ((0, 0), (0, P - H))).reshape(1, 4 * P)


def _pad2(wm, rows, cols):
    return jnp.pad(wm, ((0, rows - wm.shape[0]), (0, cols - wm.shape[1])))


def _pad_rows(wm, rows):
    return jnp.pad(wm, ((0, rows - wm.shape[0]), (0, 0)))


def _pad_vec(bv, P):
    return jnp.pad(bv.reshape(1, -1), ((0, 0), (0, P - bv.shape[0])))


def init_params(key, input_dim=5, hidden_dim=64, latent_dim=16):
    """Deterministic synthetic parameters matching the PyTorch module's shapes."""
    ks = jax.random.split(key, 16)

    def u(k, shape, fan_in):
        bound = 1.0 / (fan_in ** 0.5)
        return jax.random.uniform(k, shape, jnp.float32, -bound, bound)

    H, L, D = hidden_dim, latent_dim, input_dim
    return dict(
        # Encoder LSTM
        wih_e=u(ks[0], (4 * H, D), H), whh_e=u(ks[1], (4 * H, H), H),
        bih_e=u(ks[2], (4 * H,), H), bhh_e=u(ks[3], (4 * H,), H),
        # fc_mu / fc_logvar
        wmu=u(ks[4], (L, H), H), bmu=u(ks[5], (L,), H),
        wlv=u(ks[6], (L, H), H), blv=u(ks[7], (L,), H),
        # Decoder fc
        wfc=u(ks[8], (H, L), L), bfc=u(ks[9], (H,), L),
        # Decoder LSTM
        wih_d=u(ks[10], (4 * H, H), H), whh_d=u(ks[11], (4 * H, H), H),
        bih_d=u(ks[12], (4 * H,), H), bhh_d=u(ks[13], (4 * H,), H),
        # output_layer
        wout=u(ks[14], (D, H), H), bout=u(ks[15], (D,), H),
    )


def vae_forward(x, eps, params):
    """x: (B, T, input_dim) float32 (batch_first, like the PyTorch module).
    eps: (B, latent_dim) standard-normal noise (torch.randn_like equivalent,
    generated on the host for determinism)."""
    B, T, Din = x.shape
    H = params["whh_e"].shape[1]
    L = params["wmu"].shape[0]
    Dout = params["wout"].shape[0]
    P = ((max(H, L, Din, Dout) + 127) // 128) * 128   # common lane pad (=128)
    Bp = ((B + 7) // 8) * 8                           # sublane-pad the batch
    f32, bf16 = jnp.float32, jnp.bfloat16

    # ---- single bf16 weight blob: (P, 20P), columns back-to-back, every
    # segment a multiple of 128 lanes wide -> in-kernel slices are aligned ----
    blobs = [
        ("wih_e", _pad_rows(_gate_pad_cols_t(params["wih_e"], H, P), P)),
        ("whh_e", _pad_rows(_gate_pad_cols_t(params["whh_e"], H, P), P)),
        ("wmulv", jnp.concatenate(
            [_pad2(jnp.transpose(params["wmu"]), P, P),
             _pad2(jnp.transpose(params["wlv"]), P, P)], axis=1)),
        ("wfc",   _pad2(jnp.transpose(params["wfc"]), P, P)),
        ("wih_d", _pad_rows(_gate_pad_cols_t(params["wih_d"], H, P), P)),
        ("whh_d", _pad_rows(_gate_pad_cols_t(params["whh_d"], H, P), P)),
        ("wout",  _pad2(jnp.transpose(params["wout"]), P, P)),
    ]
    woff, off = {}, 0
    for name, wm in blobs:
        woff[name] = off
        off += wm.shape[1]
    w_blob = jnp.concatenate([wm for _, wm in blobs], axis=1).astype(bf16)

    # ---- single f32 bias blob: (1, 12P) ----
    biases = [
        ("b_e",    _gate_pad_bias(params["bih_e"] + params["bhh_e"], H, P)),
        ("b_mulv", jnp.concatenate([_pad_vec(params["bmu"], P),
                                    _pad_vec(params["blv"], P)], axis=1)),
        ("b_fc",   _pad_vec(params["bfc"], P)),
        ("b_d",    _gate_pad_bias(params["bih_d"] + params["bhh_d"], H, P)),
        ("b_out",  _pad_vec(params["bout"], P)),
    ]
    boff, off = {}, 0
    for name, bv in biases:
        boff[name] = off
        off += bv.shape[1]
    b_blob = jnp.concatenate([bv for _, bv in biases], axis=1)

    # ---- activations: time-major, batch padded to 8 sublanes, 128 lanes ----
    x_tm = jnp.transpose(x, (1, 0, 2))                          # (T, B, Din)
    x_tm = jnp.pad(x_tm, ((0, 0), (0, Bp - B), (0, P - Din)))
    x2 = x_tm.reshape(T * Bp, P).astype(bf16)                   # row t*Bp + b
    eps_p = jnp.pad(eps, ((0, Bp - B), (0, P - L)))             # (Bp, P) f32

    kernel = functools.partial(_vae_kernel, T=T, Bp=Bp, P=P,
                               woff=woff, boff=boff)

    # TODO(synk): at realistic batch sizes add a leading "parallel" batch grid
    # axis so v7x's second TensorCore is used; at B=2 it is pure overhead.
    vspec = pl.BlockSpec(memory_space=pltpu.MemorySpace.VMEM)
    recon2, mulv = pl.pallas_call(
        kernel,
        out_shape=(
            jax.ShapeDtypeStruct((T * Bp, P), f32),     # lane-dense recon
            jax.ShapeDtypeStruct((Bp, 2 * P), f32),     # mu | logvar
        ),
        in_specs=[vspec, vspec, vspec, vspec],
        out_specs=(vspec, vspec),
    )(x2, eps_p, w_blob, b_blob)

    recon = jnp.transpose(recon2.reshape(T, Bp, P)[:, :B, :Dout], (1, 0, 2))
    mu = mulv[:B, :L]
    logvar = mulv[:B, P:P + L]
    return recon, mu, logvar


# -------------------- pure-JAX f32 reference (matches the PyTorch module) ----

def vae_reference(x, eps, params):
    B, T, _ = x.shape
    H = params["whh_e"].shape[1]

    def lstm(xs, wih, whh, bih, bhh):
        h = jnp.zeros((B, H), jnp.float32)
        c = jnp.zeros((B, H), jnp.float32)
        outs = []
        for t in range(T):
            gates = xs[:, t, :] @ wih.T + h @ whh.T + bih + bhh
            i, f, g, o = jnp.split(gates, 4, axis=-1)
            i, f, o = jax.nn.sigmoid(i), jax.nn.sigmoid(f), jax.nn.sigmoid(o)
            g = jnp.tanh(g)
            c = f * c + i * g
            h = o * jnp.tanh(c)
            outs.append(h)
        return jnp.stack(outs, axis=1), h, c

    _, _, c_n = lstm(x, params["wih_e"], params["whh_e"],
                     params["bih_e"], params["bhh_e"])
    hn = c_n                                   # reference uses c_n
    mu = hn @ params["wmu"].T + params["bmu"]
    logvar = hn @ params["wlv"].T + params["blv"]
    z = mu + eps * jnp.exp(0.5 * logvar)
    h_in = jax.nn.relu(z @ params["wfc"].T + params["bfc"])
    dec_in = jnp.repeat(h_in[:, None, :], T, axis=1)
    lstm_out, _, _ = lstm(dec_in, params["wih_d"], params["whh_d"],
                          params["bih_d"], params["bhh_d"])
    recon = lstm_out @ params["wout"].T + params["bout"]
    return recon, mu, logvar


if __name__ == "__main__":
    key = jax.random.PRNGKey(0)
    k_x, k_eps, k_p = jax.random.split(key, 3)

    B, T, D, H, L = 2, 8, 5, 64, 16
    x = jax.random.normal(k_x, (B, T, D), jnp.float32)
    # eps for the reparameterization trick (torch.randn_like equivalent).
    eps = jax.random.normal(k_eps, (B, L), jnp.float32)
    params = init_params(k_p, input_dim=D, hidden_dim=H, latent_dim=L)

    recon, mu, logvar = jax.jit(vae_forward)(x, eps, params)
    jax.block_until_ready((recon, mu, logvar))

    assert recon.shape == (B, T, D)
    assert mu.shape == (B, L) and logvar.shape == (B, L)
    assert bool(jnp.all(jnp.isfinite(recon)))
    assert bool(jnp.all(jnp.isfinite(mu))) and bool(jnp.all(jnp.isfinite(logvar)))

    # Loose smoke-check vs. a pure-f32 JAX reference (kernel uses bf16 MXU
    # inputs, so small recurrent drift is expected and acceptable).
    recon_r, mu_r, logvar_r = vae_reference(x, eps, params)
    assert float(jnp.max(jnp.abs(recon - recon_r))) < 0.25
    assert float(jnp.max(jnp.abs(mu - mu_r))) < 0.25
    assert float(jnp.max(jnp.abs(logvar - logvar_r))) < 0.25

    print("KERNEL_OK")
</pallas_src>

<mosaic_0001>
module attributes {stable_mosaic.version = 11 : i64} {
  func.func @_vae_kernel(%arg0: memref<64x128xbf16, #tpu.memory_space<vmem>>, %arg1: memref<8x128xf32, #tpu.memory_space<vmem>>, %arg2: memref<128x2560xbf16, #tpu.memory_space<vmem>>, %arg3: memref<1x1536xf32, #tpu.memory_space<vmem>>, %arg4: memref<64x128xf32, #tpu.memory_space<vmem>>, %arg5: memref<8x256xf32, #tpu.memory_space<vmem>>) attributes {dimension_semantics = [], scalar_prefetch = 0 : i64, scratch_operands = 0 : i64, tpu.core_type = #tpu.core_type<tc>} {
    %c0 = arith.constant 0 : index
    %c0_0 = arith.constant 0 : index
    %0 = vector.load %arg0[%c0, %c0_0] : memref<64x128xbf16, #tpu.memory_space<vmem>>, vector<64x128xbf16>
    %c0_1 = arith.constant 0 : index
    %c0_2 = arith.constant 0 : index
    %1 = vector.load %arg2[%c0_1, %c0_2] : memref<128x2560xbf16, #tpu.memory_space<vmem>>, vector<128x512xbf16>
    %cst = arith.constant dense<0.000000e+00> : vector<64x512xf32>
    %2 = tpu.matmul %0, %1, %cst {dimension_numbers = #tpu.dot_dimension_numbers<[1], [0], [0], [1], [0, 0, 1, 1], [], []>} : vector<64x128xbf16>, vector<128x512xbf16>, vector<64x512xf32> -> vector<64x512xf32>
    %c0_3 = arith.constant 0 : index
    %c0_4 = arith.constant 0 : index
    %3 = vector.load %arg3[%c0_3, %c0_4] : memref<1x1536xf32, #tpu.memory_space<vmem>>, vector<1x512xf32>
    %4 = vector.broadcast %3 : vector<1x512xf32> to vector<64x512xf32>
    %5 = arith.addf %2, %4 : vector<64x512xf32>
    %c0_5 = arith.constant 0 : index
    %c512 = arith.constant 512 : index
    %6 = vector.load %arg2[%c0_5, %c512] : memref<128x2560xbf16, #tpu.memory_space<vmem>>, vector<128x512xbf16>
    %cst_6 = arith.constant 0.000000e+00 : f32
    %7 = vector.broadcast %cst_6 : f32 to vector<8x128xf32>
    %cst_7 = arith.constant 0.000000e+00 : f32
    %8 = vector.broadcast %cst_7 : f32 to vector<8x128xf32>
    %9 = vector.extract_strided_slice %5 {offsets = [0, 0], sizes = [8, 512], strides = [1, 1]} : vector<64x512xf32> to vector<8x512xf32>
    %10 = arith.truncf %7 : vector<8x128xf32> to vector<8x128xbf16>
    %cst_8 = arith.constant dense<0.000000e+00> : vector<8x512xf32>
    %11 = tpu.matmul %10, %6, %cst_8 {dimension_numbers = #tpu.dot_dimension_numbers<[1], [0], [0], [1], [0, 0, 1, 1], [], []>} : vector<8x128xbf16>, vector<128x512xbf16>, vector<8x512xf32> -> vector<8x512xf32>
    %12 = arith.addf %9, %11 : vector<8x512xf32>
    %13 = vector.extract_strided_slice %12 {offsets = [0, 0], sizes = [8, 128], strides = [1, 1]} : vector<8x512xf32> to vector<8x128xf32>
    %14 = arith.negf %13 : vector<8x128xf32>
    %15 = math.exp %14 : vector<8x128xf32>
    %cst_9 = arith.constant 1.000000e+00 : f32
    %16 = vector.broadcast %cst_9 : f32 to vector<8x128xf32>
    %17 = arith.addf %16, %15 : vector<8x128xf32>
    %18 = arith.divf %16, %17 : vector<8x128xf32>
    %19 = vector.extract_strided_slice %12 {offsets = [0, 128], sizes = [8, 128], strides = [1, 1]} : vector<8x512xf32> to vector<8x128xf32>
    %20 = arith.negf %19 : vector<8x128xf32>
    %21 = math.exp %20 : vector<8x128xf32>
    %cst_10 = arith.constant 1.000000e+00 : f32
    %22 = vector.broadcast %cst_10 : f32 to vector<8x128xf32>
    %23 = arith.addf %22, %21 : vector<8x128xf32>
    %24 = arith.divf %22, %23 : vector<8x128xf32>
    %25 = vector.extract_strided_slice %12 {offsets = [0, 256], sizes = [8, 128], strides = [1, 1]} : vector<8x512xf32> to vector<8x128xf32>
    %26 = math.tanh %25 : vector<8x128xf32>
    %27 = vector.extract_strided_slice %12 {offsets = [0, 384], sizes = [8, 128], strides = [1, 1]} : vector<8x512xf32> to vector<8x128xf32>
    %28 = arith.negf %27 : vector<8x128xf32>
    %29 = math.exp %28 : vector<8x128xf32>
    %cst_11 = arith.constant 1.000000e+00 : f32
    %30 = vector.broadcast %cst_11 : f32 to vector<8x128xf32>
    %31 = arith.addf %30, %29 : vector<8x128xf32>
    %32 = arith.divf %30, %31 : vector<8x128xf32>
    %33 = arith.mulf %24, %8 : vector<8x128xf32>
    %34 = arith.mulf %18, %26 : vector<8x128xf32>
    %35 = arith.addf %33, %34 : vector<8x128xf32>
    %36 = math.tanh %35 : vector<8x128xf32>
    %37 = arith.mulf %32, %36 : vector<8x128xf32>
    %38 = vector.extract_strided_slice %5 {offsets = [8, 0], sizes = [8, 512], strides = [1, 1]} : vector<64x512xf32> to vector<8x512xf32>
    %39 = arith.truncf %37 : vector<8x128xf32> to vector<8x128xbf16>
    %cst_12 = arith.constant dense<0.000000e+00> : vector<8x512xf32>
    %40 = tpu.matmul %39, %6, %cst_12 {dimension_numbers = #tpu.dot_dimension_numbers<[1], [0], [0], [1], [0, 0, 1, 1], [], []>} : vector<8x128xbf16>, vector<128x512xbf16>, vector<8x512xf32> -> vector<8x512xf32>
    %41 = arith.addf %38, %40 : vector<8x512xf32>
    %42 = vector.extract_strided_slice %41 {offsets = [0, 0], sizes = [8, 128], strides = [1, 1]} : vector<8x512xf32> to vector<8x128xf32>
    %43 = arith.negf %42 : vector<8x128xf32>
    %44 = math.exp %43 : vector<8x128xf32>
    %cst_13 = arith.constant 1.000000e+00 : f32
    %45 = vector.broadcast %cst_13 : f32 to vector<8x128xf32>
    %46 = arith.addf %45, %44 : vector<8x128xf32>
    %47 = arith.divf %45, %46 : vector<8x128xf32>
    %48 = vector.extract_strided_slice %41 {offsets = [0, 128], sizes = [8, 128], strides = [1, 1]} : vector<8x512xf32> to vector<8x128xf32>
    %49 = arith.negf %48 : vector<8x128xf32>
    %50 = math.exp %49 : vector<8x128xf32>
    %cst_14 = arith.constant 1.000000e+00 : f32
    %51 = vector.broadcast %cst_14 : f32 to vector<8x128xf32>
    %52 = arith.addf %51, %50 : vector<8x128xf32>
    %53 = arith.divf %51, %52 : vector<8x128xf32>
    %54 = vector.extract_strided_slice %41 {offsets = [0, 256], sizes = [8, 128], strides = [1, 1]} : vector<8x512xf32> to vector<8x128xf32>
    %55 = math.tanh %54 : vector<8x128xf32>
    %56 = vector.extract_strided_slice %41 {offsets = [0, 384], sizes = [8, 128], strides = [1, 1]} : vector<8x512xf32> to vector<8x128xf32>
    %57 = arith.negf %56 : vector<8x128xf32>
    %58 = math.exp %57 : vector<8x128xf32>
    %cst_15 = arith.constant 1.000000e+00 : f32
    %59 = vector.broadcast %cst_15 : f32 to vector<8x128xf32>
    %60 = arith.addf %59, %58 : vector<8x128xf32>
    %61 = arith.divf %59, %60 : vector<8x128xf32>
    %62 = arith.mulf %53, %35 : vector<8x128xf32>
    %63 = arith.mulf %47, %55 : vector<8x128xf32>
    %64 = arith.addf %62, %63 : vector<8x128xf32>
    %65 = math.tanh %64 : vector<8x128xf32>
    %66 = arith.mulf %61, %65 : vector<8x128xf32>
    %67 = vector.extract_strided_slice %5 {offsets = [16, 0], sizes = [8, 512], strides = [1, 1]} : vector<64x512xf32> to vector<8x512xf32>
    %68 = arith.truncf %66 : vector<8x128xf32> to vector<8x128xbf16>
    %cst_16 = arith.constant dense<0.000000e+00> : vector<8x512xf32>
    %69 = tpu.matmul %68, %6, %cst_16 {dimension_numbers = #tpu.dot_dimension_numbers<[1], [0], [0], [1], [0, 0, 1, 1], [], []>} : vector<8x128xbf16>, vector<128x512xbf16>, vector<8x512xf32> -> vector<8x512xf32>
    %70 = arith.addf %67, %69 : vector<8x512xf32>
    %71 = vector.extract_strided_slice %70 {offsets = [0, 0], sizes = [8, 128], strides = [1, 1]} : vector<8x512xf32> to vector<8x128xf32>
    %72 = arith.negf %71 : vector<8x128xf32>
    %73 = math.exp %72 : vector<8x128xf32>
    %cst_17 = arith.constant 1.000000e+00 : f32
    %74 = vector.broadcast %cst_17 : f32 to vector<8x128xf32>
    %75 = arith.addf %74, %73 : vector<8x128xf32>
    %76 = arith.divf %74, %75 : vector<8x128xf32>
    %77 = vector.extract_strided_slice %70 {offsets = [0, 128], sizes = [8, 128], strides = [1, 1]} : vector<8x512xf32> to vector<8x128xf32>
    %78 = arith.negf %77 : vector<8x128xf32>
    %79 = math.exp %78 : vector<8x128xf32>
    %cst_18 = arith.constant 1.000000e+00 : f32
    %80 = vector.broadcast %cst_18 : f32 to vector<8x128xf32>
    %81 = arith.addf %80, %79 : vector<8x128xf32>
    %82 = arith.divf %80, %81 : vector<8x128xf32>
    %83 = vector.extract_strided_slice %70 {offsets = [0, 256], sizes = [8, 128], strides = [1, 1]} : vector<8x512xf32> to vector<8x128xf32>
    %84 = math.tanh %83 : vector<8x128xf32>
    %85 = vector.extract_strided_slice %70 {offsets = [0, 384], sizes = [8, 128], strides = [1, 1]} : vector<8x512xf32> to vector<8x128xf32>
    %86 = arith.negf %85 : vector<8x128xf32>
    %87 = math.exp %86 : vector<8x128xf32>
    %cst_19 = arith.constant 1.000000e+00 : f32
    %88 = vector.broadcast %cst_19 : f32 to vector<8x128xf32>
    %89 = arith.addf %88, %87 : vector<8x128xf32>
    %90 = arith.divf %88, %89 : vector<8x128xf32>
    %91 = arith.mulf %82, %64 : vector<8x128xf32>
    %92 = arith.mulf %76, %84 : vector<8x128xf32>
    %93 = arith.addf %91, %92 : vector<8x128xf32>
    %94 = math.tanh %93 : vector<8x128xf32>
    %95 = arith.mulf %90, %94 : vector<8x128xf32>
    %96 = vector.extract_strided_slice %5 {offsets = [24, 0], sizes = [8, 512], strides = [1, 1]} : vector<64x512xf32> to vector<8x512xf32>
    %97 = arith.truncf %95 : vector<8x128xf32> to vector<8x128xbf16>
    %cst_20 = arith.constant dense<0.000000e+00> : vector<8x512xf32>
    %98 = tpu.matmul %97, %6, %cst_20 {dimension_numbers = #tpu.dot_dimension_numbers<[1], [0], [0], [1], [0, 0, 1, 1], [], []>} : vector<8x128xbf16>, vector<128x512xbf16>, vector<8x512xf32> -> vector<8x512xf32>
    %99 = arith.addf %96, %98 : vector<8x512xf32>
    %100 = vector.extract_strided_slice %99 {offsets = [0, 0], sizes = [8, 128], strides = [1, 1]} : vector<8x512xf32> to vector<8x128xf32>
    %101 = arith.negf %100 : vector<8x128xf32>
    %102 = math.exp %101 : vector<8x128xf32>
    %cst_21 = arith.constant 1.000000e+00 : f32
    %103 = vector.broadcast %cst_21 : f32 to vector<8x128xf32>
    %104 = arith.addf %103, %102 : vector<8x128xf32>
    %105 = arith.divf %103, %104 : vector<8x128xf32>
    %106 = vector.extract_strided_slice %99 {offsets = [0, 128], sizes = [8, 128], strides = [1, 1]} : vector<8x512xf32> to vector<8x128xf32>
    %107 = arith.negf %106 : vector<8x128xf32>
    %108 = math.exp %107 : vector<8x128xf32>
    %cst_22 = arith.constant 1.000000e+00 : f32
    %109 = vector.broadcast %cst_22 : f32 to vector<8x128xf32>
    %110 = arith.addf %109, %108 : vector<8x128xf32>
    %111 = arith.divf %109, %110 : vector<8x128xf32>
    %112 = vector.extract_strided_slice %99 {offsets = [0, 256], sizes = [8, 128], strides = [1, 1]} : vector<8x512xf32> to vector<8x128xf32>
    %113 = math.tanh %112 : vector<8x128xf32>
    %114 = vector.extract_strided_slice %99 {offsets = [0, 384], sizes = [8, 128], strides = [1, 1]} : vector<8x512xf32> to vector<8x128xf32>
    %115 = arith.negf %114 : vector<8x128xf32>
    %116 = math.exp %115 : vector<8x128xf32>
    %cst_23 = arith.constant 1.000000e+00 : f32
    %117 = vector.broadcast %cst_23 : f32 to vector<8x128xf32>
    %118 = arith.addf %117, %116 : vector<8x128xf32>
    %119 = arith.divf %117, %118 : vector<8x128xf32>
    %120 = arith.mulf %111, %93 : vector<8x128xf32>
    %121 = arith.mulf %105, %113 : vector<8x128xf32>
    %122 = arith.addf %120, %121 : vector<8x128xf32>
    %123 = math.tanh %122 : vector<8x128xf32>
    %124 = arith.mulf %119, %123 : vector<8x128xf32>
    %125 = vector.extract_strided_slice %5 {offsets = [32, 0], sizes = [8, 512], strides = [1, 1]} : vector<64x512xf32> to vector<8x512xf32>
    %126 = arith.truncf %124 : vector<8x128xf32> to vector<8x128xbf16>
    %cst_24 = arith.constant dense<0.000000e+00> : vector<8x512xf32>
    %127 = tpu.matmul %126, %6, %cst_24 {dimension_numbers = #tpu.dot_dimension_numbers<[1], [0], [0], [1], [0, 0, 1, 1], [], []>} : vector<8x128xbf16>, vector<128x512xbf16>, vector<8x512xf32> -> vector<8x512xf32>
    %128 = arith.addf %125, %127 : vector<8x512xf32>
    %129 = vector.extract_strided_slice %128 {offsets = [0, 0], sizes = [8, 128], strides = [1, 1]} : vector<8x512xf32> to vector<8x128xf32>
    %130 = arith.negf %129 : vector<8x128xf32>
    %131 = math.exp %130 : vector<8x128xf32>
    %cst_25 = arith.constant 1.000000e+00 : f32
    %132 = vector.broadcast %cst_25 : f32 to vector<8x128xf32>
    %133 = arith.addf %132, %131 : vector<8x128xf32>
    %134 = arith.divf %132, %133 : vector<8x128xf32>
    %135 = vector.extract_strided_slice %128 {offsets = [0, 128], sizes = [8, 128], strides = [1, 1]} : vector<8x512xf32> to vector<8x128xf32>
    %136 = arith.negf %135 : vector<8x128xf32>
    %137 = math.exp %136 : vector<8x128xf32>
    %cst_26 = arith.constant 1.000000e+00 : f32
    %138 = vector.broadcast %cst_26 : f32 to vector<8x128xf32>
    %139 = arith.addf %138, %137 : vector<8x128xf32>
    %140 = arith.divf %138, %139 : vector<8x128xf32>
    %141 = vector.extract_strided_slice %128 {offsets = [0, 256], sizes = [8, 128], strides = [1, 1]} : vector<8x512xf32> to vector<8x128xf32>
    %142 = math.tanh %141 : vector<8x128xf32>
    %143 = vector.extract_strided_slice %128 {offsets = [0, 384], sizes = [8, 128], strides = [1, 1]} : vector<8x512xf32> to vector<8x128xf32>
    %144 = arith.negf %143 : vector<8x128xf32>
    %145 = math.exp %144 : vector<8x128xf32>
    %cst_27 = arith.constant 1.000000e+00 : f32
    %146 = vector.broadcast %cst_27 : f32 to vector<8x128xf32>
    %147 = arith.addf %146, %145 : vector<8x128xf32>
    %148 = arith.divf %146, %147 : vector<8x128xf32>
    %149 = arith.mulf %140, %122 : vector<8x128xf32>
    %150 = arith.mulf %134, %142 : vector<8x128xf32>
    %151 = arith.addf %149, %150 : vector<8x128xf32>
    %152 = math.tanh %151 : vector<8x128xf32>
    %153 = arith.mulf %148, %152 : vector<8x128xf32>
    %154 = vector.extract_strided_slice %5 {offsets = [40, 0], sizes = [8, 512], strides = [1, 1]} : vector<64x512xf32> to vector<8x512xf32>
    %155 = arith.truncf %153 : vector<8x128xf32> to vector<8x128xbf16>
    %cst_28 = arith.constant dense<0.000000e+00> : vector<8x512xf32>
    %156 = tpu.matmul %155, %6, %cst_28 {dimension_numbers = #tpu.dot_dimension_numbers<[1], [0], [0], [1], [0, 0, 1, 1], [], []>} : vector<8x128xbf16>, vector<128x512xbf16>, vector<8x512xf32> -> vector<8x512xf32>
    %157 = arith.addf %154, %156 : vector<8x512xf32>
    %158 = vector.extract_strided_slice %157 {offsets = [0, 0], sizes = [8, 128], strides = [1, 1]} : vector<8x512xf32> to vector<8x128xf32>
    %159 = arith.negf %158 : vector<8x128xf32>
    %160 = math.exp %159 : vector<8x128xf32>
    %cst_29 = arith.constant 1.000000e+00 : f32
    %161 = vector.broadcast %cst_29 : f32 to vector<8x128xf32>
    %162 = arith.addf %161, %160 : vector<8x128xf32>
    %163 = arith.divf %161, %162 : vector<8x128xf32>
    %164 = vector.extract_strided_slice %157 {offsets = [0, 128], sizes = [8, 128], strides = [1, 1]} : vector<8x512xf32> to vector<8x128xf32>
    %165 = arith.negf %164 : vector<8x128xf32>
    %166 = math.exp %165 : vector<8x128xf32>
    %cst_30 = arith.constant 1.000000e+00 : f32
    %167 = vector.broadcast %cst_30 : f32 to vector<8x128xf32>
    %168 = arith.addf %167, %166 : vector<8x128xf32>
    %169 = arith.divf %167, %168 : vector<8x128xf32>
    %170 = vector.extract_strided_slice %157 {offsets = [0, 256], sizes = [8, 128], strides = [1, 1]} : vector<8x512xf32> to vector<8x128xf32>
    %171 = math.tanh %170 : vector<8x128xf32>
    %172 = vector.extract_strided_slice %157 {offsets = [0, 384], sizes = [8, 128], strides = [1, 1]} : vector<8x512xf32> to vector<8x128xf32>
    %173 = arith.negf %172 : vector<8x128xf32>
    %174 = math.exp %173 : vector<8x128xf32>
    %cst_31 = arith.constant 1.000000e+00 : f32
    %175 = vector.broadcast %cst_31 : f32 to vector<8x128xf32>
    %176 = arith.addf %175, %174 : vector<8x128xf32>
    %177 = arith.divf %175, %176 : vector<8x128xf32>
    %178 = arith.mulf %169, %151 : vector<8x128xf32>
    %179 = arith.mulf %163, %171 : vector<8x128xf32>
    %180 = arith.addf %178, %179 : vector<8x128xf32>
    %181 = math.tanh %180 : vector<8x128xf32>
    %182 = arith.mulf %177, %181 : vector<8x128xf32>
    %183 = vector.extract_strided_slice %5 {offsets = [48, 0], sizes = [8, 512], strides = [1, 1]} : vector<64x512xf32> to vector<8x512xf32>
    %184 = arith.truncf %182 : vector<8x128xf32> to vector<8x128xbf16>
    %cst_32 = arith.constant dense<0.000000e+00> : vector<8x512xf32>
    %185 = tpu.matmul %184, %6, %cst_32 {dimension_numbers = #tpu.dot_dimension_numbers<[1], [0], [0], [1], [0, 0, 1, 1], [], []>} : vector<8x128xbf16>, vector<128x512xbf16>, vector<8x512xf32> -> vector<8x512xf32>
    %186 = arith.addf %183, %185 : vector<8x512xf32>
    %187 = vector.extract_strided_slice %186 {offsets = [0, 0], sizes = [8, 128], strides = [1, 1]} : vector<8x512xf32> to vector<8x128xf32>
    %188 = arith.negf %187 : vector<8x128xf32>
    %189 = math.exp %188 : vector<8x128xf32>
    %cst_33 = arith.constant 1.000000e+00 : f32
    %190 = vector.broadcast %cst_33 : f32 to vector<8x128xf32>
    %191 = arith.addf %190, %189 : vector<8x128xf32>
    %192 = arith.divf %190, %191 : vector<8x128xf32>
    %193 = vector.extract_strided_slice %186 {offsets = [0, 128], sizes = [8, 128], strides = [1, 1]} : vector<8x512xf32> to vector<8x128xf32>
    %194 = arith.negf %193 : vector<8x128xf32>
    %195 = math.exp %194 : vector<8x128xf32>
    %cst_34 = arith.constant 1.000000e+00 : f32
    %196 = vector.broadcast %cst_34 : f32 to vector<8x128xf32>
    %197 = arith.addf %196, %195 : vector<8x128xf32>
    %198 = arith.divf %196, %197 : vector<8x128xf32>
    %199 = vector.extract_strided_slice %186 {offsets = [0, 256], sizes = [8, 128], strides = [1, 1]} : vector<8x512xf32> to vector<8x128xf32>
    %200 = math.tanh %199 : vector<8x128xf32>
    %201 = vector.extract_strided_slice %186 {offsets = [0, 384], sizes = [8, 128], strides = [1, 1]} : vector<8x512xf32> to vector<8x128xf32>
    %202 = arith.negf %201 : vector<8x128xf32>
    %203 = math.exp %202 : vector<8x128xf32>
    %cst_35 = arith.constant 1.000000e+00 : f32
    %204 = vector.broadcast %cst_35 : f32 to vector<8x128xf32>
    %205 = arith.addf %204, %203 : vector<8x128xf32>
    %206 = arith.divf %204, %205 : vector<8x128xf32>
    %207 = arith.mulf %198, %180 : vector<8x128xf32>
    %208 = arith.mulf %192, %200 : vector<8x128xf32>
    %209 = arith.addf %207, %208 : vector<8x128xf32>
    %210 = math.tanh %209 : vector<8x128xf32>
    %211 = arith.mulf %206, %210 : vector<8x128xf32>
    %212 = vector.extract_strided_slice %5 {offsets = [56, 0], sizes = [8, 512], strides = [1, 1]} : vector<64x512xf32> to vector<8x512xf32>
    %213 = arith.truncf %211 : vector<8x128xf32> to vector<8x128xbf16>
    %cst_36 = arith.constant dense<0.000000e+00> : vector<8x512xf32>
    %214 = tpu.matmul %213, %6, %cst_36 {dimension_numbers = #tpu.dot_dimension_numbers<[1], [0], [0], [1], [0, 0, 1, 1], [], []>} : vector<8x128xbf16>, vector<128x512xbf16>, vector<8x512xf32> -> vector<8x512xf32>
    %215 = arith.addf %212, %214 : vector<8x512xf32>
    %216 = vector.extract_strided_slice %215 {offsets = [0, 0], sizes = [8, 128], strides = [1, 1]} : vector<8x512xf32> to vector<8x128xf32>
    %217 = arith.negf %216 : vector<8x128xf32>
    %218 = math.exp %217 : vector<8x128xf32>
    %cst_37 = arith.constant 1.000000e+00 : f32
    %219 = vector.broadcast %cst_37 : f32 to vector<8x128xf32>
    %220 = arith.addf %219, %218 : vector<8x128xf32>
    %221 = arith.divf %219, %220 : vector<8x128xf32>
    %222 = vector.extract_strided_slice %215 {offsets = [0, 128], sizes = [8, 128], strides = [1, 1]} : vector<8x512xf32> to vector<8x128xf32>
    %223 = arith.negf %222 : vector<8x128xf32>
    %224 = math.exp %223 : vector<8x128xf32>
    %cst_38 = arith.constant 1.000000e+00 : f32
    %225 = vector.broadcast %cst_38 : f32 to vector<8x128xf32>
    %226 = arith.addf %225, %224 : vector<8x128xf32>
    %227 = arith.divf %225, %226 : vector<8x128xf32>
    %228 = vector.extract_strided_slice %215 {offsets = [0, 256], sizes = [8, 128], strides = [1, 1]} : vector<8x512xf32> to vector<8x128xf32>
    %229 = math.tanh %228 : vector<8x128xf32>
    %230 = arith.mulf %227, %209 : vector<8x128xf32>
    %231 = arith.mulf %221, %229 : vector<8x128xf32>
    %232 = arith.addf %230, %231 : vector<8x128xf32>
    %233 = arith.truncf %232 : vector<8x128xf32> to vector<8x128xbf16>
    %c0_39 = arith.constant 0 : index
    %c1024 = arith.constant 1024 : index
    %234 = vector.load %arg2[%c0_39, %c1024] : memref<128x2560xbf16, #tpu.memory_space<vmem>>, vector<128x256xbf16>
    %cst_40 = arith.constant dense<0.000000e+00> : vector<8x256xf32>
    %235 = tpu.matmul %233, %234, %cst_40 {dimension_numbers = #tpu.dot_dimension_numbers<[1], [0], [0], [1], [0, 0, 1, 1], [], []>} : vector<8x128xbf16>, vector<128x256xbf16>, vector<8x256xf32> -> vector<8x256xf32>
    %c0_41 = arith.constant 0 : index
    %c512_42 = arith.constant 512 : index
    %236 = vector.load %arg3[%c0_41, %c512_42] : memref<1x1536xf32, #tpu.memory_space<vmem>>, vector<1x256xf32>
    %237 = vector.broadcast %236 : vector<1x256xf32> to vector<8x256xf32>
    %238 = arith.addf %235, %237 : vector<8x256xf32>
    %c0_43 = arith.constant 0 : index
    %c0_44 = arith.constant 0 : index
    %239 = vector.load %arg5[%c0_43, %c0_44] : memref<8x256xf32, #tpu.memory_space<vmem>>, vector<8x256xf32>
    tpu.vector_store %arg5[%c0_43, %c0_44], %238 {strides = array<i32>} : memref<8x256xf32, #tpu.memory_space<vmem>>, vector<8x256xf32>,
    %240 = vector.extract_strided_slice %238 {offsets = [0, 0], sizes = [8, 128], strides = [1, 1]} : vector<8x256xf32> to vector<8x128xf32>
    %241 = vector.extract_strided_slice %238 {offsets = [0, 128], sizes = [8, 128], strides = [1, 1]} : vector<8x256xf32> to vector<8x128xf32>
    %c0_45 = arith.constant 0 : index
    %c0_46 = arith.constant 0 : index
    %242 = vector.load %arg1[%c0_45, %c0_46] : memref<8x128xf32, #tpu.memory_space<vmem>>, vector<8x128xf32>
    %cst_47 = arith.constant 5.000000e-01 : f32
    %243 = vector.broadcast %cst_47 : f32 to vector<8x128xf32>
    %244 = arith.mulf %243, %241 : vector<8x128xf32>
    %245 = math.exp %244 : vector<8x128xf32>
    %246 = arith.mulf %242, %245 : vector<8x128xf32>
    %247 = arith.addf %240, %246 : vector<8x128xf32>
    %248 = arith.truncf %247 : vector<8x128xf32> to vector<8x128xbf16>
    %c0_48 = arith.constant 0 : index
    %c1280 = arith.constant 1280 : index
    %249 = vector.load %arg2[%c0_48, %c1280] : memref<128x2560xbf16, #tpu.memory_space<vmem>>, vector<128x128xbf16>
    %cst_49 = arith.constant dense<0.000000e+00> : vector<8x128xf32>
    %250 = tpu.matmul %248, %249, %cst_49 {dimension_numbers = #tpu.dot_dimension_numbers<[1], [0], [0], [1], [0, 0, 1, 1], [], []>} : vector<8x128xbf16>, vector<128x128xbf16>, vector<8x128xf32> -> vector<8x128xf32>
    %c0_50 = arith.constant 0 : index
    %c768 = arith.constant 768 : index
    %251 = vector.load %arg3[%c0_50, %c768] : memref<1x1536xf32, #tpu.memory_space<vmem>>, vector<1x128xf32>
    %252 = vector.broadcast %251 : vector<1x128xf32> to vector<8x128xf32>
    %253 = arith.addf %250, %252 : vector<8x128xf32>
    %cst_51 = arith.constant 0.000000e+00 : f32
    %254 = vector.broadcast %cst_51 : f32 to vector<8x128xf32>
    %255 = arith.maximumf %253, %254 : vector<8x128xf32>
    %256 = arith.truncf %255 : vector<8x128xf32> to vector<8x128xbf16>
    %c0_52 = arith.constant 0 : index
    %c1408 = arith.constant 1408 : index
    %257 = vector.load %arg2[%c0_52, %c1408] : memref<128x2560xbf16, #tpu.memory_space<vmem>>, vector<128x512xbf16>
    %cst_53 = arith.constant dense<0.000000e+00> : vector<8x512xf32>
    %258 = tpu.matmul %256, %257, %cst_53 {dimension_numbers = #tpu.dot_dimension_numbers<[1], [0], [0], [1], [0, 0, 1, 1], [], []>} : vector<8x128xbf16>, vector<128x512xbf16>, vector<8x512xf32> -> vector<8x512xf32>
    %c0_54 = arith.constant 0 : index
    %c896 = arith.constant 896 : index
    %259 = vector.load %arg3[%c0_54, %c896] : memref<1x1536xf32, #tpu.memory_space<vmem>>, vector<1x512xf32>
    %260 = vector.broadcast %259 : vector<1x512xf32> to vector<8x512xf32>
    %261 = arith.addf %258, %260 : vector<8x512xf32>
    %c0_55 = arith.constant 0 : index
    %c1920 = arith.constant 1920 : index
    %262 = vector.load %arg2[%c0_55, %c1920] : memref<128x2560xbf16, #tpu.memory_space<vmem>>, vector<128x512xbf16>
    %cst_56 = arith.constant 0.000000e+00 : f32
    %263 = vector.broadcast %cst_56 : f32 to vector<8x128xf32>
    %cst_57 = arith.constant 0.000000e+00 : f32
    %264 = vector.broadcast %cst_57 : f32 to vector<8x128xf32>
    %265 = arith.truncf %263 : vector<8x128xf32> to vector<8x128xbf16>
    %cst_58 = arith.constant dense<0.000000e+00> : vector<8x512xf32>
    %266 = tpu.matmul %265, %262, %cst_58 {dimension_numbers = #tpu.dot_dimension_numbers<[1], [0], [0], [1], [0, 0, 1, 1], [], []>} : vector<8x128xbf16>, vector<128x512xbf16>, vector<8x512xf32> -> vector<8x512xf32>
    %267 = arith.addf %261, %266 : vector<8x512xf32>
    %268 = vector.extract_strided_slice %267 {offsets = [0, 0], sizes = [8, 128], strides = [1, 1]} : vector<8x512xf32> to vector<8x128xf32>
    %269 = arith.negf %268 : vector<8x128xf32>
    %270 = math.exp %269 : vector<8x128xf32>
    %cst_59 = arith.constant 1.000000e+00 : f32
    %271 = vector.broadcast %cst_59 : f32 to vector<8x128xf32>
    %272 = arith.addf %271, %270 : vector<8x128xf32>
    %273 = arith.divf %271, %272 : vector<8x128xf32>
    %274 = vector.extract_strided_slice %267 {offsets = [0, 128], sizes = [8, 128], strides = [1, 1]} : vector<8x512xf32> to vector<8x128xf32>
    %275 = arith.negf %274 : vector<8x128xf32>
    %276 = math.exp %275 : vector<8x128xf32>
    %cst_60 = arith.constant 1.000000e+00 : f32
    %277 = vector.broadcast %cst_60 : f32 to vector<8x128xf32>
    %278 = arith.addf %277, %276 : vector<8x128xf32>
    %279 = arith.divf %277, %278 : vector<8x128xf32>
    %280 = vector.extract_strided_slice %267 {offsets = [0, 256], sizes = [8, 128], strides = [1, 1]} : vector<8x512xf32> to vector<8x128xf32>
    %281 = math.tanh %280 : vector<8x128xf32>
    %282 = vector.extract_strided_slice %267 {offsets = [0, 384], sizes = [8, 128], strides = [1, 1]} : vector<8x512xf32> to vector<8x128xf32>
    %283 = arith.negf %282 : vector<8x128xf32>
    %284 = math.exp %283 : vector<8x128xf32>
    %cst_61 = arith.constant 1.000000e+00 : f32
    %285 = vector.broadcast %cst_61 : f32 to vector<8x128xf32>
    %286 = arith.addf %285, %284 : vector<8x128xf32>
    %287 = arith.divf %285, %286 : vector<8x128xf32>
    %288 = arith.mulf %279, %264 : vector<8x128xf32>
    %289 = arith.mulf %273, %281 : vector<8x128xf32>
    %290 = arith.addf %288, %289 : vector<8x128xf32>
    %291 = math.tanh %290 : vector<8x128xf32>
    %292 = arith.mulf %287, %291 : vector<8x128xf32>
    %293 = arith.truncf %292 : vector<8x128xf32> to vector<8x128xbf16>
    %cst_62 = arith.constant dense<0.000000e+00> : vector<8x512xf32>
    %294 = tpu.matmul %293, %262, %cst_62 {dimension_numbers = #tpu.dot_dimension_numbers<[1], [0], [0], [1], [0, 0, 1, 1], [], []>} : vector<8x128xbf16>, vector<128x512xbf16>, vector<8x512xf32> -> vector<8x512xf32>
    %295 = arith.addf %261, %294 : vector<8x512xf32>
    %296 = vector.extract_strided_slice %295 {offsets = [0, 0], sizes = [8, 128], strides = [1, 1]} : vector<8x512xf32> to vector<8x128xf32>
    %297 = arith.negf %296 : vector<8x128xf32>
    %298 = math.exp %297 : vector<8x128xf32>
    %cst_63 = arith.constant 1.000000e+00 : f32
    %299 = vector.broadcast %cst_63 : f32 to vector<8x128xf32>
    %300 = arith.addf %299, %298 : vector<8x128xf32>
    %301 = arith.divf %299, %300 : vector<8x128xf32>
    %302 = vector.extract_strided_slice %295 {offsets = [0, 128], sizes = [8, 128], strides = [1, 1]} : vector<8x512xf32> to vector<8x128xf32>
    %303 = arith.negf %302 : vector<8x128xf32>
    %304 = math.exp %303 : vector<8x128xf32>
    %cst_64 = arith.constant 1.000000e+00 : f32
    %305 = vector.broadcast %cst_64 : f32 to vector<8x128xf32>
    %306 = arith.addf %305, %304 : vector<8x128xf32>
    %307 = arith.divf %305, %306 : vector<8x128xf32>
    %308 = vector.extract_strided_slice %295 {offsets = [0, 256], sizes = [8, 128], strides = [1, 1]} : vector<8x512xf32> to vector<8x128xf32>
    %309 = math.tanh %308 : vector<8x128xf32>
    %310 = vector.extract_strided_slice %295 {offsets = [0, 384], sizes = [8, 128], strides = [1, 1]} : vector<8x512xf32> to vector<8x128xf32>
    %311 = arith.negf %310 : vector<8x128xf32>
    %312 = math.exp %311 : vector<8x128xf32>
    %cst_65 = arith.constant 1.000000e+00 : f32
    %313 = vector.broadcast %cst_65 : f32 to vector<8x128xf32>
    %314 = arith.addf %313, %312 : vector<8x128xf32>
    %315 = arith.divf %313, %314 : vector<8x128xf32>
    %316 = arith.mulf %307, %290 : vector<8x128xf32>
    %317 = arith.mulf %301, %309 : vector<8x128xf32>
    %318 = arith.addf %316, %317 : vector<8x128xf32>
    %319 = math.tanh %318 : vector<8x128xf32>
    %320 = arith.mulf %315, %319 : vector<8x128xf32>
    %321 = arith.truncf %320 : vector<8x128xf32> to vector<8x128xbf16>
    %cst_66 = arith.constant dense<0.000000e+00> : vector<8x512xf32>
    %322 = tpu.matmul %321, %262, %cst_66 {dimension_numbers = #tpu.dot_dimension_numbers<[1], [0], [0], [1], [0, 0, 1, 1], [], []>} : vector<8x128xbf16>, vector<128x512xbf16>, vector<8x512xf32> -> vector<8x512xf32>
    %323 = arith.addf %261, %322 : vector<8x512xf32>
    %324 = vector.extract_strided_slice %323 {offsets = [0, 0], sizes = [8, 128], strides = [1, 1]} : vector<8x512xf32> to vector<8x128xf32>
    %325 = arith.negf %324 : vector<8x128xf32>
    %326 = math.exp %325 : vector<8x128xf32>
    %cst_67 = arith.constant 1.000000e+00 : f32
    %327 = vector.broadcast %cst_67 : f32 to vector<8x128xf32>
    %328 = arith.addf %327, %326 : vector<8x128xf32>
    %329 = arith.divf %327, %328 : vector<8x128xf32>
    %330 = vector.extract_strided_slice %323 {offsets = [0, 128], sizes = [8, 128], strides = [1, 1]} : vector<8x512xf32> to vector<8x128xf32>
    %331 = arith.negf %330 : vector<8x128xf32>
    %332 = math.exp %331 : vector<8x128xf32>
    %cst_68 = arith.constant 1.000000e+00 : f32
    %333 = vector.broadcast %cst_68 : f32 to vector<8x128xf32>
    %334 = arith.addf %333, %332 : vector<8x128xf32>
    %335 = arith.divf %333, %334 : vector<8x128xf32>
    %336 = vector.extract_strided_slice %323 {offsets = [0, 256], sizes = [8, 128], strides = [1, 1]} : vector<8x512xf32> to vector<8x128xf32>
    %337 = math.tanh %336 : vector<8x128xf32>
    %338 = vector.extract_strided_slice %323 {offsets = [0, 384], sizes = [8, 128], strides = [1, 1]} : vector<8x512xf32> to vector<8x128xf32>
    %339 = arith.negf %338 : vector<8x128xf32>
    %340 = math.exp %339 : vector<8x128xf32>
    %cst_69 = arith.constant 1.000000e+00 : f32
    %341 = vector.broadcast %cst_69 : f32 to vector<8x128xf32>
    %342 = arith.addf %341, %340 : vector<8x128xf32>
    %343 = arith.divf %341, %342 : vector<8x128xf32>
    %344 = arith.mulf %335, %318 : vector<8x128xf32>
    %345 = arith.mulf %329, %337 : vector<8x128xf32>
    %346 = arith.addf %344, %345 : vector<8x128xf32>
    %347 = math.tanh %346 : vector<8x128xf32>
    %348 = arith.mulf %343, %347 : vector<8x128xf32>
    %349 = arith.truncf %348 : vector<8x128xf32> to vector<8x128xbf16>
    %cst_70 = arith.constant dense<0.000000e+00> : vector<8x512xf32>
    %350 = tpu.matmul %349, %262, %cst_70 {dimension_numbers = #tpu.dot_dimension_numbers<[1], [0], [0], [1], [0, 0, 1, 1], [], []>} : vector<8x128xbf16>, vector<128x512xbf16>, vector<8x512xf32> -> vector<8x512xf32>
    %351 = arith.addf %261, %350 : vector<8x512xf32>
    %352 = vector.extract_strided_slice %351 {offsets = [0, 0], sizes = [8, 128], strides = [1, 1]} : vector<8x512xf32> to vector<8x128xf32>
    %353 = arith.negf %352 : vector<8x128xf32>
    %354 = math.exp %353 : vector<8x128xf32>
    %cst_71 = arith.constant 1.000000e+00 : f32
    %355 = vector.broadcast %cst_71 : f32 to vector<8x128xf32>
    %356 = arith.addf %355, %354 : vector<8x128xf32>
    %357 = arith.divf %355, %356 : vector<8x128xf32>
    %358 = vector.extract_strided_slice %351 {offsets = [0, 128], sizes = [8, 128], strides = [1, 1]} : vector<8x512xf32> to vector<8x128xf32>
    %359 = arith.negf %358 : vector<8x128xf32>
    %360 = math.exp %359 : vector<8x128xf32>
    %cst_72 = arith.constant 1.000000e+00 : f32
    %361 = vector.broadcast %cst_72 : f32 to vector<8x128xf32>
    %362 = arith.addf %361, %360 : vector<8x128xf32>
    %363 = arith.divf %361, %362 : vector<8x128xf32>
    %364 = vector.extract_strided_slice %351 {offsets = [0, 256], sizes = [8, 128], strides = [1, 1]} : vector<8x512xf32> to vector<8x128xf32>
    %365 = math.tanh %364 : vector<8x128xf32>
    %366 = vector.extract_strided_slice %351 {offsets = [0, 384], sizes = [8, 128], strides = [1, 1]} : vector<8x512xf32> to vector<8x128xf32>
    %367 = arith.negf %366 : vector<8x128xf32>
    %368 = math.exp %367 : vector<8x128xf32>
    %cst_73 = arith.constant 1.000000e+00 : f32
    %369 = vector.broadcast %cst_73 : f32 to vector<8x128xf32>
    %370 = arith.addf %369, %368 : vector<8x128xf32>
    %371 = arith.divf %369, %370 : vector<8x128xf32>
    %372 = arith.mulf %363, %346 : vector<8x128xf32>
    %373 = arith.mulf %357, %365 : vector<8x128xf32>
    %374 = arith.addf %372, %373 : vector<8x128xf32>
    %375 = math.tanh %374 : vector<8x128xf32>
    %376 = arith.mulf %371, %375 : vector<8x128xf32>
    %377 = arith.truncf %376 : vector<8x128xf32> to vector<8x128xbf16>
    %cst_74 = arith.constant dense<0.000000e+00> : vector<8x512xf32>
    %378 = tpu.matmul %377, %262, %cst_74 {dimension_numbers = #tpu.dot_dimension_numbers<[1], [0], [0], [1], [0, 0, 1, 1], [], []>} : vector<8x128xbf16>, vector<128x512xbf16>, vector<8x512xf32> -> vector<8x512xf32>
    %379 = arith.addf %261, %378 : vector<8x512xf32>
    %380 = vector.extract_strided_slice %379 {offsets = [0, 0], sizes = [8, 128], strides = [1, 1]} : vector<8x512xf32> to vector<8x128xf32>
    %381 = arith.negf %380 : vector<8x128xf32>
    %382 = math.exp %381 : vector<8x128xf32>
    %cst_75 = arith.constant 1.000000e+00 : f32
    %383 = vector.broadcast %cst_75 : f32 to vector<8x128xf32>
    %384 = arith.addf %383, %382 : vector<8x128xf32>
    %385 = arith.divf %383, %384 : vector<8x128xf32>
    %386 = vector.extract_strided_slice %379 {offsets = [0, 128], sizes = [8, 128], strides = [1, 1]} : vector<8x512xf32> to vector<8x128xf32>
    %387 = arith.negf %386 : vector<8x128xf32>
    %388 = math.exp %387 : vector<8x128xf32>
    %cst_76 = arith.constant 1.000000e+00 : f32
    %389 = vector.broadcast %cst_76 : f32 to vector<8x128xf32>
    %390 = arith.addf %389, %388 : vector<8x128xf32>
    %391 = arith.divf %389, %390 : vector<8x128xf32>
    %392 = vector.extract_strided_slice %379 {offsets = [0, 256], sizes = [8, 128], strides = [1, 1]} : vector<8x512xf32> to vector<8x128xf32>
    %393 = math.tanh %392 : vector<8x128xf32>
    %394 = vector.extract_strided_slice %379 {offsets = [0, 384], sizes = [8, 128], strides = [1, 1]} : vector<8x512xf32> to vector<8x128xf32>
    %395 = arith.negf %394 : vector<8x128xf32>
    %396 = math.exp %395 : vector<8x128xf32>
    %cst_77 = arith.constant 1.000000e+00 : f32
    %397 = vector.broadcast %cst_77 : f32 to vector<8x128xf32>
    %398 = arith.addf %397, %396 : vector<8x128xf32>
    %399 = arith.divf %397, %398 : vector<8x128xf32>
    %400 = arith.mulf %391, %374 : vector<8x128xf32>
    %401 = arith.mulf %385, %393 : vector<8x128xf32>
    %402 = arith.addf %400, %401 : vector<8x128xf32>
    %403 = math.tanh %402 : vector<8x128xf32>
    %404 = arith.mulf %399, %403 : vector<8x128xf32>
    %405 = arith.truncf %404 : vector<8x128xf32> to vector<8x128xbf16>
    %cst_78 = arith.constant dense<0.000000e+00> : vector<8x512xf32>
    %406 = tpu.matmul %405, %262, %cst_78 {dimension_numbers = #tpu.dot_dimension_numbers<[1], [0], [0], [1], [0, 0, 1, 1], [], []>} : vector<8x128xbf16>, vector<128x512xbf16>, vector<8x512xf32> -> vector<8x512xf32>
    %407 = arith.addf %261, %406 : vector<8x512xf32>
    %408 = vector.extract_strided_slice %407 {offsets = [0, 0], sizes = [8, 128], strides = [1, 1]} : vector<8x512xf32> to vector<8x128xf32>
    %409 = arith.negf %408 : vector<8x128xf32>
    %410 = math.exp %409 : vector<8x128xf32>
    %cst_79 = arith.constant 1.000000e+00 : f32
    %411 = vector.broadcast %cst_79 : f32 to vector<8x128xf32>
    %412 = arith.addf %411, %410 : vector<8x128xf32>
    %413 = arith.divf %411, %412 : vector<8x128xf32>
    %414 = vector.extract_strided_slice %407 {offsets = [0, 128], sizes = [8, 128], strides = [1, 1]} : vector<8x512xf32> to vector<8x128xf32>
    %415 = arith.negf %414 : vector<8x128xf32>
    %416 = math.exp %415 : vector<8x128xf32>
    %cst_80 = arith.constant 1.000000e+00 : f32
    %417 = vector.broadcast %cst_80 : f32 to vector<8x128xf32>
    %418 = arith.addf %417, %416 : vector<8x128xf32>
    %419 = arith.divf %417, %418 : vector<8x128xf32>
    %420 = vector.extract_strided_slice %407 {offsets = [0, 256], sizes = [8, 128], strides = [1, 1]} : vector<8x512xf32> to vector<8x128xf32>
    %421 = math.tanh %420 : vector<8x128xf32>
    %422 = vector.extract_strided_slice %407 {offsets = [0, 384], sizes = [8, 128], strides = [1, 1]} : vector<8x512xf32> to vector<8x128xf32>
    %423 = arith.negf %422 : vector<8x128xf32>
    %424 = math.exp %423 : vector<8x128xf32>
    %cst_81 = arith.constant 1.000000e+00 : f32
    %425 = vector.broadcast %cst_81 : f32 to vector<8x128xf32>
    %426 = arith.addf %425, %424 : vector<8x128xf32>
    %427 = arith.divf %425, %426 : vector<8x128xf32>
    %428 = arith.mulf %419, %402 : vector<8x128xf32>
    %429 = arith.mulf %413, %421 : vector<8x128xf32>
    %430 = arith.addf %428, %429 : vector<8x128xf32>
    %431 = math.tanh %430 : vector<8x128xf32>
    %432 = arith.mulf %427, %431 : vector<8x128xf32>
    %433 = arith.truncf %432 : vector<8x128xf32> to vector<8x128xbf16>
    %cst_82 = arith.constant dense<0.000000e+00> : vector<8x512xf32>
    %434 = tpu.matmul %433, %262, %cst_82 {dimension_numbers = #tpu.dot_dimension_numbers<[1], [0], [0], [1], [0, 0, 1, 1], [], []>} : vector<8x128xbf16>, vector<128x512xbf16>, vector<8x512xf32> -> vector<8x512xf32>
    %435 = arith.addf %261, %434 : vector<8x512xf32>
    %436 = vector.extract_strided_slice %435 {offsets = [0, 0], sizes = [8, 128], strides = [1, 1]} : vector<8x512xf32> to vector<8x128xf32>
    %437 = arith.negf %436 : vector<8x128xf32>
    %438 = math.exp %437 : vector<8x128xf32>
    %cst_83 = arith.constant 1.000000e+00 : f32
    %439 = vector.broadcast %cst_83 : f32 to vector<8x128xf32>
    %440 = arith.addf %439, %438 : vector<8x128xf32>
    %441 = arith.divf %439, %440 : vector<8x128xf32>
    %442 = vector.extract_strided_slice %435 {offsets = [0, 128], sizes = [8, 128], strides = [1, 1]} : vector<8x512xf32> to vector<8x128xf32>
    %443 = arith.negf %442 : vector<8x128xf32>
    %444 = math.exp %443 : vector<8x128xf32>
    %cst_84 = arith.constant 1.000000e+00 : f32
    %445 = vector.broadcast %cst_84 : f32 to vector<8x128xf32>
    %446 = arith.addf %445, %444 : vector<8x128xf32>
    %447 = arith.divf %445, %446 : vector<8x128xf32>
    %448 = vector.extract_strided_slice %435 {offsets = [0, 256], sizes = [8, 128], strides = [1, 1]} : vector<8x512xf32> to vector<8x128xf32>
    %449 = math.tanh %448 : vector<8x128xf32>
    %450 = vector.extract_strided_slice %435 {offsets = [0, 384], sizes = [8, 128], strides = [1, 1]} : vector<8x512xf32> to vector<8x128xf32>
    %451 = arith.negf %450 : vector<8x128xf32>
    %452 = math.exp %451 : vector<8x128xf32>
    %cst_85 = arith.constant 1.000000e+00 : f32
    %453 = vector.broadcast %cst_85 : f32 to vector<8x128xf32>
    %454 = arith.addf %453, %452 : vector<8x128xf32>
    %455 = arith.divf %453, %454 : vector<8x128xf32>
    %456 = arith.mulf %447, %430 : vector<8x128xf32>
    %457 = arith.mulf %441, %449 : vector<8x128xf32>
    %458 = arith.addf %456, %457 : vector<8x128xf32>
    %459 = math.tanh %458 : vector<8x128xf32>
    %460 = arith.mulf %455, %459 : vector<8x128xf32>
    %461 = arith.truncf %460 : vector<8x128xf32> to vector<8x128xbf16>
    %cst_86 = arith.constant dense<0.000000e+00> : vector<8x512xf32>
    %462 = tpu.matmul %461, %262, %cst_86 {dimension_numbers = #tpu.dot_dimension_numbers<[1], [0], [0], [1], [0, 0, 1, 1], [], []>} : vector<8x128xbf16>, vector<128x512xbf16>, vector<8x512xf32> -> vector<8x512xf32>
    %463 = arith.addf %261, %462 : vector<8x512xf32>
    %464 = vector.extract_strided_slice %463 {offsets = [0, 0], sizes = [8, 128], strides = [1, 1]} : vector<8x512xf32> to vector<8x128xf32>
    %465 = arith.negf %464 : vector<8x128xf32>
    %466 = math.exp %465 : vector<8x128xf32>
    %cst_87 = arith.constant 1.000000e+00 : f32
    %467 = vector.broadcast %cst_87 : f32 to vector<8x128xf32>
    %468 = arith.addf %467, %466 : vector<8x128xf32>
    %469 = arith.divf %467, %468 : vector<8x128xf32>
    %470 = vector.extract_strided_slice %463 {offsets = [0, 128], sizes = [8, 128], strides = [1, 1]} : vector<8x512xf32> to vector<8x128xf32>
    %471 = arith.negf %470 : vector<8x128xf32>
    %472 = math.exp %471 : vector<8x128xf32>
    %cst_88 = arith.constant 1.000000e+00 : f32
    %473 = vector.broadcast %cst_88 : f32 to vector<8x128xf32>
    %474 = arith.addf %473, %472 : vector<8x128xf32>
    %475 = arith.divf %473, %474 : vector<8x128xf32>
    %476 = vector.extract_strided_slice %463 {offsets = [0, 256], sizes = [8, 128], strides = [1, 1]} : vector<8x512xf32> to vector<8x128xf32>
    %477 = math.tanh %476 : vector<8x128xf32>
    %478 = vector.extract_strided_slice %463 {offsets = [0, 384], sizes = [8, 128], strides = [1, 1]} : vector<8x512xf32> to vector<8x128xf32>
    %479 = arith.negf %478 : vector<8x128xf32>
    %480 = math.exp %479 : vector<8x128xf32>
    %cst_89 = arith.constant 1.000000e+00 : f32
    %481 = vector.broadcast %cst_89 : f32 to vector<8x128xf32>
    %482 = arith.addf %481, %480 : vector<8x128xf32>
    %483 = arith.divf %481, %482 : vector<8x128xf32>
    %484 = arith.mulf %475, %458 : vector<8x128xf32>
    %485 = arith.mulf %469, %477 : vector<8x128xf32>
    %486 = arith.addf %484, %485 : vector<8x128xf32>
    %487 = math.tanh %486 : vector<8x128xf32>
    %488 = arith.mulf %483, %487 : vector<8x128xf32>
    %489 = tpu.concatenate %292, %320, %348, %376, %404, %432, %460, %488 in 0 : vector<8x128xf32>, vector<8x128xf32>, vector<8x128xf32>, vector<8x128xf32>, vector<8x128xf32>, vector<8x128xf32>, vector<8x128xf32>, vector<8x128xf32> -> vector<64x128xf32>
    %490 = arith.truncf %489 : vector<64x128xf32> to vector<64x128xbf16>
    %c0_90 = arith.constant 0 : index
    %c2432 = arith.constant 2432 : index
    %491 = vector.load %arg2[%c0_90, %c2432] : memref<128x2560xbf16, #tpu.memory_space<vmem>>, vector<128x128xbf16>
    %cst_91 = arith.constant dense<0.000000e+00> : vector<64x128xf32>
    %492 = tpu.matmul %490, %491, %cst_91 {dimension_numbers = #tpu.dot_dimension_numbers<[1], [0], [0], [1], [0, 0, 1, 1], [], []>} : vector<64x128xbf16>, vector<128x128xbf16>, vector<64x128xf32> -> vector<64x128xf32>
    %c0_92 = arith.constant 0 : index
    %c1408_93 = arith.constant 1408 : index
    %493 = vector.load %arg3[%c0_92, %c1408_93] : memref<1x1536xf32, #tpu.memory_space<vmem>>, vector<1x128xf32>
    %494 = vector.broadcast %493 : vector<1x128xf32> to vector<64x128xf32>
    %495 = arith.addf %492, %494 : vector<64x128xf32>
    %c0_94 = arith.constant 0 : index
    %c0_95 = arith.constant 0 : index
    %496 = vector.load %arg4[%c0_94, %c0_95] : memref<64x128xf32, #tpu.memory_space<vmem>>, vector<64x128xf32>
    tpu.vector_store %arg4[%c0_94, %c0_95], %495 {strides = array<i32>} : memref<64x128xf32, #tpu.memory_space<vmem>>, vector<64x128xf32>,
    return
  }
}

</mosaic_0001>

<llo_original>
// kernel: vae_forward.1
$region0: #{vae_forward.1}
  #allocation0 [shape = 'u32[]', space=smem, size = 0x4, offset = 0x4, fixed_abs, tag = 'smem constant byte address 0x4 - core index']
  #allocation1 [shape = 'u32[144,128]{1,0:T(1,128)}', space=vmem, size = 0x12000, scoped, tag = 'internal scratch']
  %s0 = inlined_call_operand.vmem [shape: bf16[64,128], index: 0, kind: input, shape index: {}]
  %s1 = inlined_call_operand.vmem [shape: f32[8,128], index: 1, kind: input, shape index: {}]
  %s2 = inlined_call_operand.vmem [shape: bf16[128,2560], index: 2, kind: input, shape index: {}]
  %s3 = inlined_call_operand.vmem [shape: f32[1,1536], index: 3, kind: input, shape index: {}]
  %s4 = inlined_call_operand.vmem [shape: f32[64,128], index: 4, kind: output, shape index: {0}]
  %s5 = inlined_call_operand.vmem [shape: f32[8,256], index: 5, kind: output, shape index: {1}]
  %6 = xla_tuple %s4, %s5
  %s7 = sld [smem:[#allocation0]]
  $region34: #{vae_forward.1} parent=0
    _
  %s9 = ssub.s32 1, %s7
  %s10 = scalar_select 0, %s9, %s7
  // Predicated region
  $region2: #{vae_forward.1} parent=0 // pred_check
    _
  $region3: #{vae_forward.1} parent=0 // pred_check_branch
    %12 = sbr.rel (0) target = $region5
  $region4: #{vae_forward.1} parent=0 // pred_region
    _
  $region5: #{vae_forward.1} parent=0 // pred_fallthru
    _
  // Predicated region
  $region6: #{vae_forward.1} parent=0 // pred_check
    _
  $region7: #{vae_forward.1} parent=0 // pred_check_branch
    %14 = sbr.rel (0) target = $region9
  $region8: #{vae_forward.1} parent=0 // pred_region
    _
  $region9: #{vae_forward.1} parent=0 // pred_fallthru
    _
  // Predicated region
  $region10: #{vae_forward.1} parent=0 // pred_check
    _
  $region11: #{vae_forward.1} parent=0 // pred_check_branch
    %16 = sbr.rel (0) target = $region13
  $region12: #{vae_forward.1} parent=0 // pred_region
    _
  $region13: #{vae_forward.1} parent=0 // pred_fallthru
    _
  // Predicated region
  $region14: #{vae_forward.1} parent=0 // pred_check
    _
  $region15: #{vae_forward.1} parent=0 // pred_check_branch
    %18 = sbr.rel (0) target = $region17
  $region16: #{vae_forward.1} parent=0 // pred_region
    _
  $region17: #{vae_forward.1} parent=0 // pred_fallthru
    _
  %v20 = vld [vmem:[%s0] sm:$0xf]
  %v21 = vld [vmem:[%s0 + $0x4] sm:$0xf]
  %v22 = vld [vmem:[%s0 + $0x8] sm:$0xf]
  %v23 = vld [vmem:[%s0 + $0xc] sm:$0xf]
  %v24 = vld [vmem:[%s0 + $0x10] sm:$0xf]
  %v25 = vld [vmem:[%s0 + $0x14] sm:$0xf]
  %v26 = vld [vmem:[%s0 + $0x18] sm:$0xf]
  %v27 = vld [vmem:[%s0 + $0x1c] sm:$0xf]
  %v28 = vld [vmem:[%s2] sm:$0xff]
  %v29 = vld [vmem:[%s2 + $0x8] sm:$0xff]
  %v30 = vld [vmem:[%s2 + $0x50] sm:$0xff]
  %v31 = vld [vmem:[%s2 + $0x58] sm:$0xff]
  %v32 = vld [vmem:[%s2 + $0xa0] sm:$0xff]
  %v33 = vld [vmem:[%s2 + $0xa8] sm:$0xff]
  %v34 = vld [vmem:[%s2 + $0xf0] sm:$0xff]
  %v35 = vld [vmem:[%s2 + $0xf8] sm:$0xff]
  %v36 = vld [vmem:[%s2 + $0x140] sm:$0xff]
  %v37 = vld [vmem:[%s2 + $0x148] sm:$0xff]
  %v38 = vld [vmem:[%s2 + $0x190] sm:$0xff]
  %v39 = vld [vmem:[%s2 + $0x198] sm:$0xff]
  %v40 = vld [vmem:[%s2 + $0x1e0] sm:$0xff]
  %v41 = vld [vmem:[%s2 + $0x1e8] sm:$0xff]
  %v42 = vld [vmem:[%s2 + $0x230] sm:$0xff]
  %v43 = vld [vmem:[%s2 + $0x238] sm:$0xff]
  %v44 = vld [vmem:[%s2 + $0x280] sm:$0xff]
  %v45 = vld [vmem:[%s2 + $0x288] sm:$0xff]
  %v46 = vld [vmem:[%s2 + $0x2d0] sm:$0xff]
  %v47 = vld [vmem:[%s2 + $0x2d8] sm:$0xff]
  %v48 = vld [vmem:[%s2 + $0x320] sm:$0xff]
  %v49 = vld [vmem:[%s2 + $0x328] sm:$0xff]
  %v50 = vld [vmem:[%s2 + $0x370] sm:$0xff]
  %v51 = vld [vmem:[%s2 + $0x378] sm:$0xff]
  %v52 = vld [vmem:[%s2 + $0x3c0] sm:$0xff]
  %v53 = vld [vmem:[%s2 + $0x3c8] sm:$0xff]
  %v54 = vld [vmem:[%s2 + $0x410] sm:$0xff]
  %v55 = vld [vmem:[%s2 + $0x418] sm:$0xff]
  %v56 = vld [vmem:[%s2 + $0x460] sm:$0xff]
  %v57 = vld [vmem:[%s2 + $0x468] sm:$0xff]
  %v58 = vld [vmem:[%s2 + $0x4b0] sm:$0xff]
  %v59 = vld [vmem:[%s2 + $0x4b8] sm:$0xff]
  %v60 = vld [vmem:[%s3] sm:$0xf]
  %v62 = vlaneseq
  %v63 = vshrl.u32 %v62, 7
  %v64 = vsub.s32 0, %v63
  %v65 = vrot.slane %v60, %v64
  %v66 = vlaneseq
  %v67 = vshrl.u32 %v66, 7
  %v68 = vsub.s32 1, %v67
  %v69 = vrot.slane %v60, %v68
  %v70 = vlaneseq
  %v71 = vshrl.u32 %v70, 7
  %v72 = vsub.s32 2, %v71
  %v73 = vrot.slane %v60, %v72
  %v74 = vlaneseq
  %v75 = vshrl.u32 %v74, 7
  %v76 = vsub.s32 3, %v75
  %v77 = vrot.slane %v60, %v76
  %v90 = vunpack.c.l.b16 %v20
  %v91 = vunpack.c.l.b16 %v21
  %v92 = vunpack.c.l.b16 %v22
  %v93 = vunpack.c.l.b16 %v23
  %v94 = vunpack.c.l.b16 %v24
  %v95 = vunpack.c.l.b16 %v25
  %v96 = vunpack.c.l.b16 %v26
  %v97 = vunpack.c.l.b16 %v27
  %v98 = vpack.c.b16 %v91, %v90
  %v99 = vpack.c.b16 %v93, %v92
  %v100 = vpack.c.b16 %v95, %v94
  %v101 = vpack.c.b16 %v97, %v96
  %v138 = vunpack.c.l.b16 %v28
  %v139 = vunpack.c.h.b16 %v28
  %v140 = vunpack.c.l.b16 %v29
  %v141 = vunpack.c.h.b16 %v29
  %v142 = vunpack.c.l.b16 %v30
  %v143 = vunpack.c.h.b16 %v30
  %v144 = vunpack.c.l.b16 %v31
  %v145 = vunpack.c.h.b16 %v31
  %v146 = vunpack.c.l.b16 %v32
  %v147 = vunpack.c.h.b16 %v32
  %v148 = vunpack.c.l.b16 %v33
  %v149 = vunpack.c.h.b16 %v33
  %v150 = vunpack.c.l.b16 %v34
  %v151 = vunpack.c.h.b16 %v34
  %v152 = vunpack.c.l.b16 %v35
  %v153 = vunpack.c.h.b16 %v35
  %v154 = vunpack.c.l.b16 %v36
  %v155 = vunpack.c.h.b16 %v36
  %v156 = vunpack.c.l.b16 %v37
  %v157 = vunpack.c.h.b16 %v37
  %v158 = vunpack.c.l.b16 %v38
  %v159 = vunpack.c.h.b16 %v38
  %v160 = vunpack.c.l.b16 %v39
  %v161 = vunpack.c.h.b16 %v39
  %v162 = vunpack.c.l.b16 %v40
  %v163 = vunpack.c.h.b16 %v40
  %v164 = vunpack.c.l.b16 %v41
  %v165 = vunpack.c.h.b16 %v41
  %v166 = vunpack.c.l.b16 %v42
  %v167 = vunpack.c.h.b16 %v42
  %v168 = vunpack.c.l.b16 %v43
  %v169 = vunpack.c.h.b16 %v43
  %v170 = vunpack.c.l.b16 %v44
  %v171 = vunpack.c.h.b16 %v44
  %v172 = vunpack.c.l.b16 %v45
  %v173 = vunpack.c.h.b16 %v45
  %v174 = vunpack.c.l.b16 %v46
  %v175 = vunpack.c.h.b16 %v46
  %v176 = vunpack.c.l.b16 %v47
  %v177 = vunpack.c.h.b16 %v47
  %v178 = vunpack.c.l.b16 %v48
  %v179 = vunpack.c.h.b16 %v48
  %v180 = vunpack.c.l.b16 %v49
  %v181 = vunpack.c.h.b16 %v49
  %v182 = vunpack.c.l.b16 %v50
  %v183 = vunpack.c.h.b16 %v50
  %v184 = vunpack.c.l.b16 %v51
  %v185 = vunpack.c.h.b16 %v51
  %v186 = vunpack.c.l.b16 %v52
  %v187 = vunpack.c.h.b16 %v52
  %v188 = vunpack.c.l.b16 %v53
  %v189 = vunpack.c.h.b16 %v53
  %v190 = vunpack.c.l.b16 %v54
  %v191 = vunpack.c.h.b16 %v54
  %v192 = vunpack.c.l.b16 %v55
  %v193 = vunpack.c.h.b16 %v55
  %v194 = vunpack.c.l.b16 %v56
  %v195 = vunpack.c.h.b16 %v56
  %v196 = vunpack.c.l.b16 %v57
  %v197 = vunpack.c.h.b16 %v57
  %v198 = vunpack.c.l.b16 %v58
  %v199 = vunpack.c.h.b16 %v58
  %v200 = vunpack.c.l.b16 %v59
  %v201 = vunpack.c.h.b16 %v59
  %v202 = vpack.c.b16 %v142, %v138
  %v203 = vpack.c.b16 %v143, %v139
  %v204 = vpack.c.b16 %v144, %v140
  %v205 = vpack.c.b16 %v145, %v141
  %v206 = vpack.c.b16 %v150, %v146
  %v207 = vpack.c.b16 %v151, %v147
  %v208 = vpack.c.b16 %v152, %v148
  %v209 = vpack.c.b16 %v153, %v149
  %v210 = vpack.c.b16 %v158, %v154
  %v211 = vpack.c.b16 %v159, %v155
  %v212 = vpack.c.b16 %v160, %v156
  %v213 = vpack.c.b16 %v161, %v157
  %v214 = vpack.c.b16 %v166, %v162
  %v215 = vpack.c.b16 %v167, %v163
  %v216 = vpack.c.b16 %v168, %v164
  %v217 = vpack.c.b16 %v169, %v165
  %v218 = vpack.c.b16 %v174, %v170
  %v219 = vpack.c.b16 %v175, %v171
  %v220 = vpack.c.b16 %v176, %v172
  %v221 = vpack.c.b16 %v177, %v173
  %v222 = vpack.c.b16 %v182, %v178
  %v223 = vpack.c.b16 %v183, %v179
  %v224 = vpack.c.b16 %v184, %v180
  %v225 = vpack.c.b16 %v185, %v181
  %v226 = vpack.c.b16 %v190, %v186
  %v227 = vpack.c.b16 %v191, %v187
  %v228 = vpack.c.b16 %v192, %v188
  %v229 = vpack.c.b16 %v193, %v189
  %v230 = vpack.c.b16 %v198, %v194
  %v231 = vpack.c.b16 %v199, %v195
  %v232 = vpack.c.b16 %v200, %v196
  %v233 = vpack.c.b16 %v201, %v197
  %266 = vmatprep.subr.bf16.mxu0 %v231
  %267 = vmatpush1.bf16.msra.mxu0 %v230
  %268 = vmatprep.subr.bf16.mxu0 %v227
  %269 = vmatpush1.bf16.msra.mxu0 %v226
  %270 = vmatprep.subr.bf16.mxu0 %v223
  %271 = vmatpush1.bf16.msra.mxu0 %v222
  %272 = vmatprep.subr.bf16.mxu0 %v219
  %273 = vmatpush1.bf16.msra.mxu0 %v218
  %274 = vmatprep.subr.bf16.mxu0 %v215
  %275 = vmatpush1.bf16.msra.mxu0 %v214
  %276 = vmatprep.subr.bf16.mxu0 %v211
  %277 = vmatpush1.bf16.msra.mxu0 %v210
  %278 = vmatprep.subr.bf16.mxu0 %v207
  %279 = vmatpush1.bf16.msra.mxu0 %v206
  %280 = vmatprep.subr.bf16.mxu0 %v203
  %281 = vmatpush1.bf16.msra.mxu0 %v202
  %282 = vmatprep.subr.bf16.mxu0 0
  %283 = vmatpush2.bf16.msra.mxu0 0
  %284 = vmatprep.subr.bf16.mxu0 0
  %285 = vmatpush2.bf16.msra.mxu0 0
  %286 = vmatprep.subr.bf16.mxu0 0
  %287 = vmatpush2.bf16.msra.mxu0 0
  %288 = vmatprep.subr.bf16.mxu0 0
  %289 = vmatpush2.bf16.msra.mxu0 0
  %290 = vmatprep.subr.bf16.mxu0 0
  %291 = vmatpush2.bf16.msra.mxu0 0
  %292 = vmatprep.subr.bf16.mxu0 0
  %293 = vmatpush2.bf16.msra.mxu0 0
  %294 = vmatprep.subr.bf16.mxu0 0
  %295 = vmatpush2.bf16.msra.mxu0 0
  %296 = vmatprep.subr.bf16.mxu0 0
  %297 = vmatpush2.bf16.msra.mxu0 0
  %298 = vmatprep.mubr.bf16.mxu0 0
  %299 = vmatmul.mubr.bf16.gmra.mxu0 %v98
  %v300 = vpop.f32.mrf.mxu0
  %v301 = vadd.f32 %v65, %v300
  %v302 = vpop.f32.mrf.mxu0
  %v303 = vadd.f32 %v69, %v302
  %v304 = vpop.f32.mrf.mxu0
  %v305 = vadd.f32 %v65, %v304
  %v306 = vpop.f32.mrf.mxu0
  %v307 = vadd.f32 %v69, %v306
  %308 = vmatprep.mubr.bf16.mxu0 0
  %309 = vmatmul.mubr.bf16.gmra.mxu0 %v99
  %v310 = vpop.f32.mrf.mxu0
  %v311 = vadd.f32 %v65, %v310
  %v312 = vpop.f32.mrf.mxu0
  %v313 = vadd.f32 %v69, %v312
  %v314 = vpop.f32.mrf.mxu0
  %v315 = vadd.f32 %v65, %v314
  %v316 = vpop.f32.mrf.mxu0
  %v317 = vadd.f32 %v69, %v316
  %318 = vmatprep.mubr.bf16.mxu0 0
  %319 = vmatmul.mubr.bf16.gmra.mxu0 %v100
  %v320 = vpop.f32.mrf.mxu0
  %v321 = vadd.f32 %v65, %v320
  %v322 = vpop.f32.mrf.mxu0
  %v323 = vadd.f32 %v69, %v322
  %v324 = vpop.f32.mrf.mxu0
  %v325 = vadd.f32 %v65, %v324
  %v326 = vpop.f32.mrf.mxu0
  %v327 = vadd.f32 %v69, %v326
  %328 = vmatprep.mubr.bf16.mxu0 0
  %329 = vmatmul.mubr.bf16.gmra.mxu0 %v101
  %v330 = vpop.f32.mrf.mxu0
  %v331 = vadd.f32 %v65, %v330
  %v332 = vpop.f32.mrf.mxu0
  %v333 = vadd.f32 %v69, %v332
  %v334 = vpop.f32.mrf.mxu0
  %v335 = vadd.f32 %v65, %v334
  %v336 = vpop.f32.mrf.mxu0
  %v337 = vadd.f32 %v69, %v336
  %338 = vdwg.mxu0
  %339 = vmatprep.subr.bf16.mxu0 %v233
  %340 = vmatpush1.bf16.msra.mxu0 %v232
  %341 = vmatprep.subr.bf16.mxu0 %v229
  %342 = vmatpush1.bf16.msra.mxu0 %v228
  %343 = vmatprep.subr.bf16.mxu0 %v225
  %344 = vmatpush1.bf16.msra.mxu0 %v224
  %345 = vmatprep.subr.bf16.mxu0 %v221
  %346 = vmatpush1.bf16.msra.mxu0 %v220
  %347 = vmatprep.subr.bf16.mxu0 %v217
  %348 = vmatpush1.bf16.msra.mxu0 %v216
  %349 = vmatprep.subr.bf16.mxu0 %v213
  %350 = vmatpush1.bf16.msra.mxu0 %v212
  %351 = vmatprep.subr.bf16.mxu0 %v209
  %352 = vmatpush1.bf16.msra.mxu0 %v208
  %353 = vmatprep.subr.bf16.mxu0 %v205
  %354 = vmatpush1.bf16.msra.mxu0 %v204
  %355 = vmatprep.subr.bf16.mxu0 0
  %356 = vmatpush2.bf16.msra.mxu0 0
  %357 = vmatprep.subr.bf16.mxu0 0
  %358 = vmatpush2.bf16.msra.mxu0 0
  %359 = vmatprep.subr.bf16.mxu0 0
  %360 = vmatpush2.bf16.msra.mxu0 0
  %361 = vmatprep.subr.bf16.mxu0 0
  %362 = vmatpush2.bf16.msra.mxu0 0
  %363 = vmatprep.subr.bf16.mxu0 0
  %364 = vmatpush2.bf16.msra.mxu0 0
  %365 = vmatprep.subr.bf16.mxu0 0
  %366 = vmatpush2.bf16.msra.mxu0 0
  %367 = vmatprep.subr.bf16.mxu0 0
  %368 = vmatpush2.bf16.msra.mxu0 0
  %369 = vmatprep.subr.bf16.mxu0 0
  %370 = vmatpush2.bf16.msra.mxu0 0
  %371 = vmatprep.mubr.bf16.mxu0 0
  %372 = vmatmul.mubr.bf16.gmra.mxu0 %v98
  %v373 = vpop.f32.mrf.mxu0
  %v374 = vadd.f32 %v73, %v373
  %v375 = vpop.f32.mrf.mxu0
  %v376 = vadd.f32 %v77, %v375
  %v377 = vpop.f32.mrf.mxu0
  %v378 = vadd.f32 %v73, %v377
  %v379 = vpop.f32.mrf.mxu0
  %v380 = vadd.f32 %v77, %v379
  %381 = vmatprep.mubr.bf16.mxu0 0
  %382 = vmatmul.mubr.bf16.gmra.mxu0 %v99
  %v383 = vpop.f32.mrf.mxu0
  %v384 = vadd.f32 %v73, %v383
  %v385 = vpop.f32.mrf.mxu0
  %v386 = vadd.f32 %v77, %v385
  %v387 = vpop.f32.mrf.mxu0
  %v388 = vadd.f32 %v73, %v387
  %v389 = vpop.f32.mrf.mxu0
  %v390 = vadd.f32 %v77, %v389
  %391 = vmatprep.mubr.bf16.mxu0 0
  %392 = vmatmul.mubr.bf16.gmra.mxu0 %v100
  %v393 = vpop.f32.mrf.mxu0
  %v394 = vadd.f32 %v73, %v393
  %v395 = vpop.f32.mrf.mxu0
  %v396 = vadd.f32 %v77, %v395
  %v397 = vpop.f32.mrf.mxu0
  %v398 = vadd.f32 %v73, %v397
  %v399 = vpop.f32.mrf.mxu0
  %v400 = vadd.f32 %v77, %v399
  %401 = vmatprep.mubr.bf16.mxu0 0
  %402 = vmatmul.mubr.bf16.gmra.mxu0 %v101
  %v403 = vpop.f32.mrf.mxu0
  %v404 = vadd.f32 %v73, %v403
  %v405 = vpop.f32.mrf.mxu0
  %v406 = vadd.f32 %v77, %v405
  %v407 = vpop.f32.mrf.mxu0
  %v408 = vadd.f32 %v73, %v407
  %v409 = vpop.f32.mrf.mxu0
  %410 = vdwg.mxu0
  %v411 = vld [vmem:[%s2 + $0x10] sm:$0xff]
  %v412 = vld [vmem:[%s2 + $0x18] sm:$0xff]
  %v413 = vld [vmem:[%s2 + $0x60] sm:$0xff]
  %v414 = vld [vmem:[%s2 + $0x68] sm:$0xff]
  %v415 = vld [vmem:[%s2 + $0xb0] sm:$0xff]
  %v416 = vld [vmem:[%s2 + $0xb8] sm:$0xff]
  %v417 = vld [vmem:[%s2 + $0x100] sm:$0xff]
  %v418 = vld [vmem:[%s2 + $0x108] sm:$0xff]
  %v419 = vld [vmem:[%s2 + $0x150] sm:$0xff]
  %v420 = vld [vmem:[%s2 + $0x158] sm:$0xff]
  %v421 = vld [vmem:[%s2 + $0x1a0] sm:$0xff]
  %v422 = vld [vmem:[%s2 + $0x1a8] sm:$0xff]
  %v423 = vld [vmem:[%s2 + $0x1f0] sm:$0xff]
  %v424 = vld [vmem:[%s2 + $0x1f8] sm:$0xff]
  %v425 = vld [vmem:[%s2 + $0x240] sm:$0xff]
  %v426 = vld [vmem:[%s2 + $0x248] sm:$0xff]
  %v427 = vld [vmem:[%s2 + $0x290] sm:$0xff]
  %v428 = vld [vmem:[%s2 + $0x298] sm:$0xff]
  %v429 = vld [vmem:[%s2 + $0x2e0] sm:$0xff]
  %v430 = vld [vmem:[%s2 + $0x2e8] sm:$0xff]
  %v431 = vld [vmem:[%s2 + $0x330] sm:$0xff]
  %v432 = vld [vmem:[%s2 + $0x338] sm:$0xff]
  %v433 = vld [vmem:[%s2 + $0x380] sm:$0xff]
  %v434 = vld [vmem:[%s2 + $0x388] sm:$0xff]
  %v435 = vld [vmem:[%s2 + $0x3d0] sm:$0xff]
  %v436 = vld [vmem:[%s2 + $0x3d8] sm:$0xff]
  %v437 = vld [vmem:[%s2 + $0x420] sm:$0xff]
  %v438 = vld [vmem:[%s2 + $0x428] sm:$0xff]
  %v439 = vld [vmem:[%s2 + $0x470] sm:$0xff]
  %v440 = vld [vmem:[%s2 + $0x478] sm:$0xff]
  %v441 = vld [vmem:[%s2 + $0x4c0] sm:$0xff]
  %v442 = vld [vmem:[%s2 + $0x4c8] sm:$0xff]
  %v475 = vunpack.c.l.b16 %v411
  %v476 = vunpack.c.h.b16 %v411
  %v477 = vunpack.c.l.b16 %v412
  %v478 = vunpack.c.h.b16 %v412
  %v479 = vunpack.c.l.b16 %v413
  %v480 = vunpack.c.h.b16 %v413
  %v481 = vunpack.c.l.b16 %v414
  %v482 = vunpack.c.h.b16 %v414
  %v483 = vunpack.c.l.b16 %v415
  %v484 = vunpack.c.h.b16 %v415
  %v485 = vunpack.c.l.b16 %v416
  %v486 = vunpack.c.h.b16 %v416
  %v487 = vunpack.c.l.b16 %v417
  %v488 = vunpack.c.h.b16 %v417
  %v489 = vunpack.c.l.b16 %v418
  %v490 = vunpack.c.h.b16 %v418
  %v491 = vunpack.c.l.b16 %v419
  %v492 = vunpack.c.h.b16 %v419
  %v493 = vunpack.c.l.b16 %v420
  %v494 = vunpack.c.h.b16 %v420
  %v495 = vunpack.c.l.b16 %v421
  %v496 = vunpack.c.h.b16 %v421
  %v497 = vunpack.c.l.b16 %v422
  %v498 = vunpack.c.h.b16 %v422
  %v499 = vunpack.c.l.b16 %v423
  %v500 = vunpack.c.h.b16 %v423
  %v501 = vunpack.c.l.b16 %v424
  %v502 = vunpack.c.h.b16 %v424
  %v503 = vunpack.c.l.b16 %v425
  %v504 = vunpack.c.h.b16 %v425
  %v505 = vunpack.c.l.b16 %v426
  %v506 = vunpack.c.h.b16 %v426
  %v507 = vunpack.c.l.b16 %v427
  %v508 = vunpack.c.h.b16 %v427
  %v509 = vunpack.c.l.b16 %v428
  %v510 = vunpack.c.h.b16 %v428
  %v511 = vunpack.c.l.b16 %v429
  %v512 = vunpack.c.h.b16 %v429
  %v513 = vunpack.c.l.b16 %v430
  %v514 = vunpack.c.h.b16 %v430
  %v515 = vunpack.c.l.b16 %v431
  %v516 = vunpack.c.h.b16 %v431
  %v517 = vunpack.c.l.b16 %v432
  %v518 = vunpack.c.h.b16 %v432
  %v519 = vunpack.c.l.b16 %v433
  %v520 = vunpack.c.h.b16 %v433
  %v521 = vunpack.c.l.b16 %v434
  %v522 = vunpack.c.h.b16 %v434
  %v523 = vunpack.c.l.b16 %v435
  %v524 = vunpack.c.h.b16 %v435
  %v525 = vunpack.c.l.b16 %v436
  %v526 = vunpack.c.h.b16 %v436
  %v527 = vunpack.c.l.b16 %v437
  %v528 = vunpack.c.h.b16 %v437
  %v529 = vunpack.c.l.b16 %v438
  %v530 = vunpack.c.h.b16 %v438
  %v531 = vunpack.c.l.b16 %v439
  %v532 = vunpack.c.h.b16 %v439
  %v533 = vunpack.c.l.b16 %v440
  %v534 = vunpack.c.h.b16 %v440
  %v535 = vunpack.c.l.b16 %v441
  %v536 = vunpack.c.h.b16 %v441
  %v537 = vunpack.c.l.b16 %v442
  %v538 = vunpack.c.h.b16 %v442
  %v539 = vpack.c.b16 %v479, %v475
  %v540 = vpack.c.b16 %v480, %v476
  %v541 = vpack.c.b16 %v481, %v477
  %v542 = vpack.c.b16 %v482, %v478
  %v543 = vpack.c.b16 %v487, %v483
  %v544 = vpack.c.b16 %v488, %v484
  %v545 = vpack.c.b16 %v489, %v485
  %v546 = vpack.c.b16 %v490, %v486
  %v547 = vpack.c.b16 %v495, %v491
  %v548 = vpack.c.b16 %v496, %v492
  %v549 = vpack.c.b16 %v497, %v493
  %v550 = vpack.c.b16 %v498, %v494
  %v551 = vpack.c.b16 %v503, %v499
  %v552 = vpack.c.b16 %v504, %v500
  %v553 = vpack.c.b16 %v505, %v501
  %v554 = vpack.c.b16 %v506, %v502
  %v555 = vpack.c.b16 %v511, %v507
  %v556 = vpack.c.b16 %v512, %v508
  %v557 = vpack.c.b16 %v513, %v509
  %v558 = vpack.c.b16 %v514, %v510
  %v559 = vpack.c.b16 %v519, %v515
  %v560 = vpack.c.b16 %v520, %v516
  %v561 = vpack.c.b16 %v521, %v517
  %v562 = vpack.c.b16 %v522, %v518
  %v563 = vpack.c.b16 %v527, %v523
  %v564 = vpack.c.b16 %v528, %v524
  %v565 = vpack.c.b16 %v529, %v525
  %v566 = vpack.c.b16 %v530, %v526
  %v567 = vpack.c.b16 %v535, %v531
  %v568 = vpack.c.b16 %v536, %v532
  %v569 = vpack.c.b16 %v537, %v533
  %v570 = vpack.c.b16 %v538, %v534
  %603 = vmatprep.subr.bf16.mxu0 %v568
  %604 = vmatpush1.bf16.msra.mxu0 %v567
  %605 = vmatprep.subr.bf16.mxu0 %v564
  %606 = vmatpush1.bf16.msra.mxu0 %v563
  %607 = vmatprep.subr.bf16.mxu0 %v560
  %608 = vmatpush1.bf16.msra.mxu0 %v559
  %609 = vmatprep.subr.bf16.mxu0 %v556
  %610 = vmatpush1.bf16.msra.mxu0 %v555
  %611 = vmatprep.subr.bf16.mxu0 %v552
  %612 = vmatpush1.bf16.msra.mxu0 %v551
  %613 = vmatprep.subr.bf16.mxu0 %v548
  %614 = vmatpush1.bf16.msra.mxu0 %v547
  %615 = vmatprep.subr.bf16.mxu0 %v544
  %616 = vmatpush1.bf16.msra.mxu0 %v543
  %617 = vmatprep.subr.bf16.mxu0 %v540
  %618 = vmatpush1.bf16.msra.mxu0 %v539
  %619 = vmatprep.subr.bf16.mxu0 0
  %620 = vmatpush2.bf16.msra.mxu0 0
  %621 = vmatprep.subr.bf16.mxu0 0
  %622 = vmatpush2.bf16.msra.mxu0 0
  %623 = vmatprep.subr.bf16.mxu0 0
  %624 = vmatpush2.bf16.msra.mxu0 0
  %625 = vmatprep.subr.bf16.mxu0 0
  %626 = vmatpush2.bf16.msra.mxu0 0
  %627 = vmatprep.subr.bf16.mxu0 0
  %628 = vmatpush2.bf16.msra.mxu0 0
  %629 = vmatprep.subr.bf16.mxu0 0
  %630 = vmatpush2.bf16.msra.mxu0 0
  %631 = vmatprep.subr.bf16.mxu0 0
  %632 = vmatpush2.bf16.msra.mxu0 0
  %633 = vmatprep.subr.bf16.mxu0 0
  %634 = vmatpush2.bf16.msra.mxu0 0
  %635 = vmatprep.mubr.bf16.mxu0 0
  %636 = vmatmul.mubr.bf16.gmra.mxu0 0
  %v637 = vpop.f32.mrf.mxu0
  %v638 = vadd.f32 0.0, %v637
  %v639 = vpop.f32.mrf.mxu0
  %v640 = vadd.f32 0.0, %v639
  %v641 = vpop.f32.mrf.mxu0
  %v642 = vpop.f32.mrf.mxu0
  %643 = vdwg.mxu0
  %644 = vmatprep.subr.bf16.mxu0 %v570
  %645 = vmatpush1.bf16.msra.mxu0 %v569
  %646 = vmatprep.subr.bf16.mxu0 %v566
  %647 = vmatpush1.bf16.msra.mxu0 %v565
  %648 = vmatprep.subr.bf16.mxu0 %v562
  %649 = vmatpush1.bf16.msra.mxu0 %v561
  %650 = vmatprep.subr.bf16.mxu0 %v558
  %651 = vmatpush1.bf16.msra.mxu0 %v557
  %652 = vmatprep.subr.bf16.mxu0 %v554
  %653 = vmatpush1.bf16.msra.mxu0 %v553
  %654 = vmatprep.subr.bf16.mxu0 %v550
  %655 = vmatpush1.bf16.msra.mxu0 %v549
  %656 = vmatprep.subr.bf16.mxu0 %v546
  %657 = vmatpush1.bf16.msra.mxu0 %v545
  %658 = vmatprep.subr.bf16.mxu0 %v542
  %659 = vmatpush1.bf16.msra.mxu0 %v541
  %660 = vmatprep.subr.bf16.mxu0 0
  %661 = vmatpush2.bf16.msra.mxu0 0
  %662 = vmatprep.subr.bf16.mxu0 0
  %663 = vmatpush2.bf16.msra.mxu0 0
  %664 = vmatprep.subr.bf16.mxu0 0
  %665 = vmatpush2.bf16.msra.mxu0 0
  %666 = vmatprep.subr.bf16.mxu0 0
  %667 = vmatpush2.bf16.msra.mxu0 0
  %668 = vmatprep.subr.bf16.mxu0 0
  %669 = vmatpush2.bf16.msra.mxu0 0
  %670 = vmatprep.subr.bf16.mxu0 0
  %671 = vmatpush2.bf16.msra.mxu0 0
  %672 = vmatprep.subr.bf16.mxu0 0
  %673 = vmatpush2.bf16.msra.mxu0 0
  %674 = vmatprep.subr.bf16.mxu0 0
  %675 = vmatpush2.bf16.msra.mxu0 0
  %676 = vmatprep.mubr.bf16.mxu0 0
  %677 = vmatmul.mubr.bf16.gmra.mxu0 0
  %v678 = vpop.f32.mrf.mxu0
  %v679 = vadd.f32 0.0, %v678
  %v680 = vpop.f32.mrf.mxu0
  %v681 = vadd.f32 0.0, %v680
  %v682 = vpop.f32.mrf.mxu0
  %v683 = vpop.f32.mrf.mxu0
  %684 = vdwg.mxu0
  %v685 = vadd.f32 %v301, %v638
  %v686 = vadd.f32 %v303, %v640
  %v687 = vadd.f32 %v374, %v679
  %v688 = vadd.f32 %v376, %v681
  %v689 = vxor.u32 %v685, 2147483648
  %v690 = vmul.f32 %v689, 1.442695
  %v691 = vpow.pop %v690
  %v692 = vadd.f32 %v691, 1.0
  %v693 = vrcp.pop %v692
  %v694 = vmul.f32 1.0, %v693
  %v695 = vxor.u32 %v686, 2147483648
  %v696 = vmul.f32 %v695, 1.442695
  %v697 = vpow.pop %v696
  %v698 = vadd.f32 %v697, 1.0
  %v699 = vrcp.pop %v698
  %v700 = vmul.f32 1.0, %v699
  %v701 = vtanh.pop %v687
  %v702 = vxor.u32 %v688, 2147483648
  %v703 = vmul.f32 %v702, 1.442695
  %v704 = vpow.pop %v703
  %v705 = vadd.f32 %v704, 1.0
  %v706 = vrcp.pop %v705
  %v707 = vmul.f32 1.0, %v706
  %v708 = vmul.f32 %v700, 0.0
  %v709 = vmul.f32 %v694, %v701
  %v710 = vadd.f32 %v708, %v709
  %v711 = vtanh.pop %v710
  %v712 = vmul.f32 %v707, %v711
  %v713 = vpack.c.bf16 %v712, %v712
  %714 = vmatprep.subr.bf16.mxu0 %v568
  %715 = vmatpush1.bf16.msra.mxu0 %v567
  %716 = vmatprep.subr.bf16.mxu0 %v564
  %717 = vmatpush1.bf16.msra.mxu0 %v563
  %718 = vmatprep.subr.bf16.mxu0 %v560
  %719 = vmatpush1.bf16.msra.mxu0 %v559
  %720 = vmatprep.subr.bf16.mxu0 %v556
  %721 = vmatpush1.bf16.msra.mxu0 %v555
  %722 = vmatprep.subr.bf16.mxu0 %v552
  %723 = vmatpush1.bf16.msra.mxu0 %v551
  %724 = vmatprep.subr.bf16.mxu0 %v548
  %725 = vmatpush1.bf16.msra.mxu0 %v547
  %726 = vmatprep.subr.bf16.mxu0 %v544
  %727 = vmatpush1.bf16.msra.mxu0 %v543
  %728 = vmatprep.subr.bf16.mxu0 %v540
  %729 = vmatpush1.bf16.msra.mxu0 %v539
  %730 = vmatprep.subr.bf16.mxu0 0
  %731 = vmatpush2.bf16.msra.mxu0 0
  %732 = vmatprep.subr.bf16.mxu0 0
  %733 = vmatpush2.bf16.msra.mxu0 0
  %734 = vmatprep.subr.bf16.mxu0 0
  %735 = vmatpush2.bf16.msra.mxu0 0
  %736 = vmatprep.subr.bf16.mxu0 0
  %737 = vmatpush2.bf16.msra.mxu0 0
  %738 = vmatprep.subr.bf16.mxu0 0
  %739 = vmatpush2.bf16.msra.mxu0 0
  %740 = vmatprep.subr.bf16.mxu0 0
  %741 = vmatpush2.bf16.msra.mxu0 0
  %742 = vmatprep.subr.bf16.mxu0 0
  %743 = vmatpush2.bf16.msra.mxu0 0
  %744 = vmatprep.subr.bf16.mxu0 0
  %745 = vmatpush2.bf16.msra.mxu0 0
  %746 = vmatprep.mubr.bf16.mxu0 0
  %747 = vmatmul.mubr.bf16.gmra.mxu0 %v713
  %v748 = vpop.f32.mrf.mxu0
  %v749 = vadd.f32 0.0, %v748
  %v750 = vpop.f32.mrf.mxu0
  %v751 = vadd.f32 0.0, %v750
  %v752 = vpop.f32.mrf.mxu0
  %v753 = vpop.f32.mrf.mxu0
  %754 = vdwg.mxu0
  %755 = vmatprep.subr.bf16.mxu0 %v570
  %756 = vmatpush1.bf16.msra.mxu0 %v569
  %757 = vmatprep.subr.bf16.mxu0 %v566
  %758 = vmatpush1.bf16.msra.mxu0 %v565
  %759 = vmatprep.subr.bf16.mxu0 %v562
  %760 = vmatpush1.bf16.msra.mxu0 %v561
  %761 = vmatprep.subr.bf16.mxu0 %v558
  %762 = vmatpush1.bf16.msra.mxu0 %v557
  %763 = vmatprep.subr.bf16.mxu0 %v554
  %764 = vmatpush1.bf16.msra.mxu0 %v553
  %765 = vmatprep.subr.bf16.mxu0 %v550
  %766 = vmatpush1.bf16.msra.mxu0 %v549
  %767 = vmatprep.subr.bf16.mxu0 %v546
  %768 = vmatpush1.bf16.msra.mxu0 %v545
  %769 = vmatprep.subr.bf16.mxu0 %v542
  %770 = vmatpush1.bf16.msra.mxu0 %v541
  %771 = vmatprep.subr.bf16.mxu0 0
  %772 = vmatpush2.bf16.msra.mxu0 0
  %773 = vmatprep.subr.bf16.mxu0 0
  %774 = vmatpush2.bf16.msra.mxu0 0
  %775 = vmatprep.subr.bf16.mxu0 0
  %776 = vmatpush2.bf16.msra.mxu0 0
  %777 = vmatprep.subr.bf16.mxu0 0
  %778 = vmatpush2.bf16.msra.mxu0 0
  %779 = vmatprep.subr.bf16.mxu0 0
  %780 = vmatpush2.bf16.msra.mxu0 0
  %781 = vmatprep.subr.bf16.mxu0 0
  %782 = vmatpush2.bf16.msra.mxu0 0
  %783 = vmatprep.subr.bf16.mxu0 0
  %784 = vmatpush2.bf16.msra.mxu0 0
  %785 = vmatprep.subr.bf16.mxu0 0
  %786 = vmatpush2.bf16.msra.mxu0 0
  %787 = vmatprep.mubr.bf16.mxu0 0
  %788 = vmatmul.mubr.bf16.gmra.mxu0 %v713
  %v789 = vpop.f32.mrf.mxu0
  %v790 = vadd.f32 0.0, %v789
  %v791 = vpop.f32.mrf.mxu0
  %v792 = vadd.f32 0.0, %v791
  %v793 = vpop.f32.mrf.mxu0
  %v794 = vpop.f32.mrf.mxu0
  %795 = vdwg.mxu0
  %v796 = vadd.f32 %v305, %v749
  %v797 = vadd.f32 %v307, %v751
  %v798 = vadd.f32 %v378, %v790
  %v799 = vadd.f32 %v380, %v792
  %v800 = vxor.u32 %v796, 2147483648
  %v801 = vmul.f32 %v800, 1.442695
  %v802 = vpow.pop %v801
  %v803 = vadd.f32 %v802, 1.0
  %v804 = vrcp.pop %v803
  %v805 = vmul.f32 1.0, %v804
  %v806 = vxor.u32 %v797, 2147483648
  %v807 = vmul.f32 %v806, 1.442695
  %v808 = vpow.pop %v807
  %v809 = vadd.f32 %v808, 1.0
  %v810 = vrcp.pop %v809
  %v811 = vmul.f32 1.0, %v810
  %v812 = vtanh.pop %v798
  %v813 = vxor.u32 %v799, 2147483648
  %v814 = vmul.f32 %v813, 1.442695
  %v815 = vpow.pop %v814
  %v816 = vadd.f32 %v815, 1.0
  %v817 = vrcp.pop %v816
  %v818 = vmul.f32 1.0, %v817
  %v819 = vmul.f32 %v811, %v710
  %v820 = vmul.f32 %v805, %v812
  %v821 = vadd.f32 %v819, %v820
  %v822 = vtanh.pop %v821
  %v823 = vmul.f32 %v818, %v822
  %v824 = vpack.c.bf16 %v823, %v823
  %825 = vmatprep.subr.bf16.mxu0 %v568
  %826 = vmatpush1.bf16.msra.mxu0 %v567
  %827 = vmatprep.subr.bf16.mxu0 %v564
  %828 = vmatpush1.bf16.msra.mxu0 %v563
  %829 = vmatprep.subr.bf16.mxu0 %v560
  %830 = vmatpush1.bf16.msra.mxu0 %v559
  %831 = vmatprep.subr.bf16.mxu0 %v556
  %832 = vmatpush1.bf16.msra.mxu0 %v555
  %833 = vmatprep.subr.bf16.mxu0 %v552
  %834 = vmatpush1.bf16.msra.mxu0 %v551
  %835 = vmatprep.subr.bf16.mxu0 %v548
  %836 = vmatpush1.bf16.msra.mxu0 %v547
  %837 = vmatprep.subr.bf16.mxu0 %v544
  %838 = vmatpush1.bf16.msra.mxu0 %v543
  %839 = vmatprep.subr.bf16.mxu0 %v540
  %840 = vmatpush1.bf16.msra.mxu0 %v539
  %841 = vmatprep.subr.bf16.mxu0 0
  %842 = vmatpush2.bf16.msra.mxu0 0
  %843 = vmatprep.subr.bf16.mxu0 0
  %844 = vmatpush2.bf16.msra.mxu0 0
  %845 = vmatprep.subr.bf16.mxu0 0
  %846 = vmatpush2.bf16.msra.mxu0 0
  %847 = vmatprep.subr.bf16.mxu0 0
  %848 = vmatpush2.bf16.msra.mxu0 0
  %849 = vmatprep.subr.bf16.mxu0 0
  %850 = vmatpush2.bf16.msra.mxu0 0
  %851 = vmatprep.subr.bf16.mxu0 0
  %852 = vmatpush2.bf16.msra.mxu0 0
  %853 = vmatprep.subr.bf16.mxu0 0
  %854 = vmatpush2.bf16.msra.mxu0 0
  %855 = vmatprep.subr.bf16.mxu0 0
  %856 = vmatpush2.bf16.msra.mxu0 0
  %857 = vmatprep.mubr.bf16.mxu0 0
  %858 = vmatmul.mubr.bf16.gmra.mxu0 %v824
  %v859 = vpop.f32.mrf.mxu0
  %v860 = vadd.f32 0.0, %v859
  %v861 = vpop.f32.mrf.mxu0
  %v862 = vadd.f32 0.0, %v861
  %v863 = vpop.f32.mrf.mxu0
  %v864 = vpop.f32.mrf.mxu0
  %865 = vdwg.mxu0
  %866 = vmatprep.subr.bf16.mxu0 %v570
  %867 = vmatpush1.bf16.msra.mxu0 %v569
  %868 = vmatprep.subr.bf16.mxu0 %v566
  %869 = vmatpush1.bf16.msra.mxu0 %v565
  %870 = vmatprep.subr.bf16.mxu0 %v562
  %871 = vmatpush1.bf16.msra.mxu0 %v561
  %872 = vmatprep.subr.bf16.mxu0 %v558
  %873 = vmatpush1.bf16.msra.mxu0 %v557
  %874 = vmatprep.subr.bf16.mxu0 %v554
  %875 = vmatpush1.bf16.msra.mxu0 %v553
  %876 = vmatprep.subr.bf16.mxu0 %v550
  %877 = vmatpush1.bf16.msra.mxu0 %v549
  %878 = vmatprep.subr.bf16.mxu0 %v546
  %879 = vmatpush1.bf16.msra.mxu0 %v545
  %880 = vmatprep.subr.bf16.mxu0 %v542
  %881 = vmatpush1.bf16.msra.mxu0 %v541
  %882 = vmatprep.subr.bf16.mxu0 0
  %883 = vmatpush2.bf16.msra.mxu0 0
  %884 = vmatprep.subr.bf16.mxu0 0
  %885 = vmatpush2.bf16.msra.mxu0 0
  %886 = vmatprep.subr.bf16.mxu0 0
  %887 = vmatpush2.bf16.msra.mxu0 0
  %888 = vmatprep.subr.bf16.mxu0 0
  %889 = vmatpush2.bf16.msra.mxu0 0
  %890 = vmatprep.subr.bf16.mxu0 0
  %891 = vmatpush2.bf16.msra.mxu0 0
  %892 = vmatprep.subr.bf16.mxu0 0
  %893 = vmatpush2.bf16.msra.mxu0 0
  %894 = vmatprep.subr.bf16.mxu0 0
  %895 = vmatpush2.bf16.msra.mxu0 0
  %896 = vmatprep.subr.bf16.mxu0 0
  %897 = vmatpush2.bf16.msra.mxu0 0
  %898 = vmatprep.mubr.bf16.mxu0 0
  %899 = vmatmul.mubr.bf16.gmra.mxu0 %v824
  %v900 = vpop.f32.mrf.mxu0
  %v901 = vadd.f32 0.0, %v900
  %v902 = vpop.f32.mrf.mxu0
  %v903 = vadd.f32 0.0, %v902
  %v904 = vpop.f32.mrf.mxu0
  %v905 = vpop.f32.mrf.mxu0
  %906 = vdwg.mxu0
  %v907 = vadd.f32 %v311, %v860
  %v908 = vadd.f32 %v313, %v862
  %v909 = vadd.f32 %v384, %v901
  %v910 = vadd.f32 %v386, %v903
  %v911 = vxor.u32 %v907, 2147483648
  %v912 = vmul.f32 %v911, 1.442695
  %v913 = vpow.pop %v912
  %v914 = vadd.f32 %v913, 1.0
  %v915 = vrcp.pop %v914
  %v916 = vmul.f32 1.0, %v915
  %v917 = vxor.u32 %v908, 2147483648
  %v918 = vmul.f32 %v917, 1.442695
  %v919 = vpow.pop %v918
  %v920 = vadd.f32 %v919, 1.0
  %v921 = vrcp.pop %v920
  %v922 = vmul.f32 1.0, %v921
  %v923 = vtanh.pop %v909
  %v924 = vxor.u32 %v910, 2147483648
  %v925 = vmul.f32 %v924, 1.442695
  %v926 = vpow.pop %v925
  %v927 = vadd.f32 %v926, 1.0
  %v928 = vrcp.pop %v927
  %v929 = vmul.f32 1.0, %v928
  %v930 = vmul.f32 %v922, %v821
  %v931 = vmul.f32 %v916, %v923
  %v932 = vadd.f32 %v930, %v931
  %v933 = vtanh.pop %v932
  %v934 = vmul.f32 %v929, %v933
  %v935 = vpack.c.bf16 %v934, %v934
  %936 = vmatprep.subr.bf16.mxu0 %v568
  %937 = vmatpush1.bf16.msra.mxu0 %v567
  %938 = vmatprep.subr.bf16.mxu0 %v564
  %939 = vmatpush1.bf16.msra.mxu0 %v563
  %940 = vmatprep.subr.bf16.mxu0 %v560
  %941 = vmatpush1.bf16.msra.mxu0 %v559
  %942 = vmatprep.subr.bf16.mxu0 %v556
  %943 = vmatpush1.bf16.msra.mxu0 %v555
  %944 = vmatprep.subr.bf16.mxu0 %v552
  %945 = vmatpush1.bf16.msra.mxu0 %v551
  %946 = vmatprep.subr.bf16.mxu0 %v548
  %947 = vmatpush1.bf16.msra.mxu0 %v547
  %948 = vmatprep.subr.bf16.mxu0 %v544
  %949 = vmatpush1.bf16.msra.mxu0 %v543
  %950 = vmatprep.subr.bf16.mxu0 %v540
  %951 = vmatpush1.bf16.msra.mxu0 %v539
  %952 = vmatprep.subr.bf16.mxu0 0
  %953 = vmatpush2.bf16.msra.mxu0 0
  %954 = vmatprep.subr.bf16.mxu0 0
  %955 = vmatpush2.bf16.msra.mxu0 0
  %956 = vmatprep.subr.bf16.mxu0 0
  %957 = vmatpush2.bf16.msra.mxu0 0
  %958 = vmatprep.subr.bf16.mxu0 0
  %959 = vmatpush2.bf16.msra.mxu0 0
  %960 = vmatprep.subr.bf16.mxu0 0
  %961 = vmatpush2.bf16.msra.mxu0 0
  %962 = vmatprep.subr.bf16.mxu0 0
  %963 = vmatpush2.bf16.msra.mxu0 0
  %964 = vmatprep.subr.bf16.mxu0 0
  %965 = vmatpush2.bf16.msra.mxu0 0
  %966 = vmatprep.subr.bf16.mxu0 0
  %967 = vmatpush2.bf16.msra.mxu0 0
  %968 = vmatprep.mubr.bf16.mxu0 0
  %969 = vmatmul.mubr.bf16.gmra.mxu0 %v935
  %v970 = vpop.f32.mrf.mxu0
  %v971 = vadd.f32 0.0, %v970
  %v972 = vpop.f32.mrf.mxu0
  %v973 = vadd.f32 0.0, %v972
  %v974 = vpop.f32.mrf.mxu0
  %v975 = vpop.f32.mrf.mxu0
  %976 = vdwg.mxu0
  %977 = vmatprep.subr.bf16.mxu0 %v570
  %978 = vmatpush1.bf16.msra.mxu0 %v569
  %979 = vmatprep.subr.bf16.mxu0 %v566
  %980 = vmatpush1.bf16.msra.mxu0 %v565
  %981 = vmatprep.subr.bf16.mxu0 %v562
  %982 = vmatpush1.bf16.msra.mxu0 %v561
  %983 = vmatprep.subr.bf16.mxu0 %v558
  %984 = vmatpush1.bf16.msra.mxu0 %v557
  %985 = vmatprep.subr.bf16.mxu0 %v554
  %986 = vmatpush1.bf16.msra.mxu0 %v553
  %987 = vmatprep.subr.bf16.mxu0 %v550
  %988 = vmatpush1.bf16.msra.mxu0 %v549
  %989 = vmatprep.subr.bf16.mxu0 %v546
  %990 = vmatpush1.bf16.msra.mxu0 %v545
  %991 = vmatprep.subr.bf16.mxu0 %v542
  %992 = vmatpush1.bf16.msra.mxu0 %v541
  %993 = vmatprep.subr.bf16.mxu0 0
  %994 = vmatpush2.bf16.msra.mxu0 0
  %995 = vmatprep.subr.bf16.mxu0 0
  %996 = vmatpush2.bf16.msra.mxu0 0
  %997 = vmatprep.subr.bf16.mxu0 0
  %998 = vmatpush2.bf16.msra.mxu0 0
  %999 = vmatprep.subr.bf16.mxu0 0
  %1000 = vmatpush2.bf16.msra.mxu0 0
  %1001 = vmatprep.subr.bf16.mxu0 0
  %1002 = vmatpush2.bf16.msra.mxu0 0
  %1003 = vmatprep.subr.bf16.mxu0 0
  %1004 = vmatpush2.bf16.msra.mxu0 0
  %1005 = vmatprep.subr.bf16.mxu0 0
  %1006 = vmatpush2.bf16.msra.mxu0 0
  %1007 = vmatprep.subr.bf16.mxu0 0
  %1008 = vmatpush2.bf16.msra.mxu0 0
  %1009 = vmatprep.mubr.bf16.mxu0 0
  %1010 = vmatmul.mubr.bf16.gmra.mxu0 %v935
  %v1011 = vpop.f32.mrf.mxu0
  %v1012 = vadd.f32 0.0, %v1011
  %v1013 = vpop.f32.mrf.mxu0
  %v1014 = vadd.f32 0.0, %v1013
  %v1015 = vpop.f32.mrf.mxu0
  %v1016 = vpop.f32.mrf.mxu0
  %1017 = vdwg.mxu0
  %v1018 = vadd.f32 %v315, %v971
  %v1019 = vadd.f32 %v317, %v973
  %v1020 = vadd.f32 %v388, %v1012
  %v1021 = vadd.f32 %v390, %v1014
  %v1022 = vxor.u32 %v1018, 2147483648
  %v1023 = vmul.f32 %v1022, 1.442695
  %v1024 = vpow.pop %v1023
  %v1025 = vadd.f32 %v1024, 1.0
  %v1026 = vrcp.pop %v1025
  %v1027 = vmul.f32 1.0, %v1026
  %v1028 = vxor.u32 %v1019, 2147483648
  %v1029 = vmul.f32 %v1028, 1.442695
  %v1030 = vpow.pop %v1029
  %v1031 = vadd.f32 %v1030, 1.0
  %v1032 = vrcp.pop %v1031
  %v1033 = vmul.f32 1.0, %v1032
  %v1034 = vtanh.pop %v1020
  %v1035 = vxor.u32 %v1021, 2147483648
  %v1036 = vmul.f32 %v1035, 1.442695
  %v1037 = vpow.pop %v1036
  %v1038 = vadd.f32 %v1037, 1.0
  %v1039 = vrcp.pop %v1038
  %v1040 = vmul.f32 1.0, %v1039
  %v1041 = vmul.f32 %v1033, %v932
  %v1042 = vmul.f32 %v1027, %v1034
  %v1043 = vadd.f32 %v1041, %v1042
  %v1044 = vtanh.pop %v1043
  %v1045 = vmul.f32 %v1040, %v1044
  %v1046 = vpack.c.bf16 %v1045, %v1045
  %1047 = vmatprep.subr.bf16.mxu0 %v568
  %1048 = vmatpush1.bf16.msra.mxu0 %v567
  %1049 = vmatprep.subr.bf16.mxu0 %v564
  %1050 = vmatpush1.bf16.msra.mxu0 %v563
  %1051 = vmatprep.subr.bf16.mxu0 %v560
  %1052 = vmatpush1.bf16.msra.mxu0 %v559
  %1053 = vmatprep.subr.bf16.mxu0 %v556
  %1054 = vmatpush1.bf16.msra.mxu0 %v555
  %1055 = vmatprep.subr.bf16.mxu0 %v552
  %1056 = vmatpush1.bf16.msra.mxu0 %v551
  %1057 = vmatprep.subr.bf16.mxu0 %v548
  %1058 = vmatpush1.bf16.msra.mxu0 %v547
  %1059 = vmatprep.subr.bf16.mxu0 %v544
  %1060 = vmatpush1.bf16.msra.mxu0 %v543
  %1061 = vmatprep.subr.bf16.mxu0 %v540
  %1062 = vmatpush1.bf16.msra.mxu0 %v539
  %1063 = vmatprep.subr.bf16.mxu0 0
  %1064 = vmatpush2.bf16.msra.mxu0 0
  %1065 = vmatprep.subr.bf16.mxu0 0
  %1066 = vmatpush2.bf16.msra.mxu0 0
  %1067 = vmatprep.subr.bf16.mxu0 0
  %1068 = vmatpush2.bf16.msra.mxu0 0
  %1069 = vmatprep.subr.bf16.mxu0 0
  %1070 = vmatpush2.bf16.msra.mxu0 0
  %1071 = vmatprep.subr.bf16.mxu0 0
  %1072 = vmatpush2.bf16.msra.mxu0 0
  %1073 = vmatprep.subr.bf16.mxu0 0
  %1074 = vmatpush2.bf16.msra.mxu0 0
  %1075 = vmatprep.subr.bf16.mxu0 0
  %1076 = vmatpush2.bf16.msra.mxu0 0
  %1077 = vmatprep.subr.bf16.mxu0 0
  %1078 = vmatpush2.bf16.msra.mxu0 0
  %1079 = vmatprep.mubr.bf16.mxu0 0
  %1080 = vmatmul.mubr.bf16.gmra.mxu0 %v1046
  %v1081 = vpop.f32.mrf.mxu0
  %v1082 = vadd.f32 0.0, %v1081
  %v1083 = vpop.f32.mrf.mxu0
  %v1084 = vadd.f32 0.0, %v1083
  %v1085 = vpop.f32.mrf.mxu0
  %v1086 = vpop.f32.mrf.mxu0
  %1087 = vdwg.mxu0
  %1088 = vmatprep.subr.bf16.mxu0 %v570
  %1089 = vmatpush1.bf16.msra.mxu0 %v569
  %1090 = vmatprep.subr.bf16.mxu0 %v566
  %1091 = vmatpush1.bf16.msra.mxu0 %v565
  %1092 = vmatprep.subr.bf16.mxu0 %v562
  %1093 = vmatpush1.bf16.msra.mxu0 %v561
  %1094 = vmatprep.subr.bf16.mxu0 %v558
  %1095 = vmatpush1.bf16.msra.mxu0 %v557
  %1096 = vmatprep.subr.bf16.mxu0 %v554
  %1097 = vmatpush1.bf16.msra.mxu0 %v553
  %1098 = vmatprep.subr.bf16.mxu0 %v550
  %1099 = vmatpush1.bf16.msra.mxu0 %v549
  %1100 = vmatprep.subr.bf16.mxu0 %v546
  %1101 = vmatpush1.bf16.msra.mxu0 %v545
  %1102 = vmatprep.subr.bf16.mxu0 %v542
  %1103 = vmatpush1.bf16.msra.mxu0 %v541
  %1104 = vmatprep.subr.bf16.mxu0 0
  %1105 = vmatpush2.bf16.msra.mxu0 0
  %1106 = vmatprep.subr.bf16.mxu0 0
  %1107 = vmatpush2.bf16.msra.mxu0 0
  %1108 = vmatprep.subr.bf16.mxu0 0
  %1109 = vmatpush2.bf16.msra.mxu0 0
  %1110 = vmatprep.subr.bf16.mxu0 0
  %1111 = vmatpush2.bf16.msra.mxu0 0
  %1112 = vmatprep.subr.bf16.mxu0 0
  %1113 = vmatpush2.bf16.msra.mxu0 0
  %1114 = vmatprep.subr.bf16.mxu0 0
  %1115 = vmatpush2.bf16.msra.mxu0 0
  %1116 = vmatprep.subr.bf16.mxu0 0
  %1117 = vmatpush2.bf16.msra.mxu0 0
  %1118 = vmatprep.subr.bf16.mxu0 0
  %1119 = vmatpush2.bf16.msra.mxu0 0
  %1120 = vmatprep.mubr.bf16.mxu0 0
  %1121 = vmatmul.mubr.bf16.gmra.mxu0 %v1046
  %v1122 = vpop.f32.mrf.mxu0
  %v1123 = vadd.f32 0.0, %v1122
  %v1124 = vpop.f32.mrf.mxu0
  %v1125 = vadd.f32 0.0, %v1124
  %v1126 = vpop.f32.mrf.mxu0
  %v1127 = vpop.f32.mrf.mxu0
  %1128 = vdwg.mxu0
  %v1129 = vadd.f32 %v321, %v1082
  %v1130 = vadd.f32 %v323, %v1084
  %v1131 = vadd.f32 %v394, %v1123
  %v1132 = vadd.f32 %v396, %v1125
  %v1133 = vxor.u32 %v1129, 2147483648
  %v1134 = vmul.f32 %v1133, 1.442695
  %v1135 = vpow.pop %v1134
  %v1136 = vadd.f32 %v1135, 1.0
  %v1137 = vrcp.pop %v1136
  %v1138 = vmul.f32 1.0, %v1137
  %v1139 = vxor.u32 %v1130, 2147483648
  %v1140 = vmul.f32 %v1139, 1.442695
  %v1141 = vpow.pop %v1140
  %v1142 = vadd.f32 %v1141, 1.0
  %v1143 = vrcp.pop %v1142
  %v1144 = vmul.f32 1.0, %v1143
  %v1145 = vtanh.pop %v1131
  %v1146 = vxor.u32 %v1132, 2147483648
  %v1147 = vmul.f32 %v1146, 1.442695
  %v1148 = vpow.pop %v1147
  %v1149 = vadd.f32 %v1148, 1.0
  %v1150 = vrcp.pop %v1149
  %v1151 = vmul.f32 1.0, %v1150
  %v1152 = vmul.f32 %v1144, %v1043
  %v1153 = vmul.f32 %v1138, %v1145
  %v1154 = vadd.f32 %v1152, %v1153
  %v1155 = vtanh.pop %v1154
  %v1156 = vmul.f32 %v1151, %v1155
  %v1157 = vpack.c.bf16 %v1156, %v1156
  %1158 = vmatprep.subr.bf16.mxu0 %v568
  %1159 = vmatpush1.bf16.msra.mxu0 %v567
  %1160 = vmatprep.subr.bf16.mxu0 %v564
  %1161 = vmatpush1.bf16.msra.mxu0 %v563
  %1162 = vmatprep.subr.bf16.mxu0 %v560
  %1163 = vmatpush1.bf16.msra.mxu0 %v559
  %1164 = vmatprep.subr.bf16.mxu0 %v556
  %1165 = vmatpush1.bf16.msra.mxu0 %v555
  %1166 = vmatprep.subr.bf16.mxu0 %v552
  %1167 = vmatpush1.bf16.msra.mxu0 %v551
  %1168 = vmatprep.subr.bf16.mxu0 %v548
  %1169 = vmatpush1.bf16.msra.mxu0 %v547
  %1170 = vmatprep.subr.bf16.mxu0 %v544
  %1171 = vmatpush1.bf16.msra.mxu0 %v543
  %1172 = vmatprep.subr.bf16.mxu0 %v540
  %1173 = vmatpush1.bf16.msra.mxu0 %v539
  %1174 = vmatprep.subr.bf16.mxu0 0
  %1175 = vmatpush2.bf16.msra.mxu0 0
  %1176 = vmatprep.subr.bf16.mxu0 0
  %1177 = vmatpush2.bf16.msra.mxu0 0
  %1178 = vmatprep.subr.bf16.mxu0 0
  %1179 = vmatpush2.bf16.msra.mxu0 0
  %1180 = vmatprep.subr.bf16.mxu0 0
  %1181 = vmatpush2.bf16.msra.mxu0 0
  %1182 = vmatprep.subr.bf16.mxu0 0
  %1183 = vmatpush2.bf16.msra.mxu0 0
  %1184 = vmatprep.subr.bf16.mxu0 0
  %1185 = vmatpush2.bf16.msra.mxu0 0
  %1186 = vmatprep.subr.bf16.mxu0 0
  %1187 = vmatpush2.bf16.msra.mxu0 0
  %1188 = vmatprep.subr.bf16.mxu0 0
  %1189 = vmatpush2.bf16.msra.mxu0 0
  %1190 = vmatprep.mubr.bf16.mxu0 0
  %1191 = vmatmul.mubr.bf16.gmra.mxu0 %v1157
  %v1192 = vpop.f32.mrf.mxu0
  %v1193 = vadd.f32 0.0, %v1192
  %v1194 = vpop.f32.mrf.mxu0
  %v1195 = vadd.f32 0.0, %v1194
  %v1196 = vpop.f32.mrf.mxu0
  %v1197 = vpop.f32.mrf.mxu0
  %1198 = vdwg.mxu0
  %1199 = vmatprep.subr.bf16.mxu0 %v570
  %1200 = vmatpush1.bf16.msra.mxu0 %v569
  %1201 = vmatprep.subr.bf16.mxu0 %v566
  %1202 = vmatpush1.bf16.msra.mxu0 %v565
  %1203 = vmatprep.subr.bf16.mxu0 %v562
  %1204 = vmatpush1.bf16.msra.mxu0 %v561
  %1205 = vmatprep.subr.bf16.mxu0 %v558
  %1206 = vmatpush1.bf16.msra.mxu0 %v557
  %1207 = vmatprep.subr.bf16.mxu0 %v554
  %1208 = vmatpush1.bf16.msra.mxu0 %v553
  %1209 = vmatprep.subr.bf16.mxu0 %v550
  %1210 = vmatpush1.bf16.msra.mxu0 %v549
  %1211 = vmatprep.subr.bf16.mxu0 %v546
  %1212 = vmatpush1.bf16.msra.mxu0 %v545
  %1213 = vmatprep.subr.bf16.mxu0 %v542
  %1214 = vmatpush1.bf16.msra.mxu0 %v541
  %1215 = vmatprep.subr.bf16.mxu0 0
  %1216 = vmatpush2.bf16.msra.mxu0 0
  %1217 = vmatprep.subr.bf16.mxu0 0
  %1218 = vmatpush2.bf16.msra.mxu0 0
  %1219 = vmatprep.subr.bf16.mxu0 0
  %1220 = vmatpush2.bf16.msra.mxu0 0
  %1221 = vmatprep.subr.bf16.mxu0 0
  %1222 = vmatpush2.bf16.msra.mxu0 0
  %1223 = vmatprep.subr.bf16.mxu0 0
  %1224 = vmatpush2.bf16.msra.mxu0 0
  %1225 = vmatprep.subr.bf16.mxu0 0
  %1226 = vmatpush2.bf16.msra.mxu0 0
  %1227 = vmatprep.subr.bf16.mxu0 0
  %1228 = vmatpush2.bf16.msra.mxu0 0
  %1229 = vmatprep.subr.bf16.mxu0 0
  %1230 = vmatpush2.bf16.msra.mxu0 0
  %1231 = vmatprep.mubr.bf16.mxu0 0
  %1232 = vmatmul.mubr.bf16.gmra.mxu0 %v1157
  %v1233 = vpop.f32.mrf.mxu0
  %v1234 = vadd.f32 0.0, %v1233
  %v1235 = vpop.f32.mrf.mxu0
  %v1236 = vadd.f32 0.0, %v1235
  %v1237 = vpop.f32.mrf.mxu0
  %v1238 = vpop.f32.mrf.mxu0
  %1239 = vdwg.mxu0
  %v1240 = vadd.f32 %v325, %v1193
  %v1241 = vadd.f32 %v327, %v1195
  %v1242 = vadd.f32 %v398, %v1234
  %v1243 = vadd.f32 %v400, %v1236
  %v1244 = vxor.u32 %v1240, 2147483648
  %v1245 = vmul.f32 %v1244, 1.442695
  %v1246 = vpow.pop %v1245
  %v1247 = vadd.f32 %v1246, 1.0
  %v1248 = vrcp.pop %v1247
  %v1249 = vmul.f32 1.0, %v1248
  %v1250 = vxor.u32 %v1241, 2147483648
  %v1251 = vmul.f32 %v1250, 1.442695
  %v1252 = vpow.pop %v1251
  %v1253 = vadd.f32 %v1252, 1.0
  %v1254 = vrcp.pop %v1253
  %v1255 = vmul.f32 1.0, %v1254
  %v1256 = vtanh.pop %v1242
  %v1257 = vxor.u32 %v1243, 2147483648
  %v1258 = vmul.f32 %v1257, 1.442695
  %v1259 = vpow.pop %v1258
  %v1260 = vadd.f32 %v1259, 1.0
  %v1261 = vrcp.pop %v1260
  %v1262 = vmul.f32 1.0, %v1261
  %v1263 = vmul.f32 %v1255, %v1154
  %v1264 = vmul.f32 %v1249, %v1256
  %v1265 = vadd.f32 %v1263, %v1264
  %v1266 = vtanh.pop %v1265
  %v1267 = vmul.f32 %v1262, %v1266
  %v1268 = vpack.c.bf16 %v1267, %v1267
  %1269 = vmatprep.subr.bf16.mxu0 %v568
  %1270 = vmatpush1.bf16.msra.mxu0 %v567
  %1271 = vmatprep.subr.bf16.mxu0 %v564
  %1272 = vmatpush1.bf16.msra.mxu0 %v563
  %1273 = vmatprep.subr.bf16.mxu0 %v560
  %1274 = vmatpush1.bf16.msra.mxu0 %v559
  %1275 = vmatprep.subr.bf16.mxu0 %v556
  %1276 = vmatpush1.bf16.msra.mxu0 %v555
  %1277 = vmatprep.subr.bf16.mxu0 %v552
  %1278 = vmatpush1.bf16.msra.mxu0 %v551
  %1279 = vmatprep.subr.bf16.mxu0 %v548
  %1280 = vmatpush1.bf16.msra.mxu0 %v547
  %1281 = vmatprep.subr.bf16.mxu0 %v544
  %1282 = vmatpush1.bf16.msra.mxu0 %v543
  %1283 = vmatprep.subr.bf16.mxu0 %v540
  %1284 = vmatpush1.bf16.msra.mxu0 %v539
  %1285 = vmatprep.subr.bf16.mxu0 0
  %1286 = vmatpush2.bf16.msra.mxu0 0
  %1287 = vmatprep.subr.bf16.mxu0 0
  %1288 = vmatpush2.bf16.msra.mxu0 0
  %1289 = vmatprep.subr.bf16.mxu0 0
  %1290 = vmatpush2.bf16.msra.mxu0 0
  %1291 = vmatprep.subr.bf16.mxu0 0
  %1292 = vmatpush2.bf16.msra.mxu0 0
  %1293 = vmatprep.subr.bf16.mxu0 0
  %1294 = vmatpush2.bf16.msra.mxu0 0
  %1295 = vmatprep.subr.bf16.mxu0 0
  %1296 = vmatpush2.bf16.msra.mxu0 0
  %1297 = vmatprep.subr.bf16.mxu0 0
  %1298 = vmatpush2.bf16.msra.mxu0 0
  %1299 = vmatprep.subr.bf16.mxu0 0
  %1300 = vmatpush2.bf16.msra.mxu0 0
  %1301 = vmatprep.mubr.bf16.mxu0 0
  %1302 = vmatmul.mubr.bf16.gmra.mxu0 %v1268
  %v1303 = vpop.f32.mrf.mxu0
  %v1304 = vadd.f32 0.0, %v1303
  %v1305 = vpop.f32.mrf.mxu0
  %v1306 = vadd.f32 0.0, %v1305
  %v1307 = vpop.f32.mrf.mxu0
  %v1308 = vpop.f32.mrf.mxu0
  %1309 = vdwg.mxu0
  %1310 = vmatprep.subr.bf16.mxu0 %v570
  %1311 = vmatpush1.bf16.msra.mxu0 %v569
  %1312 = vmatprep.subr.bf16.mxu0 %v566
  %1313 = vmatpush1.bf16.msra.mxu0 %v565
  %1314 = vmatprep.subr.bf16.mxu0 %v562
  %1315 = vmatpush1.bf16.msra.mxu0 %v561
  %1316 = vmatprep.subr.bf16.mxu0 %v558
  %1317 = vmatpush1.bf16.msra.mxu0 %v557
  %1318 = vmatprep.subr.bf16.mxu0 %v554
  %1319 = vmatpush1.bf16.msra.mxu0 %v553
  %1320 = vmatprep.subr.bf16.mxu0 %v550
  %1321 = vmatpush1.bf16.msra.mxu0 %v549
  %1322 = vmatprep.subr.bf16.mxu0 %v546
  %1323 = vmatpush1.bf16.msra.mxu0 %v545
  %1324 = vmatprep.subr.bf16.mxu0 %v542
  %1325 = vmatpush1.bf16.msra.mxu0 %v541
  %1326 = vmatprep.subr.bf16.mxu0 0
  %1327 = vmatpush2.bf16.msra.mxu0 0
  %1328 = vmatprep.subr.bf16.mxu0 0
  %1329 = vmatpush2.bf16.msra.mxu0 0
  %1330 = vmatprep.subr.bf16.mxu0 0
  %1331 = vmatpush2.bf16.msra.mxu0 0
  %1332 = vmatprep.subr.bf16.mxu0 0
  %1333 = vmatpush2.bf16.msra.mxu0 0
  %1334 = vmatprep.subr.bf16.mxu0 0
  %1335 = vmatpush2.bf16.msra.mxu0 0
  %1336 = vmatprep.subr.bf16.mxu0 0
  %1337 = vmatpush2.bf16.msra.mxu0 0
  %1338 = vmatprep.subr.bf16.mxu0 0
  %1339 = vmatpush2.bf16.msra.mxu0 0
  %1340 = vmatprep.subr.bf16.mxu0 0
  %1341 = vmatpush2.bf16.msra.mxu0 0
  %1342 = vmatprep.mubr.bf16.mxu0 0
  %1343 = vmatmul.mubr.bf16.gmra.mxu0 %v1268
  %v1344 = vpop.f32.mrf.mxu0
  %v1345 = vadd.f32 0.0, %v1344
  %v1346 = vpop.f32.mrf.mxu0
  %v1347 = vadd.f32 0.0, %v1346
  %v1348 = vpop.f32.mrf.mxu0
  %v1349 = vpop.f32.mrf.mxu0
  %1350 = vdwg.mxu0
  %v1351 = vadd.f32 %v331, %v1304
  %v1352 = vadd.f32 %v333, %v1306
  %v1353 = vadd.f32 %v404, %v1345
  %v1354 = vadd.f32 %v406, %v1347
  %v1355 = vxor.u32 %v1351, 2147483648
  %v1356 = vmul.f32 %v1355, 1.442695
  %v1357 = vpow.pop %v1356
  %v1358 = vadd.f32 %v1357, 1.0
  %v1359 = vrcp.pop %v1358
  %v1360 = vmul.f32 1.0, %v1359
  %v1361 = vxor.u32 %v1352, 2147483648
  %v1362 = vmul.f32 %v1361, 1.442695
  %v1363 = vpow.pop %v1362
  %v1364 = vadd.f32 %v1363, 1.0
  %v1365 = vrcp.pop %v1364
  %v1366 = vmul.f32 1.0, %v1365
  %v1367 = vtanh.pop %v1353
  %v1368 = vxor.u32 %v1354, 2147483648
  %v1369 = vmul.f32 %v1368, 1.442695
  %v1370 = vpow.pop %v1369
  %v1371 = vadd.f32 %v1370, 1.0
  %v1372 = vrcp.pop %v1371
  %v1373 = vmul.f32 1.0, %v1372
  %v1374 = vmul.f32 %v1366, %v1265
  %v1375 = vmul.f32 %v1360, %v1367
  %v1376 = vadd.f32 %v1374, %v1375
  %v1377 = vtanh.pop %v1376
  %v1378 = vmul.f32 %v1373, %v1377
  %v1379 = vpack.c.bf16 %v1378, %v1378
  %1380 = vmatprep.subr.bf16.mxu0 %v568
  %1381 = vmatpush1.bf16.msra.mxu0 %v567
  %1382 = vmatprep.subr.bf16.mxu0 %v564
  %1383 = vmatpush1.bf16.msra.mxu0 %v563
  %1384 = vmatprep.subr.bf16.mxu0 %v560
  %1385 = vmatpush1.bf16.msra.mxu0 %v559
  %1386 = vmatprep.subr.bf16.mxu0 %v556
  %1387 = vmatpush1.bf16.msra.mxu0 %v555
  %1388 = vmatprep.subr.bf16.mxu0 %v552
  %1389 = vmatpush1.bf16.msra.mxu0 %v551
  %1390 = vmatprep.subr.bf16.mxu0 %v548
  %1391 = vmatpush1.bf16.msra.mxu0 %v547
  %1392 = vmatprep.subr.bf16.mxu0 %v544
  %1393 = vmatpush1.bf16.msra.mxu0 %v543
  %1394 = vmatprep.subr.bf16.mxu0 %v540
  %1395 = vmatpush1.bf16.msra.mxu0 %v539
  %1396 = vmatprep.subr.bf16.mxu0 0
  %1397 = vmatpush2.bf16.msra.mxu0 0
  %1398 = vmatprep.subr.bf16.mxu0 0
  %1399 = vmatpush2.bf16.msra.mxu0 0
  %1400 = vmatprep.subr.bf16.mxu0 0
  %1401 = vmatpush2.bf16.msra.mxu0 0
  %1402 = vmatprep.subr.bf16.mxu0 0
  %1403 = vmatpush2.bf16.msra.mxu0 0
  %1404 = vmatprep.subr.bf16.mxu0 0
  %1405 = vmatpush2.bf16.msra.mxu0 0
  %1406 = vmatprep.subr.bf16.mxu0 0
  %1407 = vmatpush2.bf16.msra.mxu0 0
  %1408 = vmatprep.subr.bf16.mxu0 0
  %1409 = vmatpush2.bf16.msra.mxu0 0
  %1410 = vmatprep.subr.bf16.mxu0 0
  %1411 = vmatpush2.bf16.msra.mxu0 0
  %1412 = vmatprep.mubr.bf16.mxu0 0
  %1413 = vmatmul.mubr.bf16.gmra.mxu0 %v1379
  %v1414 = vpop.f32.mrf.mxu0
  %v1415 = vadd.f32 0.0, %v1414
  %v1416 = vpop.f32.mrf.mxu0
  %v1417 = vadd.f32 0.0, %v1416
  %v1418 = vpop.f32.mrf.mxu0
  %v1419 = vpop.f32.mrf.mxu0
  %1420 = vdwg.mxu0
  %1421 = vmatprep.subr.bf16.mxu0 %v570
  %1422 = vmatpush1.bf16.msra.mxu0 %v569
  %1423 = vmatprep.subr.bf16.mxu0 %v566
  %1424 = vmatpush1.bf16.msra.mxu0 %v565
  %1425 = vmatprep.subr.bf16.mxu0 %v562
  %1426 = vmatpush1.bf16.msra.mxu0 %v561
  %1427 = vmatprep.subr.bf16.mxu0 %v558
  %1428 = vmatpush1.bf16.msra.mxu0 %v557
  %1429 = vmatprep.subr.bf16.mxu0 %v554
  %1430 = vmatpush1.bf16.msra.mxu0 %v553
  %1431 = vmatprep.subr.bf16.mxu0 %v550
  %1432 = vmatpush1.bf16.msra.mxu0 %v549
  %1433 = vmatprep.subr.bf16.mxu0 %v546
  %1434 = vmatpush1.bf16.msra.mxu0 %v545
  %1435 = vmatprep.subr.bf16.mxu0 %v542
  %1436 = vmatpush1.bf16.msra.mxu0 %v541
  %1437 = vmatprep.subr.bf16.mxu0 0
  %1438 = vmatpush2.bf16.msra.mxu0 0
  %1439 = vmatprep.subr.bf16.mxu0 0
  %1440 = vmatpush2.bf16.msra.mxu0 0
  %1441 = vmatprep.subr.bf16.mxu0 0
  %1442 = vmatpush2.bf16.msra.mxu0 0
  %1443 = vmatprep.subr.bf16.mxu0 0
  %1444 = vmatpush2.bf16.msra.mxu0 0
  %1445 = vmatprep.subr.bf16.mxu0 0
  %1446 = vmatpush2.bf16.msra.mxu0 0
  %1447 = vmatprep.subr.bf16.mxu0 0
  %1448 = vmatpush2.bf16.msra.mxu0 0
  %1449 = vmatprep.subr.bf16.mxu0 0
  %1450 = vmatpush2.bf16.msra.mxu0 0
  %1451 = vmatprep.subr.bf16.mxu0 0
  %1452 = vmatpush2.bf16.msra.mxu0 0
  %1453 = vmatprep.mubr.bf16.mxu0 0
  %1454 = vmatmul.mubr.bf16.gmra.mxu0 %v1379
  %v1455 = vpop.f32.mrf.mxu0
  %v1456 = vadd.f32 0.0, %v1455
  %v1457 = vpop.f32.mrf.mxu0
  %v1458 = vpop.f32.mrf.mxu0
  %v1459 = vpop.f32.mrf.mxu0
  %1460 = vdwg.mxu0
  %v1461 = vadd.f32 %v335, %v1415
  %v1462 = vadd.f32 %v337, %v1417
  %v1463 = vadd.f32 %v408, %v1456
  %v1464 = vxor.u32 %v1461, 2147483648
  %v1465 = vmul.f32 %v1464, 1.442695
  %v1466 = vpow.pop %v1465
  %v1467 = vadd.f32 %v1466, 1.0
  %v1468 = vrcp.pop %v1467
  %v1469 = vmul.f32 1.0, %v1468
  %v1470 = vxor.u32 %v1462, 2147483648
  %v1471 = vmul.f32 %v1470, 1.442695
  %v1472 = vpow.pop %v1471
  %v1473 = vadd.f32 %v1472, 1.0
  %v1474 = vrcp.pop %v1473
  %v1475 = vmul.f32 1.0, %v1474
  %v1476 = vtanh.pop %v1463
  %v1477 = vmul.f32 %v1475, %v1376
  %v1478 = vmul.f32 %v1469, %v1476
  %v1479 = vadd.f32 %v1477, %v1478
  %v1480 = vpack.c.bf16 %v1479, %v1479
  %v1481 = vld [vmem:[%s2 + $0x20] sm:$0xff]
  %v1482 = vld [vmem:[%s2 + $0x70] sm:$0xff]
  %v1483 = vld [vmem:[%s2 + $0xc0] sm:$0xff]
  %v1484 = vld [vmem:[%s2 + $0x110] sm:$0xff]
  %v1485 = vld [vmem:[%s2 + $0x160] sm:$0xff]
  %v1486 = vld [vmem:[%s2 + $0x1b0] sm:$0xff]
  %v1487 = vld [vmem:[%s2 + $0x200] sm:$0xff]
  %v1488 = vld [vmem:[%s2 + $0x250] sm:$0xff]
  %v1489 = vld [vmem:[%s2 + $0x2a0] sm:$0xff]
  %v1490 = vld [vmem:[%s2 + $0x2f0] sm:$0xff]
  %v1491 = vld [vmem:[%s2 + $0x340] sm:$0xff]
  %v1492 = vld [vmem:[%s2 + $0x390] sm:$0xff]
  %v1493 = vld [vmem:[%s2 + $0x3e0] sm:$0xff]
  %v1494 = vld [vmem:[%s2 + $0x430] sm:$0xff]
  %v1495 = vld [vmem:[%s2 + $0x480] sm:$0xff]
  %v1496 = vld [vmem:[%s2 + $0x4d0] sm:$0xff]
  %v1497 = vld [vmem:[%s3 + $0x4] sm:$0x3]
  %v1499 = vlaneseq
  %v1500 = vshrl.u32 %v1499, 7
  %v1501 = vsub.s32 0, %v1500
  %v1502 = vrot.slane %v1497, %v1501
  %v1503 = vlaneseq
  %v1504 = vshrl.u32 %v1503, 7
  %v1505 = vsub.s32 1, %v1504
  %v1506 = vrot.slane %v1497, %v1505
  %v1525 = vunpack.c.l.b16 %v1481
  %v1526 = vunpack.c.h.b16 %v1481
  %v1527 = vunpack.c.l.b16 %v1482
  %v1528 = vunpack.c.h.b16 %v1482
  %v1529 = vunpack.c.l.b16 %v1483
  %v1530 = vunpack.c.h.b16 %v1483
  %v1531 = vunpack.c.l.b16 %v1484
  %v1532 = vunpack.c.h.b16 %v1484
  %v1533 = vunpack.c.l.b16 %v1485
  %v1534 = vunpack.c.h.b16 %v1485
  %v1535 = vunpack.c.l.b16 %v1486
  %v1536 = vunpack.c.h.b16 %v1486
  %v1537 = vunpack.c.l.b16 %v1487
  %v1538 = vunpack.c.h.b16 %v1487
  %v1539 = vunpack.c.l.b16 %v1488
  %v1540 = vunpack.c.h.b16 %v1488
  %v1541 = vunpack.c.l.b16 %v1489
  %v1542 = vunpack.c.h.b16 %v1489
  %v1543 = vunpack.c.l.b16 %v1490
  %v1544 = vunpack.c.h.b16 %v1490
  %v1545 = vunpack.c.l.b16 %v1491
  %v1546 = vunpack.c.h.b16 %v1491
  %v1547 = vunpack.c.l.b16 %v1492
  %v1548 = vunpack.c.h.b16 %v1492
  %v1549 = vunpack.c.l.b16 %v1493
  %v1550 = vunpack.c.h.b16 %v1493
  %v1551 = vunpack.c.l.b16 %v1494
  %v1552 = vunpack.c.h.b16 %v1494
  %v1553 = vunpack.c.l.b16 %v1495
  %v1554 = vunpack.c.h.b16 %v1495
  %v1555 = vunpack.c.l.b16 %v1496
  %v1556 = vunpack.c.h.b16 %v1496
  %v1557 = vpack.c.b16 %v1527, %v1525
  %v1558 = vpack.c.b16 %v1528, %v1526
  %v1559 = vpack.c.b16 %v1531, %v1529
  %v1560 = vpack.c.b16 %v1532, %v1530
  %v1561 = vpack.c.b16 %v1535, %v1533
  %v1562 = vpack.c.b16 %v1536, %v1534
  %v1563 = vpack.c.b16 %v1539, %v1537
  %v1564 = vpack.c.b16 %v1540, %v1538
  %v1565 = vpack.c.b16 %v1543, %v1541
  %v1566 = vpack.c.b16 %v1544, %v1542
  %v1567 = vpack.c.b16 %v1547, %v1545
  %v1568 = vpack.c.b16 %v1548, %v1546
  %v1569 = vpack.c.b16 %v1551, %v1549
  %v1570 = vpack.c.b16 %v1552, %v1550
  %v1571 = vpack.c.b16 %v1555, %v1553
  %v1572 = vpack.c.b16 %v1556, %v1554
  %1589 = vmatprep.subr.bf16.mxu0 %v1572
  %1590 = vmatpush1.bf16.msra.mxu0 %v1571
  %1591 = vmatprep.subr.bf16.mxu0 %v1570
  %1592 = vmatpush1.bf16.msra.mxu0 %v1569
  %1593 = vmatprep.subr.bf16.mxu0 %v1568
  %1594 = vmatpush1.bf16.msra.mxu0 %v1567
  %1595 = vmatprep.subr.bf16.mxu0 %v1566
  %1596 = vmatpush1.bf16.msra.mxu0 %v1565
  %1597 = vmatprep.subr.bf16.mxu0 %v1564
  %1598 = vmatpush1.bf16.msra.mxu0 %v1563
  %1599 = vmatprep.subr.bf16.mxu0 %v1562
  %1600 = vmatpush1.bf16.msra.mxu0 %v1561
  %1601 = vmatprep.subr.bf16.mxu0 %v1560
  %1602 = vmatpush1.bf16.msra.mxu0 %v1559
  %1603 = vmatprep.subr.bf16.mxu0 %v1558
  %1604 = vmatpush1.bf16.msra.mxu0 %v1557
  %1605 = vmatprep.subr.bf16.mxu0 0
  %1606 = vmatpush2.bf16.msra.mxu0 0
  %1607 = vmatprep.subr.bf16.mxu0 0
  %1608 = vmatpush2.bf16.msra.mxu0 0
  %1609 = vmatprep.subr.bf16.mxu0 0
  %1610 = vmatpush2.bf16.msra.mxu0 0
  %1611 = vmatprep.subr.bf16.mxu0 0
  %1612 = vmatpush2.bf16.msra.mxu0 0
  %1613 = vmatprep.subr.bf16.mxu0 0
  %1614 = vmatpush2.bf16.msra.mxu0 0
  %1615 = vmatprep.subr.bf16.mxu0 0
  %1616 = vmatpush2.bf16.msra.mxu0 0
  %1617 = vmatprep.subr.bf16.mxu0 0
  %1618 = vmatpush2.bf16.msra.mxu0 0
  %1619 = vmatprep.subr.bf16.mxu0 0
  %1620 = vmatpush2.bf16.msra.mxu0 0
  %1621 = vmatprep.mubr.bf16.mxu0 0
  %1622 = vmatmul.mubr.bf16.gmra.mxu0 %v1480
  %v1623 = vpop.f32.mrf.mxu0
  %v1624 = vadd.f32 %v1502, %v1623
  %v1625 = vpop.f32.mrf.mxu0
  %v1626 = vadd.f32 %v1506, %v1625
  %v1627 = vpop.f32.mrf.mxu0
  %v1628 = vpop.f32.mrf.mxu0
  %1629 = vdwg.mxu0
  %1630 = vst [vmem:[%s5] sm:$0xff] %v1624
  %1631 = vst [vmem:[%s5 + $0x8] sm:$0xff] %v1626
  %v1632 = vld [vmem:[%s1] sm:$0xff]
  %v1633 = vmul.f32 %v1626, 0.5
  %v1634 = vmul.f32 %v1633, 1.442695
  %v1635 = vpow.pop %v1634
  %v1636 = vmul.f32 %v1632, %v1635
  %v1637 = vadd.f32 %v1624, %v1636
  %v1638 = vpack.c.bf16 %v1637, %v1637
  %v1639 = vld [vmem:[%s2 + $0x28] sm:$0xf]
  %v1640 = vld [vmem:[%s2 + $0x78] sm:$0xf]
  %v1641 = vld [vmem:[%s2 + $0xc8] sm:$0xf]
  %v1642 = vld [vmem:[%s2 + $0x118] sm:$0xf]
  %v1643 = vld [vmem:[%s2 + $0x168] sm:$0xf]
  %v1644 = vld [vmem:[%s2 + $0x1b8] sm:$0xf]
  %v1645 = vld [vmem:[%s2 + $0x208] sm:$0xf]
  %v1646 = vld [vmem:[%s2 + $0x258] sm:$0xf]
  %v1647 = vld [vmem:[%s2 + $0x2a8] sm:$0xf]
  %v1648 = vld [vmem:[%s2 + $0x2f8] sm:$0xf]
  %v1649 = vld [vmem:[%s2 + $0x348] sm:$0xf]
  %v1650 = vld [vmem:[%s2 + $0x398] sm:$0xf]
  %v1651 = vld [vmem:[%s2 + $0x3e8] sm:$0xf]
  %v1652 = vld [vmem:[%s2 + $0x438] sm:$0xf]
  %v1653 = vld [vmem:[%s2 + $0x488] sm:$0xf]
  %v1654 = vld [vmem:[%s2 + $0x4d8] sm:$0xf]
  %v1655 = vld [vmem:[%s3 + $0x6] sm:$0x1]
  %v1657 = vlaneseq
  %v1658 = vshrl.u32 %v1657, 7
  %v1659 = vsub.s32 0, %v1658
  %v1660 = vrot.slane %v1655, %v1659
  %v1678 = vunpack.c.l.b16 %v1639
  %v1679 = vunpack.c.l.b16 %v1640
  %v1680 = vunpack.c.l.b16 %v1641
  %v1681 = vunpack.c.l.b16 %v1642
  %v1682 = vunpack.c.l.b16 %v1643
  %v1683 = vunpack.c.l.b16 %v1644
  %v1684 = vunpack.c.l.b16 %v1645
  %v1685 = vunpack.c.l.b16 %v1646
  %v1686 = vunpack.c.l.b16 %v1647
  %v1687 = vunpack.c.l.b16 %v1648
  %v1688 = vunpack.c.l.b16 %v1649
  %v1689 = vunpack.c.l.b16 %v1650
  %v1690 = vunpack.c.l.b16 %v1651
  %v1691 = vunpack.c.l.b16 %v1652
  %v1692 = vunpack.c.l.b16 %v1653
  %v1693 = vunpack.c.l.b16 %v1654
  %v1694 = vpack.c.b16 %v1679, %v1678
  %v1695 = vpack.c.b16 %v1681, %v1680
  %v1696 = vpack.c.b16 %v1683, %v1682
  %v1697 = vpack.c.b16 %v1685, %v1684
  %v1698 = vpack.c.b16 %v1687, %v1686
  %v1699 = vpack.c.b16 %v1689, %v1688
  %v1700 = vpack.c.b16 %v1691, %v1690
  %v1701 = vpack.c.b16 %v1693, %v1692
  %1710 = vmatprep.subr.bf16.mxu0 0
  %1711 = vmatpush1.bf16.msra.mxu0 %v1701
  %1712 = vmatprep.subr.bf16.mxu0 0
  %1713 = vmatpush1.bf16.msra.mxu0 %v1700
  %1714 = vmatprep.subr.bf16.mxu0 0
  %1715 = vmatpush1.bf16.msra.mxu0 %v1699
  %1716 = vmatprep.subr.bf16.mxu0 0
  %1717 = vmatpush1.bf16.msra.mxu0 %v1698
  %1718 = vmatprep.subr.bf16.mxu0 0
  %1719 = vmatpush1.bf16.msra.mxu0 %v1697
  %1720 = vmatprep.subr.bf16.mxu0 0
  %1721 = vmatpush1.bf16.msra.mxu0 %v1696
  %1722 = vmatprep.subr.bf16.mxu0 0
  %1723 = vmatpush1.bf16.msra.mxu0 %v1695
  %1724 = vmatprep.subr.bf16.mxu0 0
  %1725 = vmatpush1.bf16.msra.mxu0 %v1694
  %1726 = vmatprep.subr.bf16.mxu0 0
  %1727 = vmatpush2.bf16.msra.mxu0 0
  %1728 = vmatprep.subr.bf16.mxu0 0
  %1729 = vmatpush2.bf16.msra.mxu0 0
  %1730 = vmatprep.subr.bf16.mxu0 0
  %1731 = vmatpush2.bf16.msra.mxu0 0
  %1732 = vmatprep.subr.bf16.mxu0 0
  %1733 = vmatpush2.bf16.msra.mxu0 0
  %1734 = vmatprep.subr.bf16.mxu0 0
  %1735 = vmatpush2.bf16.msra.mxu0 0
  %1736 = vmatprep.subr.bf16.mxu0 0
  %1737 = vmatpush2.bf16.msra.mxu0 0
  %1738 = vmatprep.subr.bf16.mxu0 0
  %1739 = vmatpush2.bf16.msra.mxu0 0
  %1740 = vmatprep.subr.bf16.mxu0 0
  %1741 = vmatpush2.bf16.msra.mxu0 0
  %1742 = vmatprep.mubr.bf16.mxu0 0
  %1743 = vmatmul.mubr.bf16.gmra.mxu0 %v1638
  %v1744 = vpop.f32.mrf.mxu0
  %v1745 = vadd.f32 %v1660, %v1744
  %v1746 = vpop.f32.mrf.mxu0
  %v1747 = vpop.f32.mrf.mxu0
  %v1748 = vpop.f32.mrf.mxu0
  %1749 = vdwg.mxu0
  %v1750 = vmax.f32 %v1745, 0.0
  %v1751 = vpack.c.bf16 %v1750, %v1750
  %v1752 = vld [vmem:[%s2 + $0x2c] sm:$0xff]
  %v1753 = vld [vmem:[%s2 + $0x34] sm:$0xff]
  %v1754 = vld [vmem:[%s2 + $0x7c] sm:$0xff]
  %v1755 = vld [vmem:[%s2 + $0x84] sm:$0xff]
  %v1756 = vld [vmem:[%s2 + $0xcc] sm:$0xff]
  %v1757 = vld [vmem:[%s2 + $0xd4] sm:$0xff]
  %v1758 = vld [vmem:[%s2 + $0x11c] sm:$0xff]
  %v1759 = vld [vmem:[%s2 + $0x124] sm:$0xff]
  %v1760 = vld [vmem:[%s2 + $0x16c] sm:$0xff]
  %v1761 = vld [vmem:[%s2 + $0x174] sm:$0xff]
  %v1762 = vld [vmem:[%s2 + $0x1bc] sm:$0xff]
  %v1763 = vld [vmem:[%s2 + $0x1c4] sm:$0xff]
  %v1764 = vld [vmem:[%s2 + $0x20c] sm:$0xff]
  %v1765 = vld [vmem:[%s2 + $0x214] sm:$0xff]
  %v1766 = vld [vmem:[%s2 + $0x25c] sm:$0xff]
  %v1767 = vld [vmem:[%s2 + $0x264] sm:$0xff]
  %v1768 = vld [vmem:[%s2 + $0x2ac] sm:$0xff]
  %v1769 = vld [vmem:[%s2 + $0x2b4] sm:$0xff]
  %v1770 = vld [vmem:[%s2 + $0x2fc] sm:$0xff]
  %v1771 = vld [vmem:[%s2 + $0x304] sm:$0xff]
  %v1772 = vld [vmem:[%s2 + $0x34c] sm:$0xff]
  %v1773 = vld [vmem:[%s2 + $0x354] sm:$0xff]
  %v1774 = vld [vmem:[%s2 + $0x39c] sm:$0xff]
  %v1775 = vld [vmem:[%s2 + $0x3a4] sm:$0xff]
  %v1776 = vld [vmem:[%s2 + $0x3ec] sm:$0xff]
  %v1777 = vld [vmem:[%s2 + $0x3f4] sm:$0xff]
  %v1778 = vld [vmem:[%s2 + $0x43c] sm:$0xff]
  %v1779 = vld [vmem:[%s2 + $0x444] sm:$0xff]
  %v1780 = vld [vmem:[%s2 + $0x48c] sm:$0xff]
  %v1781 = vld [vmem:[%s2 + $0x494] sm:$0xff]
  %v1782 = vld [vmem:[%s2 + $0x4dc] sm:$0xff]
  %v1783 = vld [vmem:[%s2 + $0x4e4] sm:$0xff]
  %v1784 = vld [vmem:[%s3 + $0x7] sm:$0xf]
  %v1786 = vlaneseq
  %v1787 = vshrl.u32 %v1786, 7
  %v1788 = vsub.s32 0, %v1787
  %v1789 = vrot.slane %v1784, %v1788
  %v1790 = vlaneseq
  %v1791 = vshrl.u32 %v1790, 7
  %v1792 = vsub.s32 1, %v1791
  %v1793 = vrot.slane %v1784, %v1792
  %v1794 = vlaneseq
  %v1795 = vshrl.u32 %v1794, 7
  %v1796 = vsub.s32 2, %v1795
  %v1797 = vrot.slane %v1784, %v1796
  %v1798 = vlaneseq
  %v1799 = vshrl.u32 %v1798, 7
  %v1800 = vsub.s32 3, %v1799
  %v1801 = vrot.slane %v1784, %v1800
  %v1838 = vunpack.c.l.b16 %v1752
  %v1839 = vunpack.c.h.b16 %v1752
  %v1840 = vunpack.c.l.b16 %v1753
  %v1841 = vunpack.c.h.b16 %v1753
  %v1842 = vunpack.c.l.b16 %v1754
  %v1843 = vunpack.c.h.b16 %v1754
  %v1844 = vunpack.c.l.b16 %v1755
  %v1845 = vunpack.c.h.b16 %v1755
  %v1846 = vunpack.c.l.b16 %v1756
  %v1847 = vunpack.c.h.b16 %v1756
  %v1848 = vunpack.c.l.b16 %v1757
  %v1849 = vunpack.c.h.b16 %v1757
  %v1850 = vunpack.c.l.b16 %v1758
  %v1851 = vunpack.c.h.b16 %v1758
  %v1852 = vunpack.c.l.b16 %v1759
  %v1853 = vunpack.c.h.b16 %v1759
  %v1854 = vunpack.c.l.b16 %v1760
  %v1855 = vunpack.c.h.b16 %v1760
  %v1856 = vunpack.c.l.b16 %v1761
  %v1857 = vunpack.c.h.b16 %v1761
  %v1858 = vunpack.c.l.b16 %v1762
  %v1859 = vunpack.c.h.b16 %v1762
  %v1860 = vunpack.c.l.b16 %v1763
  %v1861 = vunpack.c.h.b16 %v1763
  %v1862 = vunpack.c.l.b16 %v1764
  %v1863 = vunpack.c.h.b16 %v1764
  %v1864 = vunpack.c.l.b16 %v1765
  %v1865 = vunpack.c.h.b16 %v1765
  %v1866 = vunpack.c.l.b16 %v1766
  %v1867 = vunpack.c.h.b16 %v1766
  %v1868 = vunpack.c.l.b16 %v1767
  %v1869 = vunpack.c.h.b16 %v1767
  %v1870 = vunpack.c.l.b16 %v1768
  %v1871 = vunpack.c.h.b16 %v1768
  %v1872 = vunpack.c.l.b16 %v1769
  %v1873 = vunpack.c.h.b16 %v1769
  %v1874 = vunpack.c.l.b16 %v1770
  %v1875 = vunpack.c.h.b16 %v1770
  %v1876 = vunpack.c.l.b16 %v1771
  %v1877 = vunpack.c.h.b16 %v1771
  %v1878 = vunpack.c.l.b16 %v1772
  %v1879 = vunpack.c.h.b16 %v1772
  %v1880 = vunpack.c.l.b16 %v1773
  %v1881 = vunpack.c.h.b16 %v1773
  %v1882 = vunpack.c.l.b16 %v1774
  %v1883 = vunpack.c.h.b16 %v1774
  %v1884 = vunpack.c.l.b16 %v1775
  %v1885 = vunpack.c.h.b16 %v1775
  %v1886 = vunpack.c.l.b16 %v1776
  %v1887 = vunpack.c.h.b16 %v1776
  %v1888 = vunpack.c.l.b16 %v1777
  %v1889 = vunpack.c.h.b16 %v1777
  %v1890 = vunpack.c.l.b16 %v1778
  %v1891 = vunpack.c.h.b16 %v1778
  %v1892 = vunpack.c.l.b16 %v1779
  %v1893 = vunpack.c.h.b16 %v1779
  %v1894 = vunpack.c.l.b16 %v1780
  %v1895 = vunpack.c.h.b16 %v1780
  %v1896 = vunpack.c.l.b16 %v1781
  %v1897 = vunpack.c.h.b16 %v1781
  %v1898 = vunpack.c.l.b16 %v1782
  %v1899 = vunpack.c.h.b16 %v1782
  %v1900 = vunpack.c.l.b16 %v1783
  %v1901 = vunpack.c.h.b16 %v1783
  %v1902 = vpack.c.b16 %v1842, %v1838
  %v1903 = vpack.c.b16 %v1843, %v1839
  %v1904 = vpack.c.b16 %v1844, %v1840
  %v1905 = vpack.c.b16 %v1845, %v1841
  %v1906 = vpack.c.b16 %v1850, %v1846
  %v1907 = vpack.c.b16 %v1851, %v1847
  %v1908 = vpack.c.b16 %v1852, %v1848
  %v1909 = vpack.c.b16 %v1853, %v1849
  %v1910 = vpack.c.b16 %v1858, %v1854
  %v1911 = vpack.c.b16 %v1859, %v1855
  %v1912 = vpack.c.b16 %v1860, %v1856
  %v1913 = vpack.c.b16 %v1861, %v1857
  %v1914 = vpack.c.b16 %v1866, %v1862
  %v1915 = vpack.c.b16 %v1867, %v1863
  %v1916 = vpack.c.b16 %v1868, %v1864
  %v1917 = vpack.c.b16 %v1869, %v1865
  %v1918 = vpack.c.b16 %v1874, %v1870
  %v1919 = vpack.c.b16 %v1875, %v1871
  %v1920 = vpack.c.b16 %v1876, %v1872
  %v1921 = vpack.c.b16 %v1877, %v1873
  %v1922 = vpack.c.b16 %v1882, %v1878
  %v1923 = vpack.c.b16 %v1883, %v1879
  %v1924 = vpack.c.b16 %v1884, %v1880
  %v1925 = vpack.c.b16 %v1885, %v1881
  %v1926 = vpack.c.b16 %v1890, %v1886
  %v1927 = vpack.c.b16 %v1891, %v1887
  %v1928 = vpack.c.b16 %v1892, %v1888
  %v1929 = vpack.c.b16 %v1893, %v1889
  %v1930 = vpack.c.b16 %v1898, %v1894
  %v1931 = vpack.c.b16 %v1899, %v1895
  %v1932 = vpack.c.b16 %v1900, %v1896
  %v1933 = vpack.c.b16 %v1901, %v1897
  %1966 = vmatprep.subr.bf16.mxu0 %v1931
  %1967 = vmatpush1.bf16.msra.mxu0 %v1930
  %1968 = vmatprep.subr.bf16.mxu0 %v1927
  %1969 = vmatpush1.bf16.msra.mxu0 %v1926
  %1970 = vmatprep.subr.bf16.mxu0 %v1923
  %1971 = vmatpush1.bf16.msra.mxu0 %v1922
  %1972 = vmatprep.subr.bf16.mxu0 %v1919
  %1973 = vmatpush1.bf16.msra.mxu0 %v1918
  %1974 = vmatprep.subr.bf16.mxu0 %v1915
  %1975 = vmatpush1.bf16.msra.mxu0 %v1914
  %1976 = vmatprep.subr.bf16.mxu0 %v1911
  %1977 = vmatpush1.bf16.msra.mxu0 %v1910
  %1978 = vmatprep.subr.bf16.mxu0 %v1907
  %1979 = vmatpush1.bf16.msra.mxu0 %v1906
  %1980 = vmatprep.subr.bf16.mxu0 %v1903
  %1981 = vmatpush1.bf16.msra.mxu0 %v1902
  %1982 = vmatprep.subr.bf16.mxu0 0
  %1983 = vmatpush2.bf16.msra.mxu0 0
  %1984 = vmatprep.subr.bf16.mxu0 0
  %1985 = vmatpush2.bf16.msra.mxu0 0
  %1986 = vmatprep.subr.bf16.mxu0 0
  %1987 = vmatpush2.bf16.msra.mxu0 0
  %1988 = vmatprep.subr.bf16.mxu0 0
  %1989 = vmatpush2.bf16.msra.mxu0 0
  %1990 = vmatprep.subr.bf16.mxu0 0
  %1991 = vmatpush2.bf16.msra.mxu0 0
  %1992 = vmatprep.subr.bf16.mxu0 0
  %1993 = vmatpush2.bf16.msra.mxu0 0
  %1994 = vmatprep.subr.bf16.mxu0 0
  %1995 = vmatpush2.bf16.msra.mxu0 0
  %1996 = vmatprep.subr.bf16.mxu0 0
  %1997 = vmatpush2.bf16.msra.mxu0 0
  %1998 = vmatprep.mubr.bf16.mxu0 0
  %1999 = vmatmul.mubr.bf16.gmra.mxu0 %v1751
  %v2000 = vpop.f32.mrf.mxu0
  %v2001 = vadd.f32 %v1789, %v2000
  %v2002 = vpop.f32.mrf.mxu0
  %v2003 = vadd.f32 %v1793, %v2002
  %v2004 = vpop.f32.mrf.mxu0
  %v2005 = vpop.f32.mrf.mxu0
  %2006 = vdwg.mxu0
  %2007 = vmatprep.subr.bf16.mxu0 %v1933
  %2008 = vmatpush1.bf16.msra.mxu0 %v1932
  %2009 = vmatprep.subr.bf16.mxu0 %v1929
  %2010 = vmatpush1.bf16.msra.mxu0 %v1928
  %2011 = vmatprep.subr.bf16.mxu0 %v1925
  %2012 = vmatpush1.bf16.msra.mxu0 %v1924
  %2013 = vmatprep.subr.bf16.mxu0 %v1921
  %2014 = vmatpush1.bf16.msra.mxu0 %v1920
  %2015 = vmatprep.subr.bf16.mxu0 %v1917
  %2016 = vmatpush1.bf16.msra.mxu0 %v1916
  %2017 = vmatprep.subr.bf16.mxu0 %v1913
  %2018 = vmatpush1.bf16.msra.mxu0 %v1912
  %2019 = vmatprep.subr.bf16.mxu0 %v1909
  %2020 = vmatpush1.bf16.msra.mxu0 %v1908
  %2021 = vmatprep.subr.bf16.mxu0 %v1905
  %2022 = vmatpush1.bf16.msra.mxu0 %v1904
  %2023 = vmatprep.subr.bf16.mxu0 0
  %2024 = vmatpush2.bf16.msra.mxu0 0
  %2025 = vmatprep.subr.bf16.mxu0 0
  %2026 = vmatpush2.bf16.msra.mxu0 0
  %2027 = vmatprep.subr.bf16.mxu0 0
  %2028 = vmatpush2.bf16.msra.mxu0 0
  %2029 = vmatprep.subr.bf16.mxu0 0
  %2030 = vmatpush2.bf16.msra.mxu0 0
  %2031 = vmatprep.subr.bf16.mxu0 0
  %2032 = vmatpush2.bf16.msra.mxu0 0
  %2033 = vmatprep.subr.bf16.mxu0 0
  %2034 = vmatpush2.bf16.msra.mxu0 0
  %2035 = vmatprep.subr.bf16.mxu0 0
  %2036 = vmatpush2.bf16.msra.mxu0 0
  %2037 = vmatprep.subr.bf16.mxu0 0
  %2038 = vmatpush2.bf16.msra.mxu0 0
  %2039 = vmatprep.mubr.bf16.mxu0 0
  %2040 = vmatmul.mubr.bf16.gmra.mxu0 %v1751
  %v2041 = vpop.f32.mrf.mxu0
  %v2042 = vadd.f32 %v1797, %v2041
  %v2043 = vpop.f32.mrf.mxu0
  %v2044 = vadd.f32 %v1801, %v2043
  %v2045 = vpop.f32.mrf.mxu0
  %v2046 = vpop.f32.mrf.mxu0
  %2047 = vdwg.mxu0
  %v2048 = vld [vmem:[%s2 + $0x3c] sm:$0xff]
  %v2049 = vld [vmem:[%s2 + $0x44] sm:$0xff]
  %v2050 = vld [vmem:[%s2 + $0x8c] sm:$0xff]
  %v2051 = vld [vmem:[%s2 + $0x94] sm:$0xff]
  %v2052 = vld [vmem:[%s2 + $0xdc] sm:$0xff]
  %v2053 = vld [vmem:[%s2 + $0xe4] sm:$0xff]
  %v2054 = vld [vmem:[%s2 + $0x12c] sm:$0xff]
  %v2055 = vld [vmem:[%s2 + $0x134] sm:$0xff]
  %v2056 = vld [vmem:[%s2 + $0x17c] sm:$0xff]
  %v2057 = vld [vmem:[%s2 + $0x184] sm:$0xff]
  %v2058 = vld [vmem:[%s2 + $0x1cc] sm:$0xff]
  %v2059 = vld [vmem:[%s2 + $0x1d4] sm:$0xff]
  %v2060 = vld [vmem:[%s2 + $0x21c] sm:$0xff]
  %v2061 = vld [vmem:[%s2 + $0x224] sm:$0xff]
  %v2062 = vld [vmem:[%s2 + $0x26c] sm:$0xff]
  %v2063 = vld [vmem:[%s2 + $0x274] sm:$0xff]
  %v2064 = vld [vmem:[%s2 + $0x2bc] sm:$0xff]
  %v2065 = vld [vmem:[%s2 + $0x2c4] sm:$0xff]
  %v2066 = vld [vmem:[%s2 + $0x30c] sm:$0xff]
  %v2067 = vld [vmem:[%s2 + $0x314] sm:$0xff]
  %v2068 = vld [vmem:[%s2 + $0x35c] sm:$0xff]
  %v2069 = vld [vmem:[%s2 + $0x364] sm:$0xff]
  %v2070 = vld [vmem:[%s2 + $0x3ac] sm:$0xff]
  %v2071 = vld [vmem:[%s2 + $0x3b4] sm:$0xff]
  %v2072 = vld [vmem:[%s2 + $0x3fc] sm:$0xff]
  %v2073 = vld [vmem:[%s2 + $0x404] sm:$0xff]
  %v2074 = vld [vmem:[%s2 + $0x44c] sm:$0xff]
  %v2075 = vld [vmem:[%s2 + $0x454] sm:$0xff]
  %v2076 = vld [vmem:[%s2 + $0x49c] sm:$0xff]
  %v2077 = vld [vmem:[%s2 + $0x4a4] sm:$0xff]
  %v2078 = vld [vmem:[%s2 + $0x4ec] sm:$0xff]
  %v2079 = vld [vmem:[%s2 + $0x4f4] sm:$0xff]
  %v2112 = vunpack.c.l.b16 %v2048
  %v2113 = vunpack.c.h.b16 %v2048
  %v2114 = vunpack.c.l.b16 %v2049
  %v2115 = vunpack.c.h.b16 %v2049
  %v2116 = vunpack.c.l.b16 %v2050
  %v2117 = vunpack.c.h.b16 %v2050
  %v2118 = vunpack.c.l.b16 %v2051
  %v2119 = vunpack.c.h.b16 %v2051
  %v2120 = vunpack.c.l.b16 %v2052
  %v2121 = vunpack.c.h.b16 %v2052
  %v2122 = vunpack.c.l.b16 %v2053
  %v2123 = vunpack.c.h.b16 %v2053
  %v2124 = vunpack.c.l.b16 %v2054
  %v2125 = vunpack.c.h.b16 %v2054
  %v2126 = vunpack.c.l.b16 %v2055
  %v2127 = vunpack.c.h.b16 %v2055
  %v2128 = vunpack.c.l.b16 %v2056
  %v2129 = vunpack.c.h.b16 %v2056
  %v2130 = vunpack.c.l.b16 %v2057
  %v2131 = vunpack.c.h.b16 %v2057
  %v2132 = vunpack.c.l.b16 %v2058
  %v2133 = vunpack.c.h.b16 %v2058
  %v2134 = vunpack.c.l.b16 %v2059
  %v2135 = vunpack.c.h.b16 %v2059
  %v2136 = vunpack.c.l.b16 %v2060
  %v2137 = vunpack.c.h.b16 %v2060
  %v2138 = vunpack.c.l.b16 %v2061
  %v2139 = vunpack.c.h.b16 %v2061
  %v2140 = vunpack.c.l.b16 %v2062
  %v2141 = vunpack.c.h.b16 %v2062
  %v2142 = vunpack.c.l.b16 %v2063
  %v2143 = vunpack.c.h.b16 %v2063
  %v2144 = vunpack.c.l.b16 %v2064
  %v2145 = vunpack.c.h.b16 %v2064
  %v2146 = vunpack.c.l.b16 %v2065
  %v2147 = vunpack.c.h.b16 %v2065
  %v2148 = vunpack.c.l.b16 %v2066
  %v2149 = vunpack.c.h.b16 %v2066
  %v2150 = vunpack.c.l.b16 %v2067
  %v2151 = vunpack.c.h.b16 %v2067
  %v2152 = vunpack.c.l.b16 %v2068
  %v2153 = vunpack.c.h.b16 %v2068
  %v2154 = vunpack.c.l.b16 %v2069
  %v2155 = vunpack.c.h.b16 %v2069
  %v2156 = vunpack.c.l.b16 %v2070
  %v2157 = vunpack.c.h.b16 %v2070
  %v2158 = vunpack.c.l.b16 %v2071
  %v2159 = vunpack.c.h.b16 %v2071
  %v2160 = vunpack.c.l.b16 %v2072
  %v2161 = vunpack.c.h.b16 %v2072
  %v2162 = vunpack.c.l.b16 %v2073
  %v2163 = vunpack.c.h.b16 %v2073
  %v2164 = vunpack.c.l.b16 %v2074
  %v2165 = vunpack.c.h.b16 %v2074
  %v2166 = vunpack.c.l.b16 %v2075
  %v2167 = vunpack.c.h.b16 %v2075
  %v2168 = vunpack.c.l.b16 %v2076
  %v2169 = vunpack.c.h.b16 %v2076
  %v2170 = vunpack.c.l.b16 %v2077
  %v2171 = vunpack.c.h.b16 %v2077
  %v2172 = vunpack.c.l.b16 %v2078
  %v2173 = vunpack.c.h.b16 %v2078
  %v2174 = vunpack.c.l.b16 %v2079
  %v2175 = vunpack.c.h.b16 %v2079
  %v2176 = vpack.c.b16 %v2116, %v2112
  %v2177 = vpack.c.b16 %v2117, %v2113
  %v2178 = vpack.c.b16 %v2118, %v2114
  %v2179 = vpack.c.b16 %v2119, %v2115
  %v2180 = vpack.c.b16 %v2124, %v2120
  %v2181 = vpack.c.b16 %v2125, %v2121
  %v2182 = vpack.c.b16 %v2126, %v2122
  %v2183 = vpack.c.b16 %v2127, %v2123
  %v2184 = vpack.c.b16 %v2132, %v2128
  %v2185 = vpack.c.b16 %v2133, %v2129
  %v2186 = vpack.c.b16 %v2134, %v2130
  %v2187 = vpack.c.b16 %v2135, %v2131
  %v2188 = vpack.c.b16 %v2140, %v2136
  %v2189 = vpack.c.b16 %v2141, %v2137
  %v2190 = vpack.c.b16 %v2142, %v2138
  %v2191 = vpack.c.b16 %v2143, %v2139
  %v2192 = vpack.c.b16 %v2148, %v2144
  %v2193 = vpack.c.b16 %v2149, %v2145
  %v2194 = vpack.c.b16 %v2150, %v2146
  %v2195 = vpack.c.b16 %v2151, %v2147
  %v2196 = vpack.c.b16 %v2156, %v2152
  %v2197 = vpack.c.b16 %v2157, %v2153
  %v2198 = vpack.c.b16 %v2158, %v2154
  %v2199 = vpack.c.b16 %v2159, %v2155
  %v2200 = vpack.c.b16 %v2164, %v2160
  %v2201 = vpack.c.b16 %v2165, %v2161
  %v2202 = vpack.c.b16 %v2166, %v2162
  %v2203 = vpack.c.b16 %v2167, %v2163
  %v2204 = vpack.c.b16 %v2172, %v2168
  %v2205 = vpack.c.b16 %v2173, %v2169
  %v2206 = vpack.c.b16 %v2174, %v2170
  %v2207 = vpack.c.b16 %v2175, %v2171
  %2240 = vmatprep.subr.bf16.mxu0 %v2205
  %2241 = vmatpush1.bf16.msra.mxu0 %v2204
  %2242 = vmatprep.subr.bf16.mxu0 %v2201
  %2243 = vmatpush1.bf16.msra.mxu0 %v2200
  %2244 = vmatprep.subr.bf16.mxu0 %v2197
  %2245 = vmatpush1.bf16.msra.mxu0 %v2196
  %2246 = vmatprep.subr.bf16.mxu0 %v2193
  %2247 = vmatpush1.bf16.msra.mxu0 %v2192
  %2248 = vmatprep.subr.bf16.mxu0 %v2189
  %2249 = vmatpush1.bf16.msra.mxu0 %v2188
  %2250 = vmatprep.subr.bf16.mxu0 %v2185
  %2251 = vmatpush1.bf16.msra.mxu0 %v2184
  %2252 = vmatprep.subr.bf16.mxu0 %v2181
  %2253 = vmatpush1.bf16.msra.mxu0 %v2180
  %2254 = vmatprep.subr.bf16.mxu0 %v2177
  %2255 = vmatpush1.bf16.msra.mxu0 %v2176
  %2256 = vmatprep.subr.bf16.mxu0 0
  %2257 = vmatpush2.bf16.msra.mxu0 0
  %2258 = vmatprep.subr.bf16.mxu0 0
  %2259 = vmatpush2.bf16.msra.mxu0 0
  %2260 = vmatprep.subr.bf16.mxu0 0
  %2261 = vmatpush2.bf16.msra.mxu0 0
  %2262 = vmatprep.subr.bf16.mxu0 0
  %2263 = vmatpush2.bf16.msra.mxu0 0
  %2264 = vmatprep.subr.bf16.mxu0 0
  %2265 = vmatpush2.bf16.msra.mxu0 0
  %2266 = vmatprep.subr.bf16.mxu0 0
  %2267 = vmatpush2.bf16.msra.mxu0 0
  %2268 = vmatprep.subr.bf16.mxu0 0
  %2269 = vmatpush2.bf16.msra.mxu0 0
  %2270 = vmatprep.subr.bf16.mxu0 0
  %2271 = vmatpush2.bf16.msra.mxu0 0
  %2272 = vmatprep.mubr.bf16.mxu0 0
  %2273 = vmatmul.mubr.bf16.gmra.mxu0 0
  %v2274 = vpop.f32.mrf.mxu0
  %v2275 = vadd.f32 0.0, %v2274
  %v2276 = vpop.f32.mrf.mxu0
  %v2277 = vadd.f32 0.0, %v2276
  %v2278 = vpop.f32.mrf.mxu0
  %v2279 = vpop.f32.mrf.mxu0
  %2280 = vdwg.mxu0
  %2281 = vmatprep.subr.bf16.mxu0 %v2207
  %2282 = vmatpush1.bf16.msra.mxu0 %v2206
  %2283 = vmatprep.subr.bf16.mxu0 %v2203
  %2284 = vmatpush1.bf16.msra.mxu0 %v2202
  %2285 = vmatprep.subr.bf16.mxu0 %v2199
  %2286 = vmatpush1.bf16.msra.mxu0 %v2198
  %2287 = vmatprep.subr.bf16.mxu0 %v2195
  %2288 = vmatpush1.bf16.msra.mxu0 %v2194
  %2289 = vmatprep.subr.bf16.mxu0 %v2191
  %2290 = vmatpush1.bf16.msra.mxu0 %v2190
  %2291 = vmatprep.subr.bf16.mxu0 %v2187
  %2292 = vmatpush1.bf16.msra.mxu0 %v2186
  %2293 = vmatprep.subr.bf16.mxu0 %v2183
  %2294 = vmatpush1.bf16.msra.mxu0 %v2182
  %2295 = vmatprep.subr.bf16.mxu0 %v2179
  %2296 = vmatpush1.bf16.msra.mxu0 %v2178
  %2297 = vmatprep.subr.bf16.mxu0 0
  %2298 = vmatpush2.bf16.msra.mxu0 0
  %2299 = vmatprep.subr.bf16.mxu0 0
  %2300 = vmatpush2.bf16.msra.mxu0 0
  %2301 = vmatprep.subr.bf16.mxu0 0
  %2302 = vmatpush2.bf16.msra.mxu0 0
  %2303 = vmatprep.subr.bf16.mxu0 0
  %2304 = vmatpush2.bf16.msra.mxu0 0
  %2305 = vmatprep.subr.bf16.mxu0 0
  %2306 = vmatpush2.bf16.msra.mxu0 0
  %2307 = vmatprep.subr.bf16.mxu0 0
  %2308 = vmatpush2.bf16.msra.mxu0 0
  %2309 = vmatprep.subr.bf16.mxu0 0
  %2310 = vmatpush2.bf16.msra.mxu0 0
  %2311 = vmatprep.subr.bf16.mxu0 0
  %2312 = vmatpush2.bf16.msra.mxu0 0
  %2313 = vmatprep.mubr.bf16.mxu0 0
  %2314 = vmatmul.mubr.bf16.gmra.mxu0 0
  %v2315 = vpop.f32.mrf.mxu0
  %v2316 = vadd.f32 0.0, %v2315
  %v2317 = vpop.f32.mrf.mxu0
  %v2318 = vadd.f32 0.0, %v2317
  %v2319 = vpop.f32.mrf.mxu0
  %v2320 = vpop.f32.mrf.mxu0
  %2321 = vdwg.mxu0
  %v2322 = vadd.f32 %v2001, %v2275
  %v2323 = vadd.f32 %v2003, %v2277
  %v2324 = vadd.f32 %v2042, %v2316
  %v2325 = vadd.f32 %v2044, %v2318
  %v2326 = vxor.u32 %v2322, 2147483648
  %v2327 = vmul.f32 %v2326, 1.442695
  %v2328 = vpow.pop %v2327
  %v2329 = vadd.f32 %v2328, 1.0
  %v2330 = vrcp.pop %v2329
  %v2331 = vmul.f32 1.0, %v2330
  %v2332 = vxor.u32 %v2323, 2147483648
  %v2333 = vmul.f32 %v2332, 1.442695
  %v2334 = vpow.pop %v2333
  %v2335 = vadd.f32 %v2334, 1.0
  %v2336 = vrcp.pop %v2335
  %v2337 = vmul.f32 1.0, %v2336
  %v2338 = vtanh.pop %v2324
  %v2339 = vxor.u32 %v2325, 2147483648
  %v2340 = vmul.f32 %v2339, 1.442695
  %v2341 = vpow.pop %v2340
  %v2342 = vadd.f32 %v2341, 1.0
  %v2343 = vrcp.pop %v2342
  %v2344 = vmul.f32 1.0, %v2343
  %v2345 = vmul.f32 %v2337, 0.0
  %v2346 = vmul.f32 %v2331, %v2338
  %v2347 = vadd.f32 %v2345, %v2346
  %v2348 = vtanh.pop %v2347
  %v2349 = vmul.f32 %v2344, %v2348
  %v2350 = vpack.c.bf16 %v2349, %v2349
  %2351 = vmatprep.subr.bf16.mxu0 %v2205
  %2352 = vmatpush1.bf16.msra.mxu0 %v2204
  %2353 = vmatprep.subr.bf16.mxu0 %v2201
  %2354 = vmatpush1.bf16.msra.mxu0 %v2200
  %2355 = vmatprep.subr.bf16.mxu0 %v2197
  %2356 = vmatpush1.bf16.msra.mxu0 %v2196
  %2357 = vmatprep.subr.bf16.mxu0 %v2193
  %2358 = vmatpush1.bf16.msra.mxu0 %v2192
  %2359 = vmatprep.subr.bf16.mxu0 %v2189
  %2360 = vmatpush1.bf16.msra.mxu0 %v2188
  %2361 = vmatprep.subr.bf16.mxu0 %v2185
  %2362 = vmatpush1.bf16.msra.mxu0 %v2184
  %2363 = vmatprep.subr.bf16.mxu0 %v2181
  %2364 = vmatpush1.bf16.msra.mxu0 %v2180
  %2365 = vmatprep.subr.bf16.mxu0 %v2177
  %2366 = vmatpush1.bf16.msra.mxu0 %v2176
  %2367 = vmatprep.subr.bf16.mxu0 0
  %2368 = vmatpush2.bf16.msra.mxu0 0
  %2369 = vmatprep.subr.bf16.mxu0 0
  %2370 = vmatpush2.bf16.msra.mxu0 0
  %2371 = vmatprep.subr.bf16.mxu0 0
  %2372 = vmatpush2.bf16.msra.mxu0 0
  %2373 = vmatprep.subr.bf16.mxu0 0
  %2374 = vmatpush2.bf16.msra.mxu0 0
  %2375 = vmatprep.subr.bf16.mxu0 0
  %2376 = vmatpush2.bf16.msra.mxu0 0
  %2377 = vmatprep.subr.bf16.mxu0 0
  %2378 = vmatpush2.bf16.msra.mxu0 0
  %2379 = vmatprep.subr.bf16.mxu0 0
  %2380 = vmatpush2.bf16.msra.mxu0 0
  %2381 = vmatprep.subr.bf16.mxu0 0
  %2382 = vmatpush2.bf16.msra.mxu0 0
  %2383 = vmatprep.mubr.bf16.mxu0 0
  %2384 = vmatmul.mubr.bf16.gmra.mxu0 %v2350
  %v2385 = vpop.f32.mrf.mxu0
  %v2386 = vadd.f32 0.0, %v2385
  %v2387 = vpop.f32.mrf.mxu0
  %v2388 = vadd.f32 0.0, %v2387
  %v2389 = vpop.f32.mrf.mxu0
  %v2390 = vpop.f32.mrf.mxu0
  %2391 = vdwg.mxu0
  %2392 = vmatprep.subr.bf16.mxu0 %v2207
  %2393 = vmatpush1.bf16.msra.mxu0 %v2206
  %2394 = vmatprep.subr.bf16.mxu0 %v2203
  %2395 = vmatpush1.bf16.msra.mxu0 %v2202
  %2396 = vmatprep.subr.bf16.mxu0 %v2199
  %2397 = vmatpush1.bf16.msra.mxu0 %v2198
  %2398 = vmatprep.subr.bf16.mxu0 %v2195
  %2399 = vmatpush1.bf16.msra.mxu0 %v2194
  %2400 = vmatprep.subr.bf16.mxu0 %v2191
  %2401 = vmatpush1.bf16.msra.mxu0 %v2190
  %2402 = vmatprep.subr.bf16.mxu0 %v2187
  %2403 = vmatpush1.bf16.msra.mxu0 %v2186
  %2404 = vmatprep.subr.bf16.mxu0 %v2183
  %2405 = vmatpush1.bf16.msra.mxu0 %v2182
  %2406 = vmatprep.subr.bf16.mxu0 %v2179
  %2407 = vmatpush1.bf16.msra.mxu0 %v2178
  %2408 = vmatprep.subr.bf16.mxu0 0
  %2409 = vmatpush2.bf16.msra.mxu0 0
  %2410 = vmatprep.subr.bf16.mxu0 0
  %2411 = vmatpush2.bf16.msra.mxu0 0
  %2412 = vmatprep.subr.bf16.mxu0 0
  %2413 = vmatpush2.bf16.msra.mxu0 0
  %2414 = vmatprep.subr.bf16.mxu0 0
  %2415 = vmatpush2.bf16.msra.mxu0 0
  %2416 = vmatprep.subr.bf16.mxu0 0
  %2417 = vmatpush2.bf16.msra.mxu0 0
  %2418 = vmatprep.subr.bf16.mxu0 0
  %2419 = vmatpush2.bf16.msra.mxu0 0
  %2420 = vmatprep.subr.bf16.mxu0 0
  %2421 = vmatpush2.bf16.msra.mxu0 0
  %2422 = vmatprep.subr.bf16.mxu0 0
  %2423 = vmatpush2.bf16.msra.mxu0 0
  %2424 = vmatprep.mubr.bf16.mxu0 0
  %2425 = vmatmul.mubr.bf16.gmra.mxu0 %v2350
  %v2426 = vpop.f32.mrf.mxu0
  %v2427 = vadd.f32 0.0, %v2426
  %v2428 = vpop.f32.mrf.mxu0
  %v2429 = vadd.f32 0.0, %v2428
  %v2430 = vpop.f32.mrf.mxu0
  %v2431 = vpop.f32.mrf.mxu0
  %2432 = vdwg.mxu0
  %v2433 = vadd.f32 %v2001, %v2386
  %v2434 = vadd.f32 %v2003, %v2388
  %v2435 = vadd.f32 %v2042, %v2427
  %v2436 = vadd.f32 %v2044, %v2429
  %v2437 = vxor.u32 %v2433, 2147483648
  %v2438 = vmul.f32 %v2437, 1.442695
  %v2439 = vpow.pop %v2438
  %v2440 = vadd.f32 %v2439, 1.0
  %v2441 = vrcp.pop %v2440
  %v2442 = vmul.f32 1.0, %v2441
  %v2443 = vxor.u32 %v2434, 2147483648
  %v2444 = vmul.f32 %v2443, 1.442695
  %v2445 = vpow.pop %v2444
  %v2446 = vadd.f32 %v2445, 1.0
  %v2447 = vrcp.pop %v2446
  %v2448 = vmul.f32 1.0, %v2447
  %v2449 = vtanh.pop %v2435
  %v2450 = vxor.u32 %v2436, 2147483648
  %v2451 = vmul.f32 %v2450, 1.442695
  %v2452 = vpow.pop %v2451
  %v2453 = vadd.f32 %v2452, 1.0
  %v2454 = vrcp.pop %v2453
  %v2455 = vmul.f32 1.0, %v2454
  %v2456 = vmul.f32 %v2448, %v2347
  %v2457 = vmul.f32 %v2442, %v2449
  %v2458 = vadd.f32 %v2456, %v2457
  %v2459 = vtanh.pop %v2458
  %v2460 = vmul.f32 %v2455, %v2459
  %v2461 = vpack.c.bf16 %v2460, %v2460
  %2462 = vmatprep.subr.bf16.mxu0 %v2205
  %2463 = vmatpush1.bf16.msra.mxu0 %v2204
  %2464 = vmatprep.subr.bf16.mxu0 %v2201
  %2465 = vmatpush1.bf16.msra.mxu0 %v2200
  %2466 = vmatprep.subr.bf16.mxu0 %v2197
  %2467 = vmatpush1.bf16.msra.mxu0 %v2196
  %2468 = vmatprep.subr.bf16.mxu0 %v2193
  %2469 = vmatpush1.bf16.msra.mxu0 %v2192
  %2470 = vmatprep.subr.bf16.mxu0 %v2189
  %2471 = vmatpush1.bf16.msra.mxu0 %v2188
  %2472 = vmatprep.subr.bf16.mxu0 %v2185
  %2473 = vmatpush1.bf16.msra.mxu0 %v2184
  %2474 = vmatprep.subr.bf16.mxu0 %v2181
  %2475 = vmatpush1.bf16.msra.mxu0 %v2180
  %2476 = vmatprep.subr.bf16.mxu0 %v2177
  %2477 = vmatpush1.bf16.msra.mxu0 %v2176
  %2478 = vmatprep.subr.bf16.mxu0 0
  %2479 = vmatpush2.bf16.msra.mxu0 0
  %2480 = vmatprep.subr.bf16.mxu0 0
  %2481 = vmatpush2.bf16.msra.mxu0 0
  %2482 = vmatprep.subr.bf16.mxu0 0
  %2483 = vmatpush2.bf16.msra.mxu0 0
  %2484 = vmatprep.subr.bf16.mxu0 0
  %2485 = vmatpush2.bf16.msra.mxu0 0
  %2486 = vmatprep.subr.bf16.mxu0 0
  %2487 = vmatpush2.bf16.msra.mxu0 0
  %2488 = vmatprep.subr.bf16.mxu0 0
  %2489 = vmatpush2.bf16.msra.mxu0 0
  %2490 = vmatprep.subr.bf16.mxu0 0
  %2491 = vmatpush2.bf16.msra.mxu0 0
  %2492 = vmatprep.subr.bf16.mxu0 0
  %2493 = vmatpush2.bf16.msra.mxu0 0
  %2494 = vmatprep.mubr.bf16.mxu0 0
  %2495 = vmatmul.mubr.bf16.gmra.mxu0 %v2461
  %v2496 = vpop.f32.mrf.mxu0
  %v2497 = vadd.f32 0.0, %v2496
  %v2498 = vpop.f32.mrf.mxu0
  %v2499 = vadd.f32 0.0, %v2498
  %v2500 = vpop.f32.mrf.mxu0
  %v2501 = vpop.f32.mrf.mxu0
  %2502 = vdwg.mxu0
  %2503 = vmatprep.subr.bf16.mxu0 %v2207
  %2504 = vmatpush1.bf16.msra.mxu0 %v2206
  %2505 = vmatprep.subr.bf16.mxu0 %v2203
  %2506 = vmatpush1.bf16.msra.mxu0 %v2202
  %2507 = vmatprep.subr.bf16.mxu0 %v2199
  %2508 = vmatpush1.bf16.msra.mxu0 %v2198
  %2509 = vmatprep.subr.bf16.mxu0 %v2195
  %2510 = vmatpush1.bf16.msra.mxu0 %v2194
  %2511 = vmatprep.subr.bf16.mxu0 %v2191
  %2512 = vmatpush1.bf16.msra.mxu0 %v2190
  %2513 = vmatprep.subr.bf16.mxu0 %v2187
  %2514 = vmatpush1.bf16.msra.mxu0 %v2186
  %2515 = vmatprep.subr.bf16.mxu0 %v2183
  %2516 = vmatpush1.bf16.msra.mxu0 %v2182
  %2517 = vmatprep.subr.bf16.mxu0 %v2179
  %2518 = vmatpush1.bf16.msra.mxu0 %v2178
  %2519 = vmatprep.subr.bf16.mxu0 0
  %2520 = vmatpush2.bf16.msra.mxu0 0
  %2521 = vmatprep.subr.bf16.mxu0 0
  %2522 = vmatpush2.bf16.msra.mxu0 0
  %2523 = vmatprep.subr.bf16.mxu0 0
  %2524 = vmatpush2.bf16.msra.mxu0 0
  %2525 = vmatprep.subr.bf16.mxu0 0
  %2526 = vmatpush2.bf16.msra.mxu0 0
  %2527 = vmatprep.subr.bf16.mxu0 0
  %2528 = vmatpush2.bf16.msra.mxu0 0
  %2529 = vmatprep.subr.bf16.mxu0 0
  %2530 = vmatpush2.bf16.msra.mxu0 0
  %2531 = vmatprep.subr.bf16.mxu0 0
  %2532 = vmatpush2.bf16.msra.mxu0 0
  %2533 = vmatprep.subr.bf16.mxu0 0
  %2534 = vmatpush2.bf16.msra.mxu0 0
  %2535 = vmatprep.mubr.bf16.mxu0 0
  %2536 = vmatmul.mubr.bf16.gmra.mxu0 %v2461
  %v2537 = vpop.f32.mrf.mxu0
  %v2538 = vadd.f32 0.0, %v2537
  %v2539 = vpop.f32.mrf.mxu0
  %v2540 = vadd.f32 0.0, %v2539
  %v2541 = vpop.f32.mrf.mxu0
  %v2542 = vpop.f32.mrf.mxu0
  %2543 = vdwg.mxu0
  %v2544 = vadd.f32 %v2001, %v2497
  %v2545 = vadd.f32 %v2003, %v2499
  %v2546 = vadd.f32 %v2042, %v2538
  %v2547 = vadd.f32 %v2044, %v2540
  %v2548 = vxor.u32 %v2544, 2147483648
  %v2549 = vmul.f32 %v2548, 1.442695
  %v2550 = vpow.pop %v2549
  %v2551 = vadd.f32 %v2550, 1.0
  %v2552 = vrcp.pop %v2551
  %v2553 = vmul.f32 1.0, %v2552
  %v2554 = vxor.u32 %v2545, 2147483648
  %v2555 = vmul.f32 %v2554, 1.442695
  %v2556 = vpow.pop %v2555
  %v2557 = vadd.f32 %v2556, 1.0
  %v2558 = vrcp.pop %v2557
  %v2559 = vmul.f32 1.0, %v2558
  %v2560 = vtanh.pop %v2546
  %v2561 = vxor.u32 %v2547, 2147483648
  %v2562 = vmul.f32 %v2561, 1.442695
  %v2563 = vpow.pop %v2562
  %v2564 = vadd.f32 %v2563, 1.0
  %v2565 = vrcp.pop %v2564
  %v2566 = vmul.f32 1.0, %v2565
  %v2567 = vmul.f32 %v2559, %v2458
  %v2568 = vmul.f32 %v2553, %v2560
  %v2569 = vadd.f32 %v2567, %v2568
  %v2570 = vtanh.pop %v2569
  %v2571 = vmul.f32 %v2566, %v2570
  %v2572 = vpack.c.bf16 %v2571, %v2571
  %2573 = vmatprep.subr.bf16.mxu0 %v2205
  %2574 = vmatpush1.bf16.msra.mxu0 %v2204
  %2575 = vmatprep.subr.bf16.mxu0 %v2201
  %2576 = vmatpush1.bf16.msra.mxu0 %v2200
  %2577 = vmatprep.subr.bf16.mxu0 %v2197
  %2578 = vmatpush1.bf16.msra.mxu0 %v2196
  %2579 = vmatprep.subr.bf16.mxu0 %v2193
  %2580 = vmatpush1.bf16.msra.mxu0 %v2192
  %2581 = vmatprep.subr.bf16.mxu0 %v2189
  %2582 = vmatpush1.bf16.msra.mxu0 %v2188
  %2583 = vmatprep.subr.bf16.mxu0 %v2185
  %2584 = vmatpush1.bf16.msra.mxu0 %v2184
  %2585 = vmatprep.subr.bf16.mxu0 %v2181
  %2586 = vmatpush1.bf16.msra.mxu0 %v2180
  %2587 = vmatprep.subr.bf16.mxu0 %v2177
  %2588 = vmatpush1.bf16.msra.mxu0 %v2176
  %2589 = vmatprep.subr.bf16.mxu0 0
  %2590 = vmatpush2.bf16.msra.mxu0 0
  %2591 = vmatprep.subr.bf16.mxu0 0
  %2592 = vmatpush2.bf16.msra.mxu0 0
  %2593 = vmatprep.subr.bf16.mxu0 0
  %2594 = vmatpush2.bf16.msra.mxu0 0
  %2595 = vmatprep.subr.bf16.mxu0 0
  %2596 = vmatpush2.bf16.msra.mxu0 0
  %2597 = vmatprep.subr.bf16.mxu0 0
  %2598 = vmatpush2.bf16.msra.mxu0 0
  %2599 = vmatprep.subr.bf16.mxu0 0
  %2600 = vmatpush2.bf16.msra.mxu0 0
  %2601 = vmatprep.subr.bf16.mxu0 0
  %2602 = vmatpush2.bf16.msra.mxu0 0
  %2603 = vmatprep.subr.bf16.mxu0 0
  %2604 = vmatpush2.bf16.msra.mxu0 0
  %2605 = vmatprep.mubr.bf16.mxu0 0
  %2606 = vmatmul.mubr.bf16.gmra.mxu0 %v2572
  %v2607 = vpop.f32.mrf.mxu0
  %v2608 = vadd.f32 0.0, %v2607
  %v2609 = vpop.f32.mrf.mxu0
  %v2610 = vadd.f32 0.0, %v2609
  %v2611 = vpop.f32.mrf.mxu0
  %v2612 = vpop.f32.mrf.mxu0
  %2613 = vdwg.mxu0
  %2614 = vmatprep.subr.bf16.mxu0 %v2207
  %2615 = vmatpush1.bf16.msra.mxu0 %v2206
  %2616 = vmatprep.subr.bf16.mxu0 %v2203
  %2617 = vmatpush1.bf16.msra.mxu0 %v2202
  %2618 = vmatprep.subr.bf16.mxu0 %v2199
  %2619 = vmatpush1.bf16.msra.mxu0 %v2198
  %2620 = vmatprep.subr.bf16.mxu0 %v2195
  %2621 = vmatpush1.bf16.msra.mxu0 %v2194
  %2622 = vmatprep.subr.bf16.mxu0 %v2191
  %2623 = vmatpush1.bf16.msra.mxu0 %v2190
  %2624 = vmatprep.subr.bf16.mxu0 %v2187
  %2625 = vmatpush1.bf16.msra.mxu0 %v2186
  %2626 = vmatprep.subr.bf16.mxu0 %v2183
  %2627 = vmatpush1.bf16.msra.mxu0 %v2182
  %2628 = vmatprep.subr.bf16.mxu0 %v2179
  %2629 = vmatpush1.bf16.msra.mxu0 %v2178
  %2630 = vmatprep.subr.bf16.mxu0 0
  %2631 = vmatpush2.bf16.msra.mxu0 0
  %2632 = vmatprep.subr.bf16.mxu0 0
  %2633 = vmatpush2.bf16.msra.mxu0 0
  %2634 = vmatprep.subr.bf16.mxu0 0
  %2635 = vmatpush2.bf16.msra.mxu0 0
  %2636 = vmatprep.subr.bf16.mxu0 0
  %2637 = vmatpush2.bf16.msra.mxu0 0
  %2638 = vmatprep.subr.bf16.mxu0 0
  %2639 = vmatpush2.bf16.msra.mxu0 0
  %2640 = vmatprep.subr.bf16.mxu0 0
  %2641 = vmatpush2.bf16.msra.mxu0 0
  %2642 = vmatprep.subr.bf16.mxu0 0
  %2643 = vmatpush2.bf16.msra.mxu0 0
  %2644 = vmatprep.subr.bf16.mxu0 0
  %2645 = vmatpush2.bf16.msra.mxu0 0
  %2646 = vmatprep.mubr.bf16.mxu0 0
  %2647 = vmatmul.mubr.bf16.gmra.mxu0 %v2572
  %v2648 = vpop.f32.mrf.mxu0
  %v2649 = vadd.f32 0.0, %v2648
  %v2650 = vpop.f32.mrf.mxu0
  %v2651 = vadd.f32 0.0, %v2650
  %v2652 = vpop.f32.mrf.mxu0
  %v2653 = vpop.f32.mrf.mxu0
  %2654 = vdwg.mxu0
  %v2655 = vadd.f32 %v2001, %v2608
  %v2656 = vadd.f32 %v2003, %v2610
  %v2657 = vadd.f32 %v2042, %v2649
  %v2658 = vadd.f32 %v2044, %v2651
  %v2659 = vxor.u32 %v2655, 2147483648
  %v2660 = vmul.f32 %v2659, 1.442695
  %v2661 = vpow.pop %v2660
  %v2662 = vadd.f32 %v2661, 1.0
  %v2663 = vrcp.pop %v2662
  %v2664 = vmul.f32 1.0, %v2663
  %v2665 = vxor.u32 %v2656, 2147483648
  %v2666 = vmul.f32 %v2665, 1.442695
  %v2667 = vpow.pop %v2666
  %v2668 = vadd.f32 %v2667, 1.0
  %v2669 = vrcp.pop %v2668
  %v2670 = vmul.f32 1.0, %v2669
  %v2671 = vtanh.pop %v2657
  %v2672 = vxor.u32 %v2658, 2147483648
  %v2673 = vmul.f32 %v2672, 1.442695
  %v2674 = vpow.pop %v2673
  %v2675 = vadd.f32 %v2674, 1.0
  %v2676 = vrcp.pop %v2675
  %v2677 = vmul.f32 1.0, %v2676
  %v2678 = vmul.f32 %v2670, %v2569
  %v2679 = vmul.f32 %v2664, %v2671
  %v2680 = vadd.f32 %v2678, %v2679
  %v2681 = vtanh.pop %v2680
  %v2682 = vmul.f32 %v2677, %v2681
  %v2683 = vpack.c.bf16 %v2682, %v2682
  %2684 = vmatprep.subr.bf16.mxu0 %v2205
  %2685 = vmatpush1.bf16.msra.mxu0 %v2204
  %2686 = vmatprep.subr.bf16.mxu0 %v2201
  %2687 = vmatpush1.bf16.msra.mxu0 %v2200
  %2688 = vmatprep.subr.bf16.mxu0 %v2197
  %2689 = vmatpush1.bf16.msra.mxu0 %v2196
  %2690 = vmatprep.subr.bf16.mxu0 %v2193
  %2691 = vmatpush1.bf16.msra.mxu0 %v2192
  %2692 = vmatprep.subr.bf16.mxu0 %v2189
  %2693 = vmatpush1.bf16.msra.mxu0 %v2188
  %2694 = vmatprep.subr.bf16.mxu0 %v2185
  %2695 = vmatpush1.bf16.msra.mxu0 %v2184
  %2696 = vmatprep.subr.bf16.mxu0 %v2181
  %2697 = vmatpush1.bf16.msra.mxu0 %v2180
  %2698 = vmatprep.subr.bf16.mxu0 %v2177
  %2699 = vmatpush1.bf16.msra.mxu0 %v2176
  %2700 = vmatprep.subr.bf16.mxu0 0
  %2701 = vmatpush2.bf16.msra.mxu0 0
  %2702 = vmatprep.subr.bf16.mxu0 0
  %2703 = vmatpush2.bf16.msra.mxu0 0
  %2704 = vmatprep.subr.bf16.mxu0 0
  %2705 = vmatpush2.bf16.msra.mxu0 0
  %2706 = vmatprep.subr.bf16.mxu0 0
  %2707 = vmatpush2.bf16.msra.mxu0 0
  %2708 = vmatprep.subr.bf16.mxu0 0
  %2709 = vmatpush2.bf16.msra.mxu0 0
  %2710 = vmatprep.subr.bf16.mxu0 0
  %2711 = vmatpush2.bf16.msra.mxu0 0
  %2712 = vmatprep.subr.bf16.mxu0 0
  %2713 = vmatpush2.bf16.msra.mxu0 0
  %2714 = vmatprep.subr.bf16.mxu0 0
  %2715 = vmatpush2.bf16.msra.mxu0 0
  %2716 = vmatprep.mubr.bf16.mxu0 0
  %2717 = vmatmul.mubr.bf16.gmra.mxu0 %v2683
  %v2718 = vpop.f32.mrf.mxu0
  %v2719 = vadd.f32 0.0, %v2718
  %v2720 = vpop.f32.mrf.mxu0
  %v2721 = vadd.f32 0.0, %v2720
  %v2722 = vpop.f32.mrf.mxu0
  %v2723 = vpop.f32.mrf.mxu0
  %2724 = vdwg.mxu0
  %2725 = vmatprep.subr.bf16.mxu0 %v2207
  %2726 = vmatpush1.bf16.msra.mxu0 %v2206
  %2727 = vmatprep.subr.bf16.mxu0 %v2203
  %2728 = vmatpush1.bf16.msra.mxu0 %v2202
  %2729 = vmatprep.subr.bf16.mxu0 %v2199
  %2730 = vmatpush1.bf16.msra.mxu0 %v2198
  %2731 = vmatprep.subr.bf16.mxu0 %v2195
  %2732 = vmatpush1.bf16.msra.mxu0 %v2194
  %2733 = vmatprep.subr.bf16.mxu0 %v2191
  %2734 = vmatpush1.bf16.msra.mxu0 %v2190
  %2735 = vmatprep.subr.bf16.mxu0 %v2187
  %2736 = vmatpush1.bf16.msra.mxu0 %v2186
  %2737 = vmatprep.subr.bf16.mxu0 %v2183
  %2738 = vmatpush1.bf16.msra.mxu0 %v2182
  %2739 = vmatprep.subr.bf16.mxu0 %v2179
  %2740 = vmatpush1.bf16.msra.mxu0 %v2178
  %2741 = vmatprep.subr.bf16.mxu0 0
  %2742 = vmatpush2.bf16.msra.mxu0 0
  %2743 = vmatprep.subr.bf16.mxu0 0
  %2744 = vmatpush2.bf16.msra.mxu0 0
  %2745 = vmatprep.subr.bf16.mxu0 0
  %2746 = vmatpush2.bf16.msra.mxu0 0
  %2747 = vmatprep.subr.bf16.mxu0 0
  %2748 = vmatpush2.bf16.msra.mxu0 0
  %2749 = vmatprep.subr.bf16.mxu0 0
  %2750 = vmatpush2.bf16.msra.mxu0 0
  %2751 = vmatprep.subr.bf16.mxu0 0
  %2752 = vmatpush2.bf16.msra.mxu0 0
  %2753 = vmatprep.subr.bf16.mxu0 0
  %2754 = vmatpush2.bf16.msra.mxu0 0
  %2755 = vmatprep.subr.bf16.mxu0 0
  %2756 = vmatpush2.bf16.msra.mxu0 0
  %2757 = vmatprep.mubr.bf16.mxu0 0
  %2758 = vmatmul.mubr.bf16.gmra.mxu0 %v2683
  %v2759 = vpop.f32.mrf.mxu0
  %v2760 = vadd.f32 0.0, %v2759
  %v2761 = vpop.f32.mrf.mxu0
  %v2762 = vadd.f32 0.0, %v2761
  %v2763 = vpop.f32.mrf.mxu0
  %v2764 = vpop.f32.mrf.mxu0
  %2765 = vdwg.mxu0
  %v2766 = vadd.f32 %v2001, %v2719
  %v2767 = vadd.f32 %v2003, %v2721
  %v2768 = vadd.f32 %v2042, %v2760
  %v2769 = vadd.f32 %v2044, %v2762
  %v2770 = vxor.u32 %v2766, 2147483648
  %v2771 = vmul.f32 %v2770, 1.442695
  %v2772 = vpow.pop %v2771
  %v2773 = vadd.f32 %v2772, 1.0
  %v2774 = vrcp.pop %v2773
  %v2775 = vmul.f32 1.0, %v2774
  %v2776 = vxor.u32 %v2767, 2147483648
  %v2777 = vmul.f32 %v2776, 1.442695
  %v2778 = vpow.pop %v2777
  %v2779 = vadd.f32 %v2778, 1.0
  %v2780 = vrcp.pop %v2779
  %v2781 = vmul.f32 1.0, %v2780
  %v2782 = vtanh.pop %v2768
  %v2783 = vxor.u32 %v2769, 2147483648
  %v2784 = vmul.f32 %v2783, 1.442695
  %v2785 = vpow.pop %v2784
  %v2786 = vadd.f32 %v2785, 1.0
  %v2787 = vrcp.pop %v2786
  %v2788 = vmul.f32 1.0, %v2787
  %v2789 = vmul.f32 %v2781, %v2680
  %v2790 = vmul.f32 %v2775, %v2782
  %v2791 = vadd.f32 %v2789, %v2790
  %v2792 = vtanh.pop %v2791
  %v2793 = vmul.f32 %v2788, %v2792
  %v2794 = vpack.c.bf16 %v2793, %v2793
  %2795 = vmatprep.subr.bf16.mxu0 %v2205
  %2796 = vmatpush1.bf16.msra.mxu0 %v2204
  %2797 = vmatprep.subr.bf16.mxu0 %v2201
  %2798 = vmatpush1.bf16.msra.mxu0 %v2200
  %2799 = vmatprep.subr.bf16.mxu0 %v2197
  %2800 = vmatpush1.bf16.msra.mxu0 %v2196
  %2801 = vmatprep.subr.bf16.mxu0 %v2193
  %2802 = vmatpush1.bf16.msra.mxu0 %v2192
  %2803 = vmatprep.subr.bf16.mxu0 %v2189
  %2804 = vmatpush1.bf16.msra.mxu0 %v2188
  %2805 = vmatprep.subr.bf16.mxu0 %v2185
  %2806 = vmatpush1.bf16.msra.mxu0 %v2184
  %2807 = vmatprep.subr.bf16.mxu0 %v2181
  %2808 = vmatpush1.bf16.msra.mxu0 %v2180
  %2809 = vmatprep.subr.bf16.mxu0 %v2177
  %2810 = vmatpush1.bf16.msra.mxu0 %v2176
  %2811 = vmatprep.subr.bf16.mxu0 0
  %2812 = vmatpush2.bf16.msra.mxu0 0
  %2813 = vmatprep.subr.bf16.mxu0 0
  %2814 = vmatpush2.bf16.msra.mxu0 0
  %2815 = vmatprep.subr.bf16.mxu0 0
  %2816 = vmatpush2.bf16.msra.mxu0 0
  %2817 = vmatprep.subr.bf16.mxu0 0
  %2818 = vmatpush2.bf16.msra.mxu0 0
  %2819 = vmatprep.subr.bf16.mxu0 0
  %2820 = vmatpush2.bf16.msra.mxu0 0
  %2821 = vmatprep.subr.bf16.mxu0 0
  %2822 = vmatpush2.bf16.msra.mxu0 0
  %2823 = vmatprep.subr.bf16.mxu0 0
  %2824 = vmatpush2.bf16.msra.mxu0 0
  %2825 = vmatprep.subr.bf16.mxu0 0
  %2826 = vmatpush2.bf16.msra.mxu0 0
  %2827 = vmatprep.mubr.bf16.mxu0 0
  %2828 = vmatmul.mubr.bf16.gmra.mxu0 %v2794
  %v2829 = vpop.f32.mrf.mxu0
  %v2830 = vadd.f32 0.0, %v2829
  %v2831 = vpop.f32.mrf.mxu0
  %v2832 = vadd.f32 0.0, %v2831
  %v2833 = vpop.f32.mrf.mxu0
  %v2834 = vpop.f32.mrf.mxu0
  %2835 = vdwg.mxu0
  %2836 = vmatprep.subr.bf16.mxu0 %v2207
  %2837 = vmatpush1.bf16.msra.mxu0 %v2206
  %2838 = vmatprep.subr.bf16.mxu0 %v2203
  %2839 = vmatpush1.bf16.msra.mxu0 %v2202
  %2840 = vmatprep.subr.bf16.mxu0 %v2199
  %2841 = vmatpush1.bf16.msra.mxu0 %v2198
  %2842 = vmatprep.subr.bf16.mxu0 %v2195
  %2843 = vmatpush1.bf16.msra.mxu0 %v2194
  %2844 = vmatprep.subr.bf16.mxu0 %v2191
  %2845 = vmatpush1.bf16.msra.mxu0 %v2190
  %2846 = vmatprep.subr.bf16.mxu0 %v2187
  %2847 = vmatpush1.bf16.msra.mxu0 %v2186
  %2848 = vmatprep.subr.bf16.mxu0 %v2183
  %2849 = vmatpush1.bf16.msra.mxu0 %v2182
  %2850 = vmatprep.subr.bf16.mxu0 %v2179
  %2851 = vmatpush1.bf16.msra.mxu0 %v2178
  %2852 = vmatprep.subr.bf16.mxu0 0
  %2853 = vmatpush2.bf16.msra.mxu0 0
  %2854 = vmatprep.subr.bf16.mxu0 0
  %2855 = vmatpush2.bf16.msra.mxu0 0
  %2856 = vmatprep.subr.bf16.mxu0 0
  %2857 = vmatpush2.bf16.msra.mxu0 0
  %2858 = vmatprep.subr.bf16.mxu0 0
  %2859 = vmatpush2.bf16.msra.mxu0 0
  %2860 = vmatprep.subr.bf16.mxu0 0
  %2861 = vmatpush2.bf16.msra.mxu0 0
  %2862 = vmatprep.subr.bf16.mxu0 0
  %2863 = vmatpush2.bf16.msra.mxu0 0
  %2864 = vmatprep.subr.bf16.mxu0 0
  %2865 = vmatpush2.bf16.msra.mxu0 0
  %2866 = vmatprep.subr.bf16.mxu0 0
  %2867 = vmatpush2.bf16.msra.mxu0 0
  %2868 = vmatprep.mubr.bf16.mxu0 0
  %2869 = vmatmul.mubr.bf16.gmra.mxu0 %v2794
  %v2870 = vpop.f32.mrf.mxu0
  %v2871 = vadd.f32 0.0, %v2870
  %v2872 = vpop.f32.mrf.mxu0
  %v2873 = vadd.f32 0.0, %v2872
  %v2874 = vpop.f32.mrf.mxu0
  %v2875 = vpop.f32.mrf.mxu0
  %2876 = vdwg.mxu0
  %v2877 = vadd.f32 %v2001, %v2830
  %v2878 = vadd.f32 %v2003, %v2832
  %v2879 = vadd.f32 %v2042, %v2871
  %v2880 = vadd.f32 %v2044, %v2873
  %v2881 = vxor.u32 %v2877, 2147483648
  %v2882 = vmul.f32 %v2881, 1.442695
  %v2883 = vpow.pop %v2882
  %v2884 = vadd.f32 %v2883, 1.0
  %v2885 = vrcp.pop %v2884
  %v2886 = vmul.f32 1.0, %v2885
  %v2887 = vxor.u32 %v2878, 2147483648
  %v2888 = vmul.f32 %v2887, 1.442695
  %v2889 = vpow.pop %v2888
  %v2890 = vadd.f32 %v2889, 1.0
  %v2891 = vrcp.pop %v2890
  %v2892 = vmul.f32 1.0, %v2891
  %v2893 = vtanh.pop %v2879
  %v2894 = vxor.u32 %v2880, 2147483648
  %v2895 = vmul.f32 %v2894, 1.442695
  %v2896 = vpow.pop %v2895
  %v2897 = vadd.f32 %v2896, 1.0
  %v2898 = vrcp.pop %v2897
  %v2899 = vmul.f32 1.0, %v2898
  %v2900 = vmul.f32 %v2892, %v2791
  %v2901 = vmul.f32 %v2886, %v2893
  %v2902 = vadd.f32 %v2900, %v2901
  %v2903 = vtanh.pop %v2902
  %v2904 = vmul.f32 %v2899, %v2903
  %v2905 = vpack.c.bf16 %v2904, %v2904
  %2906 = vmatprep.subr.bf16.mxu0 %v2205
  %2907 = vmatpush1.bf16.msra.mxu0 %v2204
  %2908 = vmatprep.subr.bf16.mxu0 %v2201
  %2909 = vmatpush1.bf16.msra.mxu0 %v2200
  %2910 = vmatprep.subr.bf16.mxu0 %v2197
  %2911 = vmatpush1.bf16.msra.mxu0 %v2196
  %2912 = vmatprep.subr.bf16.mxu0 %v2193
  %2913 = vmatpush1.bf16.msra.mxu0 %v2192
  %2914 = vmatprep.subr.bf16.mxu0 %v2189
  %2915 = vmatpush1.bf16.msra.mxu0 %v2188
  %2916 = vmatprep.subr.bf16.mxu0 %v2185
  %2917 = vmatpush1.bf16.msra.mxu0 %v2184
  %2918 = vmatprep.subr.bf16.mxu0 %v2181
  %2919 = vmatpush1.bf16.msra.mxu0 %v2180
  %2920 = vmatprep.subr.bf16.mxu0 %v2177
  %2921 = vmatpush1.bf16.msra.mxu0 %v2176
  %2922 = vmatprep.subr.bf16.mxu0 0
  %2923 = vmatpush2.bf16.msra.mxu0 0
  %2924 = vmatprep.subr.bf16.mxu0 0
  %2925 = vmatpush2.bf16.msra.mxu0 0
  %2926 = vmatprep.subr.bf16.mxu0 0
  %2927 = vmatpush2.bf16.msra.mxu0 0
  %2928 = vmatprep.subr.bf16.mxu0 0
  %2929 = vmatpush2.bf16.msra.mxu0 0
  %2930 = vmatprep.subr.bf16.mxu0 0
  %2931 = vmatpush2.bf16.msra.mxu0 0
  %2932 = vmatprep.subr.bf16.mxu0 0
  %2933 = vmatpush2.bf16.msra.mxu0 0
  %2934 = vmatprep.subr.bf16.mxu0 0
  %2935 = vmatpush2.bf16.msra.mxu0 0
  %2936 = vmatprep.subr.bf16.mxu0 0
  %2937 = vmatpush2.bf16.msra.mxu0 0
  %2938 = vmatprep.mubr.bf16.mxu0 0
  %2939 = vmatmul.mubr.bf16.gmra.mxu0 %v2905
  %v2940 = vpop.f32.mrf.mxu0
  %v2941 = vadd.f32 0.0, %v2940
  %v2942 = vpop.f32.mrf.mxu0
  %v2943 = vadd.f32 0.0, %v2942
  %v2944 = vpop.f32.mrf.mxu0
  %v2945 = vpop.f32.mrf.mxu0
  %2946 = vdwg.mxu0
  %2947 = vmatprep.subr.bf16.mxu0 %v2207
  %2948 = vmatpush1.bf16.msra.mxu0 %v2206
  %2949 = vmatprep.subr.bf16.mxu0 %v2203
  %2950 = vmatpush1.bf16.msra.mxu0 %v2202
  %2951 = vmatprep.subr.bf16.mxu0 %v2199
  %2952 = vmatpush1.bf16.msra.mxu0 %v2198
  %2953 = vmatprep.subr.bf16.mxu0 %v2195
  %2954 = vmatpush1.bf16.msra.mxu0 %v2194
  %2955 = vmatprep.subr.bf16.mxu0 %v2191
  %2956 = vmatpush1.bf16.msra.mxu0 %v2190
  %2957 = vmatprep.subr.bf16.mxu0 %v2187
  %2958 = vmatpush1.bf16.msra.mxu0 %v2186
  %2959 = vmatprep.subr.bf16.mxu0 %v2183
  %2960 = vmatpush1.bf16.msra.mxu0 %v2182
  %2961 = vmatprep.subr.bf16.mxu0 %v2179
  %2962 = vmatpush1.bf16.msra.mxu0 %v2178
  %2963 = vmatprep.subr.bf16.mxu0 0
  %2964 = vmatpush2.bf16.msra.mxu0 0
  %2965 = vmatprep.subr.bf16.mxu0 0
  %2966 = vmatpush2.bf16.msra.mxu0 0
  %2967 = vmatprep.subr.bf16.mxu0 0
  %2968 = vmatpush2.bf16.msra.mxu0 0
  %2969 = vmatprep.subr.bf16.mxu0 0
  %2970 = vmatpush2.bf16.msra.mxu0 0
  %2971 = vmatprep.subr.bf16.mxu0 0
  %2972 = vmatpush2.bf16.msra.mxu0 0
  %2973 = vmatprep.subr.bf16.mxu0 0
  %2974 = vmatpush2.bf16.msra.mxu0 0
  %2975 = vmatprep.subr.bf16.mxu0 0
  %2976 = vmatpush2.bf16.msra.mxu0 0
  %2977 = vmatprep.subr.bf16.mxu0 0
  %2978 = vmatpush2.bf16.msra.mxu0 0
  %2979 = vmatprep.mubr.bf16.mxu0 0
  %2980 = vmatmul.mubr.bf16.gmra.mxu0 %v2905
  %v2981 = vpop.f32.mrf.mxu0
  %v2982 = vadd.f32 0.0, %v2981
  %v2983 = vpop.f32.mrf.mxu0
  %v2984 = vadd.f32 0.0, %v2983
  %v2985 = vpop.f32.mrf.mxu0
  %v2986 = vpop.f32.mrf.mxu0
  %2987 = vdwg.mxu0
  %v2988 = vadd.f32 %v2001, %v2941
  %v2989 = vadd.f32 %v2003, %v2943
  %v2990 = vadd.f32 %v2042, %v2982
  %v2991 = vadd.f32 %v2044, %v2984
  %v2992 = vxor.u32 %v2988, 2147483648
  %v2993 = vmul.f32 %v2992, 1.442695
  %v2994 = vpow.pop %v2993
  %v2995 = vadd.f32 %v2994, 1.0
  %v2996 = vrcp.pop %v2995
  %v2997 = vmul.f32 1.0, %v2996
  %v2998 = vxor.u32 %v2989, 2147483648
  %v2999 = vmul.f32 %v2998, 1.442695
  %v3000 = vpow.pop %v2999
  %v3001 = vadd.f32 %v3000, 1.0
  %v3002 = vrcp.pop %v3001
  %v3003 = vmul.f32 1.0, %v3002
  %v3004 = vtanh.pop %v2990
  %v3005 = vxor.u32 %v2991, 2147483648
  %v3006 = vmul.f32 %v3005, 1.442695
  %v3007 = vpow.pop %v3006
  %v3008 = vadd.f32 %v3007, 1.0
  %v3009 = vrcp.pop %v3008
  %v3010 = vmul.f32 1.0, %v3009
  %v3011 = vmul.f32 %v3003, %v2902
  %v3012 = vmul.f32 %v2997, %v3004
  %v3013 = vadd.f32 %v3011, %v3012
  %v3014 = vtanh.pop %v3013
  %v3015 = vmul.f32 %v3010, %v3014
  %v3016 = vpack.c.bf16 %v3015, %v3015
  %3017 = vmatprep.subr.bf16.mxu0 %v2205
  %3018 = vmatpush1.bf16.msra.mxu0 %v2204
  %3019 = vmatprep.subr.bf16.mxu0 %v2201
  %3020 = vmatpush1.bf16.msra.mxu0 %v2200
  %3021 = vmatprep.subr.bf16.mxu0 %v2197
  %3022 = vmatpush1.bf16.msra.mxu0 %v2196
  %3023 = vmatprep.subr.bf16.mxu0 %v2193
  %3024 = vmatpush1.bf16.msra.mxu0 %v2192
  %3025 = vmatprep.subr.bf16.mxu0 %v2189
  %3026 = vmatpush1.bf16.msra.mxu0 %v2188
  %3027 = vmatprep.subr.bf16.mxu0 %v2185
  %3028 = vmatpush1.bf16.msra.mxu0 %v2184
  %3029 = vmatprep.subr.bf16.mxu0 %v2181
  %3030 = vmatpush1.bf16.msra.mxu0 %v2180
  %3031 = vmatprep.subr.bf16.mxu0 %v2177
  %3032 = vmatpush1.bf16.msra.mxu0 %v2176
  %3033 = vmatprep.subr.bf16.mxu0 0
  %3034 = vmatpush2.bf16.msra.mxu0 0
  %3035 = vmatprep.subr.bf16.mxu0 0
  %3036 = vmatpush2.bf16.msra.mxu0 0
  %3037 = vmatprep.subr.bf16.mxu0 0
  %3038 = vmatpush2.bf16.msra.mxu0 0
  %3039 = vmatprep.subr.bf16.mxu0 0
  %3040 = vmatpush2.bf16.msra.mxu0 0
  %3041 = vmatprep.subr.bf16.mxu0 0
  %3042 = vmatpush2.bf16.msra.mxu0 0
  %3043 = vmatprep.subr.bf16.mxu0 0
  %3044 = vmatpush2.bf16.msra.mxu0 0
  %3045 = vmatprep.subr.bf16.mxu0 0
  %3046 = vmatpush2.bf16.msra.mxu0 0
  %3047 = vmatprep.subr.bf16.mxu0 0
  %3048 = vmatpush2.bf16.msra.mxu0 0
  %3049 = vmatprep.mubr.bf16.mxu0 0
  %3050 = vmatmul.mubr.bf16.gmra.mxu0 %v3016
  %v3051 = vpop.f32.mrf.mxu0
  %v3052 = vadd.f32 0.0, %v3051
  %v3053 = vpop.f32.mrf.mxu0
  %v3054 = vadd.f32 0.0, %v3053
  %v3055 = vpop.f32.mrf.mxu0
  %v3056 = vpop.f32.mrf.mxu0
  %3057 = vdwg.mxu0
  %3058 = vmatprep.subr.bf16.mxu0 %v2207
  %3059 = vmatpush1.bf16.msra.mxu0 %v2206
  %3060 = vmatprep.subr.bf16.mxu0 %v2203
  %3061 = vmatpush1.bf16.msra.mxu0 %v2202
  %3062 = vmatprep.subr.bf16.mxu0 %v2199
  %3063 = vmatpush1.bf16.msra.mxu0 %v2198
  %3064 = vmatprep.subr.bf16.mxu0 %v2195
  %3065 = vmatpush1.bf16.msra.mxu0 %v2194
  %3066 = vmatprep.subr.bf16.mxu0 %v2191
  %3067 = vmatpush1.bf16.msra.mxu0 %v2190
  %3068 = vmatprep.subr.bf16.mxu0 %v2187
  %3069 = vmatpush1.bf16.msra.mxu0 %v2186
  %3070 = vmatprep.subr.bf16.mxu0 %v2183
  %3071 = vmatpush1.bf16.msra.mxu0 %v2182
  %3072 = vmatprep.subr.bf16.mxu0 %v2179
  %3073 = vmatpush1.bf16.msra.mxu0 %v2178
  %3074 = vmatprep.subr.bf16.mxu0 0
  %3075 = vmatpush2.bf16.msra.mxu0 0
  %3076 = vmatprep.subr.bf16.mxu0 0
  %3077 = vmatpush2.bf16.msra.mxu0 0
  %3078 = vmatprep.subr.bf16.mxu0 0
  %3079 = vmatpush2.bf16.msra.mxu0 0
  %3080 = vmatprep.subr.bf16.mxu0 0
  %3081 = vmatpush2.bf16.msra.mxu0 0
  %3082 = vmatprep.subr.bf16.mxu0 0
  %3083 = vmatpush2.bf16.msra.mxu0 0
  %3084 = vmatprep.subr.bf16.mxu0 0
  %3085 = vmatpush2.bf16.msra.mxu0 0
  %3086 = vmatprep.subr.bf16.mxu0 0
  %3087 = vmatpush2.bf16.msra.mxu0 0
  %3088 = vmatprep.subr.bf16.mxu0 0
  %3089 = vmatpush2.bf16.msra.mxu0 0
  %3090 = vmatprep.mubr.bf16.mxu0 0
  %3091 = vmatmul.mubr.bf16.gmra.mxu0 %v3016
  %v3092 = vpop.f32.mrf.mxu0
  %v3093 = vadd.f32 0.0, %v3092
  %v3094 = vpop.f32.mrf.mxu0
  %v3095 = vadd.f32 0.0, %v3094
  %v3096 = vpop.f32.mrf.mxu0
  %v3097 = vpop.f32.mrf.mxu0
  %3098 = vdwg.mxu0
  %v3099 = vadd.f32 %v2001, %v3052
  %v3100 = vadd.f32 %v2003, %v3054
  %v3101 = vadd.f32 %v2042, %v3093
  %v3102 = vadd.f32 %v2044, %v3095
  %v3103 = vxor.u32 %v3099, 2147483648
  %v3104 = vmul.f32 %v3103, 1.442695
  %v3105 = vpow.pop %v3104
  %v3106 = vadd.f32 %v3105, 1.0
  %v3107 = vrcp.pop %v3106
  %v3108 = vmul.f32 1.0, %v3107
  %v3109 = vxor.u32 %v3100, 2147483648
  %v3110 = vmul.f32 %v3109, 1.442695
  %v3111 = vpow.pop %v3110
  %v3112 = vadd.f32 %v3111, 1.0
  %v3113 = vrcp.pop %v3112
  %v3114 = vmul.f32 1.0, %v3113
  %v3115 = vtanh.pop %v3101
  %v3116 = vxor.u32 %v3102, 2147483648
  %v3117 = vmul.f32 %v3116, 1.442695
  %v3118 = vpow.pop %v3117
  %v3119 = vadd.f32 %v3118, 1.0
  %v3120 = vrcp.pop %v3119
  %v3121 = vmul.f32 1.0, %v3120
  %v3122 = vmul.f32 %v3114, %v3013
  %v3123 = vmul.f32 %v3108, %v3115
  %v3124 = vadd.f32 %v3122, %v3123
  %v3125 = vtanh.pop %v3124
  %v3126 = vmul.f32 %v3121, %v3125
  %v3127 = vpack.c.bf16 %v2460, %v2349
  %v3128 = vpack.c.bf16 %v2682, %v2571
  %v3129 = vpack.c.bf16 %v2904, %v2793
  %v3130 = vpack.c.bf16 %v3126, %v3015
  %v3131 = vld [vmem:[%s2 + $0x4c] sm:$0xf]
  %v3132 = vld [vmem:[%s2 + $0x9c] sm:$0xf]
  %v3133 = vld [vmem:[%s2 + $0xec] sm:$0xf]
  %v3134 = vld [vmem:[%s2 + $0x13c] sm:$0xf]
  %v3135 = vld [vmem:[%s2 + $0x18c] sm:$0xf]
  %v3136 = vld [vmem:[%s2 + $0x1dc] sm:$0xf]
  %v3137 = vld [vmem:[%s2 + $0x22c] sm:$0xf]
  %v3138 = vld [vmem:[%s2 + $0x27c] sm:$0xf]
  %v3139 = vld [vmem:[%s2 + $0x2cc] sm:$0xf]
  %v3140 = vld [vmem:[%s2 + $0x31c] sm:$0xf]
  %v3141 = vld [vmem:[%s2 + $0x36c] sm:$0xf]
  %v3142 = vld [vmem:[%s2 + $0x3bc] sm:$0xf]
  %v3143 = vld [vmem:[%s2 + $0x40c] sm:$0xf]
  %v3144 = vld [vmem:[%s2 + $0x45c] sm:$0xf]
  %v3145 = vld [vmem:[%s2 + $0x4ac] sm:$0xf]
  %v3146 = vld [vmem:[%s2 + $0x4fc] sm:$0xf]
  %v3147 = vld [vmem:[%s3 + $0xb] sm:$0x1]
  %v3149 = vlaneseq
  %v3150 = vshrl.u32 %v3149, 7
  %v3151 = vsub.s32 0, %v3150
  %v3152 = vrot.slane %v3147, %v3151
  %v3170 = vunpack.c.l.b16 %v3131
  %v3171 = vunpack.c.l.b16 %v3132
  %v3172 = vunpack.c.l.b16 %v3133
  %v3173 = vunpack.c.l.b16 %v3134
  %v3174 = vunpack.c.l.b16 %v3135
  %v3175 = vunpack.c.l.b16 %v3136
  %v3176 = vunpack.c.l.b16 %v3137
  %v3177 = vunpack.c.l.b16 %v3138
  %v3178 = vunpack.c.l.b16 %v3139
  %v3179 = vunpack.c.l.b16 %v3140
  %v3180 = vunpack.c.l.b16 %v3141
  %v3181 = vunpack.c.l.b16 %v3142
  %v3182 = vunpack.c.l.b16 %v3143
  %v3183 = vunpack.c.l.b16 %v3144
  %v3184 = vunpack.c.l.b16 %v3145
  %v3185 = vunpack.c.l.b16 %v3146
  %v3186 = vpack.c.b16 %v3171, %v3170
  %v3187 = vpack.c.b16 %v3173, %v3172
  %v3188 = vpack.c.b16 %v3175, %v3174
  %v3189 = vpack.c.b16 %v3177, %v3176
  %v3190 = vpack.c.b16 %v3179, %v3178
  %v3191 = vpack.c.b16 %v3181, %v3180
  %v3192 = vpack.c.b16 %v3183, %v3182
  %v3193 = vpack.c.b16 %v3185, %v3184
  %3202 = vmatprep.subr.bf16.mxu0 0
  %3203 = vmatpush1.bf16.msra.mxu0 %v3193
  %3204 = vmatprep.subr.bf16.mxu0 0
  %3205 = vmatpush1.bf16.msra.mxu0 %v3192
  %3206 = vmatprep.subr.bf16.mxu0 0
  %3207 = vmatpush1.bf16.msra.mxu0 %v3191
  %3208 = vmatprep.subr.bf16.mxu0 0
  %3209 = vmatpush1.bf16.msra.mxu0 %v3190
  %3210 = vmatprep.subr.bf16.mxu0 0
  %3211 = vmatpush1.bf16.msra.mxu0 %v3189
  %3212 = vmatprep.subr.bf16.mxu0 0
  %3213 = vmatpush1.bf16.msra.mxu0 %v3188
  %3214 = vmatprep.subr.bf16.mxu0 0
  %3215 = vmatpush1.bf16.msra.mxu0 %v3187
  %3216 = vmatprep.subr.bf16.mxu0 0
  %3217 = vmatpush1.bf16.msra.mxu0 %v3186
  %3218 = vmatprep.subr.bf16.mxu0 0
  %3219 = vmatpush2.bf16.msra.mxu0 0
  %3220 = vmatprep.subr.bf16.mxu0 0
  %3221 = vmatpush2.bf16.msra.mxu0 0
  %3222 = vmatprep.subr.bf16.mxu0 0
  %3223 = vmatpush2.bf16.msra.mxu0 0
  %3224 = vmatprep.subr.bf16.mxu0 0
  %3225 = vmatpush2.bf16.msra.mxu0 0
  %3226 = vmatprep.subr.bf16.mxu0 0
  %3227 = vmatpush2.bf16.msra.mxu0 0
  %3228 = vmatprep.subr.bf16.mxu0 0
  %3229 = vmatpush2.bf16.msra.mxu0 0
  %3230 = vmatprep.subr.bf16.mxu0 0
  %3231 = vmatpush2.bf16.msra.mxu0 0
  %3232 = vmatprep.subr.bf16.mxu0 0
  %3233 = vmatpush2.bf16.msra.mxu0 0
  %3234 = vmatprep.mubr.bf16.mxu0 0
  %3235 = vmatmul.mubr.bf16.gmra.mxu0 %v3127
  %v3236 = vpop.f32.mrf.mxu0
  %v3237 = vadd.f32 %v3152, %v3236
  %v3238 = vpop.f32.mrf.mxu0
  %v3239 = vpop.f32.mrf.mxu0
  %v3240 = vadd.f32 %v3152, %v3239
  %v3241 = vpop.f32.mrf.mxu0
  %3242 = vmatprep.mubr.bf16.mxu0 0
  %3243 = vmatmul.mubr.bf16.gmra.mxu0 %v3128
  %v3244 = vpop.f32.mrf.mxu0
  %v3245 = vadd.f32 %v3152, %v3244
  %v3246 = vpop.f32.mrf.mxu0
  %v3247 = vpop.f32.mrf.mxu0
  %v3248 = vadd.f32 %v3152, %v3247
  %v3249 = vpop.f32.mrf.mxu0
  %3250 = vmatprep.mubr.bf16.mxu0 0
  %3251 = vmatmul.mubr.bf16.gmra.mxu0 %v3129
  %v3252 = vpop.f32.mrf.mxu0
  %v3253 = vadd.f32 %v3152, %v3252
  %v3254 = vpop.f32.mrf.mxu0
  %v3255 = vpop.f32.mrf.mxu0
  %v3256 = vadd.f32 %v3152, %v3255
  %v3257 = vpop.f32.mrf.mxu0
  %3258 = vmatprep.mubr.bf16.mxu0 0
  %3259 = vmatmul.mubr.bf16.gmra.mxu0 %v3130
  %v3260 = vpop.f32.mrf.mxu0
  %v3261 = vadd.f32 %v3152, %v3260
  %v3262 = vpop.f32.mrf.mxu0
  %v3263 = vpop.f32.mrf.mxu0
  %v3264 = vadd.f32 %v3152, %v3263
  %v3265 = vpop.f32.mrf.mxu0
  %3266 = vdwg.mxu0
  %3267 = vst [vmem:[%s4] sm:$0xff] %v3237
  %3268 = vst [vmem:[%s4 + $0x8] sm:$0xff] %v3240
  %3269 = vst [vmem:[%s4 + $0x10] sm:$0xff] %v3245
  %3270 = vst [vmem:[%s4 + $0x18] sm:$0xff] %v3248
  %3271 = vst [vmem:[%s4 + $0x20] sm:$0xff] %v3253
  %3272 = vst [vmem:[%s4 + $0x28] sm:$0xff] %v3256
  %3273 = vst [vmem:[%s4 + $0x30] sm:$0xff] %v3261
  %3274 = vst [vmem:[%s4 + $0x38] sm:$0xff] %v3264
  // Predicated region
  $region18: #{vae_forward.1} parent=0 // pred_check
    _
  $region19: #{vae_forward.1} parent=0 // pred_check_branch
    %3276 = sbr.rel (0) target = $region21
  $region20: #{vae_forward.1} parent=0 // pred_region
    _
  $region21: #{vae_forward.1} parent=0 // pred_fallthru
    _
  // Predicated region
  $region22: #{vae_forward.1} parent=0 // pred_check
    _
  $region23: #{vae_forward.1} parent=0 // pred_check_branch
    %3278 = sbr.rel (0) target = $region25
  $region24: #{vae_forward.1} parent=0 // pred_region
    _
  $region25: #{vae_forward.1} parent=0 // pred_fallthru
    _
  // Predicated region
  $region26: #{vae_forward.1} parent=0 // pred_check
    _
  $region27: #{vae_forward.1} parent=0 // pred_check_branch
    %3280 = sbr.rel (0) target = $region29
  $region28: #{vae_forward.1} parent=0 // pred_region
    _
  $region29: #{vae_forward.1} parent=0 // pred_fallthru
    _
  // Predicated region
  $region30: #{vae_forward.1} parent=0 // pred_check
    _
  $region31: #{vae_forward.1} parent=0 // pred_check_branch
    %3282 = sbr.rel (0) target = $region33
  $region32: #{vae_forward.1} parent=0 // pred_region
    _
  $region33: #{vae_forward.1} parent=0 // pred_fallthru
    _

</llo_original>
